<compile_context>
chip_gen: v7x
topology: tpu7x:2x2x1
jax: 0.10.0
libtpu: 0.0.40
codegen_flags: <defaults>
</compile_context>

<pallas_src>
import functools
import math

import jax
import jax.numpy as jnp
from jax.experimental import pallas as pl
from jax.experimental.pallas import tpu as pltpu
from jax.scipy.special import erf as _jax_erf  # reference only (not in kernels)

# Scaled-down model constants for the small self-test (original: 512 / 3).
LEN_AFTER_AE = 48
N_HEADS = 3          # bert_n_heads
BN_EPS = 1e-5
LN_EPS = 1e-5


# ---------------------------------------------------------------------------
# In-kernel helpers (operate on values, Mosaic-lowerable ops only)
# ---------------------------------------------------------------------------
def _mm_t(x, w):
    """x @ w.T with w in PyTorch (out_features, in_features) layout.
    Contracts the last dims of both operands -> no in-kernel transpose."""
    return jax.lax.dot_general(
        x, w, (((1,), (1,)), ((), ())), preferred_element_type=jnp.float32)


def _mm(x, y):
    """Plain x @ y."""
    return jax.lax.dot_general(
        x, y, (((1,), (0,)), ((), ())), preferred_element_type=jnp.float32)


def _erf(x):
    # Abramowitz & Stegun 7.1.26, |err| < 1.5e-7.
    a1, a2, a3, a4, a5 = (0.254829592, -0.284496736, 1.421413741,
                          -1.453152027, 1.061405429)
    p = 0.3275911
    ax = jnp.abs(x)
    t = 1.0 / (1.0 + p * ax)
    poly = ((((a5 * t + a4) * t + a3) * t + a2) * t + a1) * t
    y = 1.0 - poly * jnp.exp(-ax * ax)
    return jnp.where(x >= 0, y, -y)


def _gelu(x):
    return x * 0.5 * (1.0 + _erf(x * (1.0 / math.sqrt(2.0))))


def _batchnorm_eval(x, gamma, beta, mean, var):
    return (x - mean) * jax.lax.rsqrt(var + BN_EPS) * gamma + beta


def _layernorm(x, gamma, beta):
    mu = jnp.mean(x, axis=-1, keepdims=True)
    d = x - mu
    v = jnp.mean(d * d, axis=-1, keepdims=True)
    return d * jax.lax.rsqrt(v + LN_EPS) * gamma + beta


def _softmax_last(s):
    m = jnp.max(s, axis=-1, keepdims=True)
    e = jnp.exp(s - m)
    # divide on the EUP (reciprocal) instead of the VALU
    return e * pl.reciprocal(jnp.sum(e, axis=-1, keepdims=True), approx=True)


def _branch_spec(arr):
    nd = arr.ndim
    return pl.BlockSpec((1,) + arr.shape[1:], lambda i: (i,) + (0,) * (nd - 1))


def _row(v):
    return v.reshape(1, -1)


# ---------------------------------------------------------------------------
# K1: per-branch  Linear + gelu + BatchNorm(eval)  +  fused-QKV self-attention
# ---------------------------------------------------------------------------
def _branch_attn_kernel(x_ref, pw_ref, pb_ref, bng_ref, bnb_ref, bnm_ref,
                        bnv_ref, wqkv_ref, ct_ref, h_ref, qkv_scr,
                        *, n_heads, d_k, scale):
    # (a) branch input projection -> gelu -> BatchNorm1d(eval); dropout == id.
    h = _gelu(_mm_t(x_ref[0], pw_ref[0]) + pb_ref[0])
    h = _batchnorm_eval(h, bng_ref[0], bnb_ref[0], bnm_ref[0], bnv_ref[0])
    h_ref[0] = h                                   # residual for the epilogue
    # (b) single concatenated QKV projection, sliced from VMEM scratch.
    qkv_scr[...] = _mm_t(h, wqkv_ref[0])
    dp = n_heads * d_k
    for hd in range(n_heads):                      # all heads in one body
        q = qkv_scr[:, hd * d_k:(hd + 1) * d_k]
        k = qkv_scr[:, dp + hd * d_k:dp + (hd + 1) * d_k]
        v = qkv_scr[:, 2 * dp + hd * d_k:2 * dp + (hd + 1) * d_k]
        att = _softmax_last(_mm_t(q, k) * scale)   # (B, B)
        ct_ref[0, hd] = _mm(att, v)                # (B, d_v)


def _branch_attn(x2, pw2, pb2, bng2, bnb2, bnm2, bnv2, wqkv2, *, n_heads, d_k):
    nb, B, _ = x2.shape
    D = pw2.shape[1]
    dp = n_heads * d_k
    kernel = functools.partial(_branch_attn_kernel, n_heads=n_heads, d_k=d_k,
                               scale=1.0 / math.sqrt(d_k))
    args = (x2, pw2, pb2, bng2, bnb2, bnm2, bnv2, wqkv2)
    return pl.pallas_call(
        kernel,
        grid=(nb,),
        in_specs=[_branch_spec(a) for a in args],
        out_specs=(pl.BlockSpec((1, n_heads, B, d_k), lambda i: (i, 0, 0, 0)),
                   pl.BlockSpec((1, B, D), lambda i: (i, 0, 0))),
        out_shape=(jax.ShapeDtypeStruct((nb, n_heads, B, d_k), jnp.float32),
                   jax.ShapeDtypeStruct((nb, B, D), jnp.float32)),
        scratch_shapes=[pltpu.VMEM((B, 3 * dp), jnp.float32)],
        compiler_params=pltpu.CompilerParams(
            dimension_semantics=("parallel",)),
    )(*args)


# ---------------------------------------------------------------------------
# K2: per-branch EncoderLayer epilogue: fc + LN + Linear + LN
# ---------------------------------------------------------------------------
def _enc_post_kernel(ctx_ref, res_ref, fcw_ref, g1_ref, b1_ref, lw_ref, lb_ref,
                     g2_ref, b2_ref, out_ref):
    x = _layernorm(_mm_t(ctx_ref[0], fcw_ref[0]) + res_ref[0],
                   g1_ref[0], b1_ref[0])
    y = _mm_t(x, lw_ref[0]) + lb_ref[0]
    out_ref[0] = _layernorm(y + x, g2_ref[0], b2_ref[0])


def _enc_post(ctx2, res2, fcw2, g12, b12, lw2, lb2, g22, b22):
    nb, B, _ = ctx2.shape
    D = res2.shape[2]
    args = (ctx2, res2, fcw2, g12, b12, lw2, lb2, g22, b22)
    return pl.pallas_call(
        _enc_post_kernel,
        grid=(nb,),
        in_specs=[_branch_spec(a) for a in args],
        out_specs=pl.BlockSpec((1, B, D), lambda i: (i, 0, 0)),
        out_shape=jax.ShapeDtypeStruct((nb, B, D), jnp.float32),
        compiler_params=pltpu.CompilerParams(
            dimension_semantics=("parallel",)),
    )(*args)


# ---------------------------------------------------------------------------
# K3: both-stream Linear + gelu + BN + fused-QKV CrossAttention
# ---------------------------------------------------------------------------
def _cross_attn_kernel(xa_ref, pwa_ref, pba_ref, bga_ref, bba_ref, bma_ref,
                       bva_ref, xb_ref, pwb_ref, pbb_ref, bgb_ref, bbb_ref,
                       bmb_ref, bvb_ref, wqkva_ref, wqkvb_ref,
                       ct_ref, ct1_ref, ha_ref, hb_ref,
                       qkva_scr, qkvb_scr, *, n_heads, d_k, scale):
    ha = _gelu(_mm_t(xa_ref[...], pwa_ref[...]) + pba_ref[...])
    ha = _batchnorm_eval(ha, bga_ref[...], bba_ref[...], bma_ref[...],
                         bva_ref[...])
    hb = _gelu(_mm_t(xb_ref[...], pwb_ref[...]) + pbb_ref[...])
    hb = _batchnorm_eval(hb, bgb_ref[...], bbb_ref[...], bmb_ref[...],
                         bvb_ref[...])
    ha_ref[...] = ha
    hb_ref[...] = hb
    qkva_scr[...] = _mm_t(ha, wqkva_ref[...])   # W_Q |W_K |W_V   (stream A)
    qkvb_scr[...] = _mm_t(hb, wqkvb_ref[...])   # W_Q1|W_K1|W_V1  (stream B)
    dp = n_heads * d_k
    for hd in range(n_heads):
        qa = qkva_scr[:, hd * d_k:(hd + 1) * d_k]
        ka = qkva_scr[:, dp + hd * d_k:dp + (hd + 1) * d_k]
        va = qkva_scr[:, 2 * dp + hd * d_k:2 * dp + (hd + 1) * d_k]
        qb = qkvb_scr[:, hd * d_k:(hd + 1) * d_k]
        kb = qkvb_scr[:, dp + hd * d_k:dp + (hd + 1) * d_k]
        vb = qkvb_scr[:, 2 * dp + hd * d_k:2 * dp + (hd + 1) * d_k]
        # scores  = Q1 @ K.T  -> context  = softmax(scores)  @ V
        att = _softmax_last(_mm_t(qb, ka) * scale)
        ct_ref[hd] = _mm(att, va)
        # scores1 = Q  @ K1.T -> context1 = softmax(scores1) @ V1
        att1 = _softmax_last(_mm_t(qa, kb) * scale)
        ct1_ref[hd] = _mm(att1, vb)


def _cross_attn(xa, pwa, pba, bga, bba, bma, bva,
                xb, pwb, pbb, bgb, bbb, bmb, bvb,
                wqkva, wqkvb, *, n_heads, d_k):
    B = xa.shape[0]
    D = pwa.shape[0]
    dp = n_heads * d_k
    kernel = functools.partial(_cross_attn_kernel, n_heads=n_heads, d_k=d_k,
                               scale=1.0 / math.sqrt(d_k))
    return pl.pallas_call(
        kernel,
        out_shape=(jax.ShapeDtypeStruct((n_heads, B, d_k), jnp.float32),
                   jax.ShapeDtypeStruct((n_heads, B, d_k), jnp.float32),
                   jax.ShapeDtypeStruct((B, D), jnp.float32),
                   jax.ShapeDtypeStruct((B, D), jnp.float32)),
        scratch_shapes=[pltpu.VMEM((B, 3 * dp), jnp.float32),
                        pltpu.VMEM((B, 3 * dp), jnp.float32)],
    )(xa, pwa, pba, bga, bba, bma, bva,
      xb, pwb, pbb, bgb, bbb, bmb, bvb, wqkva, wqkvb)


# ---------------------------------------------------------------------------
# K4: CrossAttention epilogue (fc/fc1 + 2x(LN + Linear + LN)) + final l5
# ---------------------------------------------------------------------------
def _cross_post_kernel(ctx_ref, ctx1_ref, resa_ref, resb_ref, fcw_ref,
                       fc1w_ref, g1a_ref, b1a_ref, lwa_ref, lba_ref, g2a_ref,
                       b2a_ref, g1b_ref, b1b_ref, lwb_ref, lbb_ref, g2b_ref,
                       b2b_ref, w5a_ref, w5b_ref, b5_ref, out_ref):
    xa = _layernorm(_mm_t(ctx_ref[...], fcw_ref[...]) + resa_ref[...],
                    g1a_ref[...], b1a_ref[...])
    xa = _layernorm(_mm_t(xa, lwa_ref[...]) + lba_ref[...] + xa,
                    g2a_ref[...], b2a_ref[...])
    xb = _layernorm(_mm_t(ctx1_ref[...], fc1w_ref[...]) + resb_ref[...],
                    g1b_ref[...], b1b_ref[...])
    xb = _layernorm(_mm_t(xb, lwb_ref[...]) + lbb_ref[...] + xb,
                    g2b_ref[...], b2b_ref[...])
    # l5 on concat(xa, xb): weight pre-split in the wrapper -> two matmuls.
    out_ref[...] = (_mm_t(xa, w5a_ref[...]) + _mm_t(xb, w5b_ref[...])
                    + b5_ref[...])


def _cross_post(ctx, ctx1, resa, resb, fcw, fc1w,
                g1a, b1a, lwa, lba, g2a, b2a,
                g1b, b1b, lwb, lbb, g2b, b2b, w5a, w5b, b5):
    B = ctx.shape[0]
    out_dim = w5a.shape[0]
    return pl.pallas_call(
        _cross_post_kernel,
        out_shape=jax.ShapeDtypeStruct((B, out_dim), jnp.float32),
    )(ctx, ctx1, resa, resb, fcw, fc1w, g1a, b1a, lwa, lba, g2a, b2a,
      g1b, b1b, lwb, lbb, g2b, b2b, w5a, w5b, b5)


# ---------------------------------------------------------------------------
# EN2 forward (Pallas-backed, inference semantics)
# ---------------------------------------------------------------------------
@jax.jit
def en2_forward(X, params):
    B, vec = X.shape
    half = vec // 2
    H = N_HEADS
    xa = X[:, :half]
    xb = X[:, half:]

    stack = lambda a, b: jnp.stack([a, b], axis=0)

    # ---- stage 1+2: per-branch  l1/l2 + bn1/bn2  +  EncoderLayer -----------
    D1 = params["l1"]["w"].shape[0]
    d_k1 = D1 // H
    dp1 = H * d_k1

    def qkv_cat(p):
        return jnp.concatenate([p["W_Q"], p["W_K"], p["W_V"]], axis=0)

    x2 = stack(xa, xb)
    pw2 = stack(params["l1"]["w"], params["l2"]["w"])
    pb2 = stack(_row(params["l1"]["b"]), _row(params["l2"]["b"]))
    bng2 = stack(_row(params["bn1"]["gamma"]), _row(params["bn2"]["gamma"]))
    bnb2 = stack(_row(params["bn1"]["beta"]), _row(params["bn2"]["beta"]))
    bnm2 = stack(_row(params["bn1"]["mean"]), _row(params["bn2"]["mean"]))
    bnv2 = stack(_row(params["bn1"]["var"]), _row(params["bn2"]["var"]))
    wqkv2 = stack(qkv_cat(params["att1"]["attn"]),
                  qkv_cat(params["att2"]["attn"]))

    ct2, h2 = _branch_attn(x2, pw2, pb2, bng2, bnb2, bnm2, bnv2, wqkv2,
                           n_heads=H, d_k=d_k1)
    # The module's context.transpose(1,2).reshape(-1, H*d_v) head scramble:
    # a minor-dim relayout -> done as a tiny XLA reshape between kernels.
    ctx2 = jnp.transpose(ct2, (0, 1, 3, 2)).reshape(2, B, dp1)

    fcw2 = stack(params["att1"]["attn"]["fc"], params["att2"]["attn"]["fc"])
    g12 = stack(_row(params["att1"]["AN1"]["gamma"]),
                _row(params["att2"]["AN1"]["gamma"]))
    b12 = stack(_row(params["att1"]["AN1"]["beta"]),
                _row(params["att2"]["AN1"]["beta"]))
    lw2 = stack(params["att1"]["l1"]["w"], params["att2"]["l1"]["w"])
    lb2 = stack(_row(params["att1"]["l1"]["b"]), _row(params["att2"]["l1"]["b"]))
    g22 = stack(_row(params["att1"]["AN2"]["gamma"]),
                _row(params["att2"]["AN2"]["gamma"]))
    b22 = stack(_row(params["att1"]["AN2"]["beta"]),
                _row(params["att2"]["AN2"]["beta"]))

    enc2 = _enc_post(ctx2, h2, fcw2, g12, b12, lw2, lb2, g22, b22)  # (2,B,D1)

    # ---- stage 3+4: l3/l4 + bn3/bn4 + EncoderLayertwo + l5 ------------------
    D2 = params["l3"]["w"].shape[0]
    d_k2 = D2 // H
    dp2 = H * d_k2
    att3 = params["att3"]
    wqkva = jnp.concatenate([att3["attn"]["W_Q"], att3["attn"]["W_K"],
                             att3["attn"]["W_V"]], axis=0)
    wqkvb = jnp.concatenate([att3["attn"]["W_Q1"], att3["attn"]["W_K1"],
                             att3["attn"]["W_V1"]], axis=0)

    ct, ct1, ha, hb = _cross_attn(
        enc2[0], params["l3"]["w"], _row(params["l3"]["b"]),
        _row(params["bn3"]["gamma"]), _row(params["bn3"]["beta"]),
        _row(params["bn3"]["mean"]), _row(params["bn3"]["var"]),
        enc2[1], params["l4"]["w"], _row(params["l4"]["b"]),
        _row(params["bn4"]["gamma"]), _row(params["bn4"]["beta"]),
        _row(params["bn4"]["mean"]), _row(params["bn4"]["var"]),
        wqkva, wqkvb, n_heads=H, d_k=d_k2)

    ctx = jnp.transpose(ct, (0, 2, 1)).reshape(B, dp2)
    ctx1 = jnp.transpose(ct1, (0, 2, 1)).reshape(B, dp2)

    w5 = params["l5"]["w"]
    return _cross_post(
        ctx, ctx1, ha, hb, att3["attn"]["fc"], att3["attn"]["fc1"],
        _row(att3["AN1"]["gamma"]), _row(att3["AN1"]["beta"]),
        att3["l1"]["w"], _row(att3["l1"]["b"]),
        _row(att3["AN2"]["gamma"]), _row(att3["AN2"]["beta"]),
        _row(att3["AN1_1"]["gamma"]), _row(att3["AN1_1"]["beta"]),
        att3["l1_1"]["w"], _row(att3["l1_1"]["b"]),
        _row(att3["AN2_1"]["gamma"]), _row(att3["AN2_1"]["beta"]),
        w5[:, :D2], w5[:, D2:], _row(params["l5"]["b"]))


# ---------------------------------------------------------------------------
# Pure-JAX reference (mirrors EN2.forward line by line, eval mode)
# ---------------------------------------------------------------------------
def reference_forward(X, params):
    H = N_HEADS

    def lin(x, w, b=None):
        y = x @ w.T
        return y if b is None else y + b

    def gelu(x):
        return x * 0.5 * (1.0 + _jax_erf(x / math.sqrt(2.0)))

    def bn(x, p):
        return ((x - p["mean"]) / jnp.sqrt(p["var"] + BN_EPS)
                * p["gamma"] + p["beta"])

    def ln(x, p):
        mu = x.mean(-1, keepdims=True)
        var = ((x - mu) ** 2).mean(-1, keepdims=True)
        return (x - mu) / jnp.sqrt(var + LN_EPS) * p["gamma"] + p["beta"]

    def split_heads(y, n, d):
        return jnp.transpose(y.reshape(n, H, d), (1, 0, 2))

    def mix_heads(c, n, d):
        return jnp.transpose(c, (0, 2, 1)).reshape(n, H * d)

    def mha(x, p):
        n, dim = x.shape
        d_k = dim // H
        Q = split_heads(lin(x, p["W_Q"]), n, d_k)
        K = split_heads(lin(x, p["W_K"]), n, d_k)
        V = split_heads(lin(x, p["W_V"]), n, d_k)
        s = jnp.einsum("hqd,hkd->hqk", Q, K) / math.sqrt(d_k)
        c = jnp.einsum("hqk,hkd->hqd", jax.nn.softmax(s, axis=-1), V)
        return lin(mix_heads(c, n, d_k), p["fc"])

    def encoder(x, p):
        o = mha(x, p["attn"])
        x = ln(o + x, p["AN1"])
        o = lin(x, p["l1"]["w"], p["l1"]["b"])
        return ln(o + x, p["AN2"])

    def cross(x, x1, p):
        n, dim = x.shape
        d_k = dim // H
        Q = split_heads(lin(x, p["W_Q"]), n, d_k)
        K = split_heads(lin(x, p["W_K"]), n, d_k)
        V = split_heads(lin(x, p["W_V"]), n, d_k)
        Q1 = split_heads(lin(x1, p["W_Q1"]), x1.shape[0], d_k)
        K1 = split_heads(lin(x1, p["W_K1"]), x1.shape[0], d_k)
        V1 = split_heads(lin(x1, p["W_V1"]), x1.shape[0], d_k)
        s = jnp.einsum("hqd,hkd->hqk", Q1, K) / math.sqrt(d_k)
        s1 = jnp.einsum("hqd,hkd->hqk", Q, K1) / math.sqrt(d_k)
        c = jnp.einsum("hqk,hkd->hqd", jax.nn.softmax(s, -1), V)
        c1 = jnp.einsum("hqk,hkd->hqd", jax.nn.softmax(s1, -1), V1)
        out = lin(mix_heads(c, c.shape[1], d_k), p["fc"])
        out1 = lin(mix_heads(c1, c1.shape[1], d_k), p["fc1"])
        return out, out1

    def encoder_two(x, x1, p):
        o, o1 = cross(x, x1, p["attn"])
        x = ln(o + x, p["AN1"])
        o = lin(x, p["l1"]["w"], p["l1"]["b"])
        x = ln(o + x, p["AN2"])
        x1 = ln(o1 + x1, p["AN1_1"])
        o1 = lin(x1, p["l1_1"]["w"], p["l1_1"]["b"])
        x1 = ln(o1 + x1, p["AN2_1"])
        return x, x1

    half = X.shape[1] // 2
    x1 = X[:, :half]
    x2 = X[:, half:]
    x1 = bn(gelu(lin(x1, params["l1"]["w"], params["l1"]["b"])), params["bn1"])
    x1 = encoder(x1, params["att1"])
    x2 = bn(gelu(lin(x2, params["l2"]["w"], params["l2"]["b"])), params["bn2"])
    x2 = encoder(x2, params["att2"])
    x1 = bn(gelu(lin(x1, params["l3"]["w"], params["l3"]["b"])), params["bn3"])
    x2 = bn(gelu(lin(x2, params["l4"]["w"], params["l4"]["b"])), params["bn4"])
    x1, x2 = encoder_two(x1, x2, params["att3"])
    Xc = jnp.concatenate([x1, x2], axis=1)
    return lin(Xc, params["l5"]["w"], params["l5"]["b"])


# ---------------------------------------------------------------------------
# Deterministic parameter construction
# ---------------------------------------------------------------------------
def init_params(key, vector_size):
    half = vector_size // 2
    d1 = 2 * LEN_AFTER_AE
    d2 = LEN_AFTER_AE
    H = N_HEADS
    keys = iter(jax.random.split(key, 128))

    def nxt():
        return next(keys)

    def linear_p(out_d, in_d, bias=True):
        s = 1.0 / math.sqrt(in_d)
        p = {"w": jax.random.uniform(nxt(), (out_d, in_d), jnp.float32, -s, s)}
        if bias:
            p["b"] = jax.random.uniform(nxt(), (out_d,), jnp.float32, -s, s)
        return p

    def bn_p(d):
        return {"gamma": 1.0 + 0.1 * jax.random.normal(nxt(), (d,), jnp.float32),
                "beta": 0.1 * jax.random.normal(nxt(), (d,), jnp.float32),
                "mean": 0.1 * jax.random.normal(nxt(), (d,), jnp.float32),
                "var": jax.random.uniform(nxt(), (d,), jnp.float32, 0.5, 1.5)}

    def ln_p(d):
        return {"gamma": 1.0 + 0.1 * jax.random.normal(nxt(), (d,), jnp.float32),
                "beta": 0.1 * jax.random.normal(nxt(), (d,), jnp.float32)}

    def mha_p(d):
        dp = H * (d // H)
        return {"W_Q": linear_p(dp, d, False)["w"],
                "W_K": linear_p(dp, d, False)["w"],
                "W_V": linear_p(dp, d, False)["w"],
                "fc": linear_p(d, dp, False)["w"]}

    def cross_p(d):
        dp = H * (d // H)
        p = mha_p(d)
        p["W_Q1"] = linear_p(dp, d, False)["w"]
        p["W_K1"] = linear_p(dp, d, False)["w"]
        p["W_V1"] = linear_p(dp, d, False)["w"]
        p["fc1"] = linear_p(d, dp, False)["w"]
        return p

    def encoder_p(d):
        return {"attn": mha_p(d), "AN1": ln_p(d), "l1": linear_p(d, d),
                "AN2": ln_p(d)}

    def encoder_two_p(d):
        return {"attn": cross_p(d),
                "AN1": ln_p(d), "l1": linear_p(d, d), "AN2": ln_p(d),
                "AN1_1": ln_p(d), "l1_1": linear_p(d, d), "AN2_1": ln_p(d)}

    return {
        "l1": linear_p(d1, half), "bn1": bn_p(d1), "att1": encoder_p(d1),
        "l2": linear_p(d1, half), "bn2": bn_p(d1), "att2": encoder_p(d1),
        "l3": linear_p(d2, d1), "bn3": bn_p(d2),
        "l4": linear_p(d2, d1), "bn4": bn_p(d2),
        "att3": encoder_two_p(d2),
        "l5": linear_p(d2, 2 * d2),
    }


# ---------------------------------------------------------------------------
if __name__ == "__main__":
    B = 8
    VECTOR_SIZE = 64   # per-branch input dim = 32

    key = jax.random.PRNGKey(0)
    kp, kx = jax.random.split(key)
    params = init_params(kp, VECTOR_SIZE)
    X = jax.random.normal(kx, (B, VECTOR_SIZE), jnp.float32)

    out = jax.block_until_ready(en2_forward(X, params))
    ref = reference_forward(X, params)

    assert out.shape == (B, LEN_AFTER_AE), out.shape
    max_err = float(jnp.max(jnp.abs(out - ref)))
    # Tolerance accounts for pl.reciprocal(approx=True) in the softmax and the
    # in-kernel polynomial erf (everything else is f32 with f32 accumulation).
    assert jnp.allclose(out, ref, atol=3e-3, rtol=3e-3), f"max|err|={max_err}"
    print("KERNEL_OK")
</pallas_src>

<mosaic_0001>
module attributes {stable_mosaic.version = 11 : i64} {
  func.func @_branch_attn_kernel(%arg0: i32, %arg1: memref<1x8x32xf32, #tpu.memory_space<vmem>>, %arg2: memref<1x96x32xf32, #tpu.memory_space<vmem>>, %arg3: memref<1x1x96xf32, #tpu.memory_space<vmem>>, %arg4: memref<1x1x96xf32, #tpu.memory_space<vmem>>, %arg5: memref<1x1x96xf32, #tpu.memory_space<vmem>>, %arg6: memref<1x1x96xf32, #tpu.memory_space<vmem>>, %arg7: memref<1x1x96xf32, #tpu.memory_space<vmem>>, %arg8: memref<1x288x96xf32, #tpu.memory_space<vmem>>, %arg9: memref<1x3x8x32xf32, #tpu.memory_space<vmem>>, %arg10: memref<1x8x96xf32, #tpu.memory_space<vmem>>, %arg11: memref<8x288xf32, #tpu.memory_space<vmem>>) attributes {dimension_semantics = [#tpu.dimension_semantics<parallel>], iteration_bounds = array<i64: 2>, scalar_prefetch = 0 : i64, scratch_operands = 1 : i64, tpu.core_type = #tpu.core_type<tc>, window_params = [{transform_indices = @transform_0, window_bounds = array<i64: 1, 8, 32>}, {transform_indices = @transform_1, window_bounds = array<i64: 1, 96, 32>}, {transform_indices = @transform_2, window_bounds = array<i64: 1, 1, 96>}, {transform_indices = @transform_3, window_bounds = array<i64: 1, 1, 96>}, {transform_indices = @transform_4, window_bounds = array<i64: 1, 1, 96>}, {transform_indices = @transform_5, window_bounds = array<i64: 1, 1, 96>}, {transform_indices = @transform_6, window_bounds = array<i64: 1, 1, 96>}, {transform_indices = @transform_7, window_bounds = array<i64: 1, 288, 96>}, {transform_indices = @transform_8, window_bounds = array<i64: 1, 3, 8, 32>}, {transform_indices = @transform_9, window_bounds = array<i64: 1, 8, 96>}]} {
    %c0 = arith.constant 0 : index
    %c0_0 = arith.constant 0 : index
    %c0_1 = arith.constant 0 : index
    %0 = vector.load %arg1[%c0, %c0_0, %c0_1] : memref<1x8x32xf32, #tpu.memory_space<vmem>>, vector<1x8x32xf32>
    %1 = vector.shape_cast %0 : vector<1x8x32xf32> to vector<8x32xf32>
    %c0_2 = arith.constant 0 : index
    %c0_3 = arith.constant 0 : index
    %c0_4 = arith.constant 0 : index
    %2 = vector.load %arg2[%c0_2, %c0_3, %c0_4] : memref<1x96x32xf32, #tpu.memory_space<vmem>>, vector<1x96x32xf32>
    %3 = vector.shape_cast %2 : vector<1x96x32xf32> to vector<96x32xf32>
    %cst = arith.constant dense<0.000000e+00> : vector<8x96xf32>
    %4 = tpu.matmul %1, %3, %cst {dimension_numbers = #tpu.dot_dimension_numbers<[1], [1], [0], [0], [0, 0, 1, 0], [], []>} : vector<8x32xf32>, vector<96x32xf32>, vector<8x96xf32> -> vector<8x96xf32>
    %c0_5 = arith.constant 0 : index
    %c0_6 = arith.constant 0 : index
    %c0_7 = arith.constant 0 : index
    %5 = vector.load %arg3[%c0_5, %c0_6, %c0_7] : memref<1x1x96xf32, #tpu.memory_space<vmem>>, vector<1x1x96xf32>
    %6 = vector.shape_cast %5 : vector<1x1x96xf32> to vector<1x96xf32>
    %7 = vector.broadcast %6 : vector<1x96xf32> to vector<8x96xf32>
    %8 = arith.addf %4, %7 : vector<8x96xf32>
    %cst_8 = arith.constant 5.000000e-01 : f32
    %9 = vector.broadcast %cst_8 : f32 to vector<8x96xf32>
    %10 = arith.mulf %8, %9 : vector<8x96xf32>
    %cst_9 = arith.constant 0.707106769 : f32
    %11 = vector.broadcast %cst_9 : f32 to vector<8x96xf32>
    %12 = arith.mulf %8, %11 : vector<8x96xf32>
    %13 = math.absf %12 : vector<8x96xf32>
    %cst_10 = arith.constant 0.327591091 : f32
    %14 = vector.broadcast %cst_10 : f32 to vector<8x96xf32>
    %15 = arith.mulf %14, %13 : vector<8x96xf32>
    %cst_11 = arith.constant 1.000000e+00 : f32
    %16 = vector.broadcast %cst_11 : f32 to vector<8x96xf32>
    %17 = arith.addf %16, %15 : vector<8x96xf32>
    %cst_12 = arith.constant 1.000000e+00 : f32
    %18 = vector.broadcast %cst_12 : f32 to vector<8x96xf32>
    %19 = arith.divf %18, %17 : vector<8x96xf32>
    %cst_13 = arith.constant 1.06140542 : f32
    %20 = vector.broadcast %cst_13 : f32 to vector<8x96xf32>
    %21 = arith.mulf %20, %19 : vector<8x96xf32>
    %cst_14 = arith.constant -1.45315206 : f32
    %22 = vector.broadcast %cst_14 : f32 to vector<8x96xf32>
    %23 = arith.addf %21, %22 : vector<8x96xf32>
    %24 = arith.mulf %23, %19 : vector<8x96xf32>
    %cst_15 = arith.constant 1.42141378 : f32
    %25 = vector.broadcast %cst_15 : f32 to vector<8x96xf32>
    %26 = arith.addf %24, %25 : vector<8x96xf32>
    %27 = arith.mulf %26, %19 : vector<8x96xf32>
    %cst_16 = arith.constant -0.284496725 : f32
    %28 = vector.broadcast %cst_16 : f32 to vector<8x96xf32>
    %29 = arith.addf %27, %28 : vector<8x96xf32>
    %30 = arith.mulf %29, %19 : vector<8x96xf32>
    %cst_17 = arith.constant 0.254829586 : f32
    %31 = vector.broadcast %cst_17 : f32 to vector<8x96xf32>
    %32 = arith.addf %30, %31 : vector<8x96xf32>
    %33 = arith.mulf %32, %19 : vector<8x96xf32>
    %cst_18 = arith.constant 0.000000e+00 : f32
    %34 = vector.broadcast %cst_18 : f32 to vector<8x96xf32>
    %35 = arith.subf %34, %13 : vector<8x96xf32>
    %36 = arith.mulf %35, %13 : vector<8x96xf32>
    %37 = math.exp %36 : vector<8x96xf32>
    %38 = arith.mulf %33, %37 : vector<8x96xf32>
    %cst_19 = arith.constant 1.000000e+00 : f32
    %39 = vector.broadcast %cst_19 : f32 to vector<8x96xf32>
    %40 = arith.subf %39, %38 : vector<8x96xf32>
    %cst_20 = arith.constant 0.000000e+00 : f32
    %41 = vector.broadcast %cst_20 : f32 to vector<8x96xf32>
    %42 = arith.cmpf oge, %12, %41 : vector<8x96xf32>
    %cst_21 = arith.constant 0.000000e+00 : f32
    %43 = vector.broadcast %cst_21 : f32 to vector<8x96xf32>
    %44 = arith.subf %43, %40 : vector<8x96xf32>
    %45 = arith.select %42, %40, %44 : vector<8x96xi1>, vector<8x96xf32>
    %cst_22 = arith.constant 1.000000e+00 : f32
    %46 = vector.broadcast %cst_22 : f32 to vector<8x96xf32>
    %47 = arith.addf %46, %45 : vector<8x96xf32>
    %48 = arith.mulf %10, %47 : vector<8x96xf32>
    %c0_23 = arith.constant 0 : index
    %c0_24 = arith.constant 0 : index
    %c0_25 = arith.constant 0 : index
    %49 = vector.load %arg4[%c0_23, %c0_24, %c0_25] : memref<1x1x96xf32, #tpu.memory_space<vmem>>, vector<1x1x96xf32>
    %50 = vector.shape_cast %49 : vector<1x1x96xf32> to vector<1x96xf32>
    %c0_26 = arith.constant 0 : index
    %c0_27 = arith.constant 0 : index
    %c0_28 = arith.constant 0 : index
    %51 = vector.load %arg5[%c0_26, %c0_27, %c0_28] : memref<1x1x96xf32, #tpu.memory_space<vmem>>, vector<1x1x96xf32>
    %52 = vector.shape_cast %51 : vector<1x1x96xf32> to vector<1x96xf32>
    %c0_29 = arith.constant 0 : index
    %c0_30 = arith.constant 0 : index
    %c0_31 = arith.constant 0 : index
    %53 = vector.load %arg6[%c0_29, %c0_30, %c0_31] : memref<1x1x96xf32, #tpu.memory_space<vmem>>, vector<1x1x96xf32>
    %54 = vector.shape_cast %53 : vector<1x1x96xf32> to vector<1x96xf32>
    %c0_32 = arith.constant 0 : index
    %c0_33 = arith.constant 0 : index
    %c0_34 = arith.constant 0 : index
    %55 = vector.load %arg7[%c0_32, %c0_33, %c0_34] : memref<1x1x96xf32, #tpu.memory_space<vmem>>, vector<1x1x96xf32>
    %56 = vector.shape_cast %55 : vector<1x1x96xf32> to vector<1x96xf32>
    %57 = vector.broadcast %54 : vector<1x96xf32> to vector<8x96xf32>
    %58 = arith.subf %48, %57 : vector<8x96xf32>
    %cst_35 = arith.constant 9.99999974E-6 : f32
    %59 = vector.broadcast %cst_35 : f32 to vector<1x96xf32>
    %60 = arith.addf %56, %59 : vector<1x96xf32>
    %61 = math.rsqrt %60 : vector<1x96xf32>
    %62 = vector.broadcast %61 : vector<1x96xf32> to vector<8x96xf32>
    %63 = arith.mulf %58, %62 : vector<8x96xf32>
    %64 = vector.broadcast %50 : vector<1x96xf32> to vector<8x96xf32>
    %65 = arith.mulf %63, %64 : vector<8x96xf32>
    %66 = vector.broadcast %52 : vector<1x96xf32> to vector<8x96xf32>
    %67 = arith.addf %65, %66 : vector<8x96xf32>
    %c0_36 = arith.constant 0 : index
    %c0_37 = arith.constant 0 : index
    %c0_38 = arith.constant 0 : index
    %68 = vector.load %arg10[%c0_36, %c0_37, %c0_38] : memref<1x8x96xf32, #tpu.memory_space<vmem>>, vector<1x8x96xf32>
    %69 = vector.shape_cast %68 : vector<1x8x96xf32> to vector<8x96xf32>
    %70 = vector.shape_cast %67 : vector<8x96xf32> to vector<1x8x96xf32>
    tpu.vector_store %arg10[%c0_36, %c0_37, %c0_38], %70 {strides = array<i32>} : memref<1x8x96xf32, #tpu.memory_space<vmem>>, vector<1x8x96xf32>,
    %c0_39 = arith.constant 0 : index
    %c0_40 = arith.constant 0 : index
    %c0_41 = arith.constant 0 : index
    %71 = vector.load %arg8[%c0_39, %c0_40, %c0_41] : memref<1x288x96xf32, #tpu.memory_space<vmem>>, vector<1x288x96xf32>
    %72 = vector.shape_cast %71 : vector<1x288x96xf32> to vector<288x96xf32>
    %cst_42 = arith.constant dense<0.000000e+00> : vector<8x288xf32>
    %73 = tpu.matmul %67, %72, %cst_42 {dimension_numbers = #tpu.dot_dimension_numbers<[1], [1], [0], [0], [0, 0, 1, 0], [], []>} : vector<8x96xf32>, vector<288x96xf32>, vector<8x288xf32> -> vector<8x288xf32>
    %c0_43 = arith.constant 0 : index
    %c0_44 = arith.constant 0 : index
    %74 = vector.load %arg11[%c0_43, %c0_44] : memref<8x288xf32, #tpu.memory_space<vmem>>, vector<8x288xf32>
    tpu.vector_store %arg11[%c0_43, %c0_44], %73 {strides = array<i32>} : memref<8x288xf32, #tpu.memory_space<vmem>>, vector<8x288xf32>,
    %c0_45 = arith.constant 0 : index
    %c0_46 = arith.constant 0 : index
    %75 = vector.load %arg11[%c0_45, %c0_46] : memref<8x288xf32, #tpu.memory_space<vmem>>, vector<8x32xf32>
    %c0_47 = arith.constant 0 : index
    %c96 = arith.constant 96 : index
    %76 = vector.load %arg11[%c0_47, %c96] : memref<8x288xf32, #tpu.memory_space<vmem>>, vector<8x32xf32>
    %c0_48 = arith.constant 0 : index
    %c192 = arith.constant 192 : index
    %77 = vector.load %arg11[%c0_48, %c192] : memref<8x288xf32, #tpu.memory_space<vmem>>, vector<8x32xf32>
    %cst_49 = arith.constant dense<0.000000e+00> : vector<8x8xf32>
    %78 = tpu.matmul %75, %76, %cst_49 {dimension_numbers = #tpu.dot_dimension_numbers<[1], [1], [0], [0], [0, 0, 1, 0], [], []>} : vector<8x32xf32>, vector<8x32xf32>, vector<8x8xf32> -> vector<8x8xf32>
    %cst_50 = arith.constant 0.176776692 : f32
    %79 = vector.broadcast %cst_50 : f32 to vector<8x8xf32>
    %80 = arith.mulf %78, %79 : vector<8x8xf32>
    %cst_51 = arith.constant dense<0xFF800000> : vector<8xf32>
    %81 = vector.multi_reduction <maximumf>, %80, %cst_51 [1] : vector<8x8xf32> to vector<8xf32>
    %82 = vector.shape_cast %81 : vector<8xf32> to vector<8x1xf32>
    %83 = vector.broadcast %82 : vector<8x1xf32> to vector<8x8xf32>
    %84 = arith.subf %80, %83 : vector<8x8xf32>
    %85 = math.exp %84 : vector<8x8xf32>
    %cst_52 = arith.constant dense<0.000000e+00> : vector<8xf32>
    %86 = vector.multi_reduction <add>, %85, %cst_52 [1] : vector<8x8xf32> to vector<8xf32>
    %87 = vector.shape_cast %86 : vector<8xf32> to vector<8x1xf32>
    %88 = tpu.reciprocal %87 {approx = true} : vector<8x1xf32> -> vector<8x1xf32>
    %89 = vector.broadcast %88 : vector<8x1xf32> to vector<8x8xf32>
    %90 = arith.mulf %85, %89 : vector<8x8xf32>
    %cst_53 = arith.constant dense<0.000000e+00> : vector<8x32xf32>
    %91 = tpu.matmul %90, %77, %cst_53 {dimension_numbers = #tpu.dot_dimension_numbers<[1], [0], [0], [1], [0, 0, 1, 1], [], []>} : vector<8x8xf32>, vector<8x32xf32>, vector<8x32xf32> -> vector<8x32xf32>
    %c0_54 = arith.constant 0 : index
    %c0_55 = arith.constant 0 : index
    %c0_56 = arith.constant 0 : index
    %c0_57 = arith.constant 0 : index
    %92 = vector.load %arg9[%c0_54, %c0_55, %c0_56, %c0_57] : memref<1x3x8x32xf32, #tpu.memory_space<vmem>>, vector<1x1x8x32xf32>
    %93 = vector.shape_cast %92 : vector<1x1x8x32xf32> to vector<8x32xf32>
    %94 = vector.shape_cast %91 : vector<8x32xf32> to vector<1x1x8x32xf32>
    tpu.vector_store %arg9[%c0_54, %c0_55, %c0_56, %c0_57], %94 {strides = array<i32>} : memref<1x3x8x32xf32, #tpu.memory_space<vmem>>, vector<1x1x8x32xf32>,
    %c0_58 = arith.constant 0 : index
    %c32 = arith.constant 32 : index
    %95 = vector.load %arg11[%c0_58, %c32] : memref<8x288xf32, #tpu.memory_space<vmem>>, vector<8x32xf32>
    %c0_59 = arith.constant 0 : index
    %c128 = arith.constant 128 : index
    %96 = vector.load %arg11[%c0_59, %c128] : memref<8x288xf32, #tpu.memory_space<vmem>>, vector<8x32xf32>
    %c0_60 = arith.constant 0 : index
    %c224 = arith.constant 224 : index
    %97 = vector.load %arg11[%c0_60, %c224] : memref<8x288xf32, #tpu.memory_space<vmem>>, vector<8x32xf32>
    %cst_61 = arith.constant dense<0.000000e+00> : vector<8x8xf32>
    %98 = tpu.matmul %95, %96, %cst_61 {dimension_numbers = #tpu.dot_dimension_numbers<[1], [1], [0], [0], [0, 0, 1, 0], [], []>} : vector<8x32xf32>, vector<8x32xf32>, vector<8x8xf32> -> vector<8x8xf32>
    %cst_62 = arith.constant 0.176776692 : f32
    %99 = vector.broadcast %cst_62 : f32 to vector<8x8xf32>
    %100 = arith.mulf %98, %99 : vector<8x8xf32>
    %cst_63 = arith.constant dense<0xFF800000> : vector<8xf32>
    %101 = vector.multi_reduction <maximumf>, %100, %cst_63 [1] : vector<8x8xf32> to vector<8xf32>
    %102 = vector.shape_cast %101 : vector<8xf32> to vector<8x1xf32>
    %103 = vector.broadcast %102 : vector<8x1xf32> to vector<8x8xf32>
    %104 = arith.subf %100, %103 : vector<8x8xf32>
    %105 = math.exp %104 : vector<8x8xf32>
    %cst_64 = arith.constant dense<0.000000e+00> : vector<8xf32>
    %106 = vector.multi_reduction <add>, %105, %cst_64 [1] : vector<8x8xf32> to vector<8xf32>
    %107 = vector.shape_cast %106 : vector<8xf32> to vector<8x1xf32>
    %108 = tpu.reciprocal %107 {approx = true} : vector<8x1xf32> -> vector<8x1xf32>
    %109 = vector.broadcast %108 : vector<8x1xf32> to vector<8x8xf32>
    %110 = arith.mulf %105, %109 : vector<8x8xf32>
    %cst_65 = arith.constant dense<0.000000e+00> : vector<8x32xf32>
    %111 = tpu.matmul %110, %97, %cst_65 {dimension_numbers = #tpu.dot_dimension_numbers<[1], [0], [0], [1], [0, 0, 1, 1], [], []>} : vector<8x8xf32>, vector<8x32xf32>, vector<8x32xf32> -> vector<8x32xf32>
    %c0_66 = arith.constant 0 : index
    %c1 = arith.constant 1 : index
    %c0_67 = arith.constant 0 : index
    %c0_68 = arith.constant 0 : index
    %112 = vector.load %arg9[%c0_66, %c1, %c0_67, %c0_68] : memref<1x3x8x32xf32, #tpu.memory_space<vmem>>, vector<1x1x8x32xf32>
    %113 = vector.shape_cast %112 : vector<1x1x8x32xf32> to vector<8x32xf32>
    %114 = vector.shape_cast %111 : vector<8x32xf32> to vector<1x1x8x32xf32>
    tpu.vector_store %arg9[%c0_66, %c1, %c0_67, %c0_68], %114 {strides = array<i32>} : memref<1x3x8x32xf32, #tpu.memory_space<vmem>>, vector<1x1x8x32xf32>,
    %c0_69 = arith.constant 0 : index
    %c64 = arith.constant 64 : index
    %115 = vector.load %arg11[%c0_69, %c64] : memref<8x288xf32, #tpu.memory_space<vmem>>, vector<8x32xf32>
    %c0_70 = arith.constant 0 : index
    %c160 = arith.constant 160 : index
    %116 = vector.load %arg11[%c0_70, %c160] : memref<8x288xf32, #tpu.memory_space<vmem>>, vector<8x32xf32>
    %c0_71 = arith.constant 0 : index
    %c256 = arith.constant 256 : index
    %117 = vector.load %arg11[%c0_71, %c256] : memref<8x288xf32, #tpu.memory_space<vmem>>, vector<8x32xf32>
    %cst_72 = arith.constant dense<0.000000e+00> : vector<8x8xf32>
    %118 = tpu.matmul %115, %116, %cst_72 {dimension_numbers = #tpu.dot_dimension_numbers<[1], [1], [0], [0], [0, 0, 1, 0], [], []>} : vector<8x32xf32>, vector<8x32xf32>, vector<8x8xf32> -> vector<8x8xf32>
    %cst_73 = arith.constant 0.176776692 : f32
    %119 = vector.broadcast %cst_73 : f32 to vector<8x8xf32>
    %120 = arith.mulf %118, %119 : vector<8x8xf32>
    %cst_74 = arith.constant dense<0xFF800000> : vector<8xf32>
    %121 = vector.multi_reduction <maximumf>, %120, %cst_74 [1] : vector<8x8xf32> to vector<8xf32>
    %122 = vector.shape_cast %121 : vector<8xf32> to vector<8x1xf32>
    %123 = vector.broadcast %122 : vector<8x1xf32> to vector<8x8xf32>
    %124 = arith.subf %120, %123 : vector<8x8xf32>
    %125 = math.exp %124 : vector<8x8xf32>
    %cst_75 = arith.constant dense<0.000000e+00> : vector<8xf32>
    %126 = vector.multi_reduction <add>, %125, %cst_75 [1] : vector<8x8xf32> to vector<8xf32>
    %127 = vector.shape_cast %126 : vector<8xf32> to vector<8x1xf32>
    %128 = tpu.reciprocal %127 {approx = true} : vector<8x1xf32> -> vector<8x1xf32>
    %129 = vector.broadcast %128 : vector<8x1xf32> to vector<8x8xf32>
    %130 = arith.mulf %125, %129 : vector<8x8xf32>
    %cst_76 = arith.constant dense<0.000000e+00> : vector<8x32xf32>
    %131 = tpu.matmul %130, %117, %cst_76 {dimension_numbers = #tpu.dot_dimension_numbers<[1], [0], [0], [1], [0, 0, 1, 1], [], []>} : vector<8x8xf32>, vector<8x32xf32>, vector<8x32xf32> -> vector<8x32xf32>
    %c0_77 = arith.constant 0 : index
    %c2 = arith.constant 2 : index
    %c0_78 = arith.constant 0 : index
    %c0_79 = arith.constant 0 : index
    %132 = vector.load %arg9[%c0_77, %c2, %c0_78, %c0_79] : memref<1x3x8x32xf32, #tpu.memory_space<vmem>>, vector<1x1x8x32xf32>
    %133 = vector.shape_cast %132 : vector<1x1x8x32xf32> to vector<8x32xf32>
    %134 = vector.shape_cast %131 : vector<8x32xf32> to vector<1x1x8x32xf32>
    tpu.vector_store %arg9[%c0_77, %c2, %c0_78, %c0_79], %134 {strides = array<i32>} : memref<1x3x8x32xf32, #tpu.memory_space<vmem>>, vector<1x1x8x32xf32>,
    return
  }
  func.func @transform_0(%arg0: i32) -> (i32, i32, i32) {
    %c0_i32 = arith.constant 0 : i32
    %c0_i32_0 = arith.constant 0 : i32
    %c0_i32_1 = arith.constant 0 : i32
    return %arg0, %c0_i32, %c0_i32_0 : i32, i32, i32
  }
  func.func @transform_1(%arg0: i32) -> (i32, i32, i32) {
    %c0_i32 = arith.constant 0 : i32
    %c0_i32_0 = arith.constant 0 : i32
    %c0_i32_1 = arith.constant 0 : i32
    return %arg0, %c0_i32, %c0_i32_0 : i32, i32, i32
  }
  func.func @transform_2(%arg0: i32) -> (i32, i32, i32) {
    %c0_i32 = arith.constant 0 : i32
    %c0_i32_0 = arith.constant 0 : i32
    %c0_i32_1 = arith.constant 0 : i32
    return %arg0, %c0_i32, %c0_i32_0 : i32, i32, i32
  }
  func.func @transform_3(%arg0: i32) -> (i32, i32, i32) {
    %c0_i32 = arith.constant 0 : i32
    %c0_i32_0 = arith.constant 0 : i32
    %c0_i32_1 = arith.constant 0 : i32
    return %arg0, %c0_i32, %c0_i32_0 : i32, i32, i32
  }
  func.func @transform_4(%arg0: i32) -> (i32, i32, i32) {
    %c0_i32 = arith.constant 0 : i32
    %c0_i32_0 = arith.constant 0 : i32
    %c0_i32_1 = arith.constant 0 : i32
    return %arg0, %c0_i32, %c0_i32_0 : i32, i32, i32
  }
  func.func @transform_5(%arg0: i32) -> (i32, i32, i32) {
    %c0_i32 = arith.constant 0 : i32
    %c0_i32_0 = arith.constant 0 : i32
    %c0_i32_1 = arith.constant 0 : i32
    return %arg0, %c0_i32, %c0_i32_0 : i32, i32, i32
  }
  func.func @transform_6(%arg0: i32) -> (i32, i32, i32) {
    %c0_i32 = arith.constant 0 : i32
    %c0_i32_0 = arith.constant 0 : i32
    %c0_i32_1 = arith.constant 0 : i32
    return %arg0, %c0_i32, %c0_i32_0 : i32, i32, i32
  }
  func.func @transform_7(%arg0: i32) -> (i32, i32, i32) {
    %c0_i32 = arith.constant 0 : i32
    %c0_i32_0 = arith.constant 0 : i32
    %c0_i32_1 = arith.constant 0 : i32
    return %arg0, %c0_i32, %c0_i32_0 : i32, i32, i32
  }
  func.func @transform_8(%arg0: i32) -> (i32, i32, i32, i32) {
    %c0_i32 = arith.constant 0 : i32
    %c0_i32_0 = arith.constant 0 : i32
    %c0_i32_1 = arith.constant 0 : i32
    %c0_i32_2 = arith.constant 0 : i32
    return %arg0, %c0_i32, %c0_i32_0, %c0_i32_1 : i32, i32, i32, i32
  }
  func.func @transform_9(%arg0: i32) -> (i32, i32, i32) {
    %c0_i32 = arith.constant 0 : i32
    %c0_i32_0 = arith.constant 0 : i32
    %c0_i32_1 = arith.constant 0 : i32
    return %arg0, %c0_i32, %c0_i32_0 : i32, i32, i32
  }
}

module attributes {stable_mosaic.version = 11 : i64} {
  func.func @_enc_post_kernel(%arg0: i32, %arg1: memref<1x8x96xf32, #tpu.memory_space<vmem>>, %arg2: memref<1x8x96xf32, #tpu.memory_space<vmem>>, %arg3: memref<1x96x96xf32, #tpu.memory_space<vmem>>, %arg4: memref<1x1x96xf32, #tpu.memory_space<vmem>>, %arg5: memref<1x1x96xf32, #tpu.memory_space<vmem>>, %arg6: memref<1x96x96xf32, #tpu.memory_space<vmem>>, %arg7: memref<1x1x96xf32, #tpu.memory_space<vmem>>, %arg8: memref<1x1x96xf32, #tpu.memory_space<vmem>>, %arg9: memref<1x1x96xf32, #tpu.memory_space<vmem>>, %arg10: memref<1x8x96xf32, #tpu.memory_space<vmem>>) attributes {dimension_semantics = [#tpu.dimension_semantics<parallel>], iteration_bounds = array<i64: 2>, scalar_prefetch = 0 : i64, scratch_operands = 0 : i64, tpu.core_type = #tpu.core_type<tc>, window_params = [{transform_indices = @transform_0, window_bounds = array<i64: 1, 8, 96>}, {transform_indices = @transform_1, window_bounds = array<i64: 1, 8, 96>}, {transform_indices = @transform_2, window_bounds = array<i64: 1, 96, 96>}, {transform_indices = @transform_3, window_bounds = array<i64: 1, 1, 96>}, {transform_indices = @transform_4, window_bounds = array<i64: 1, 1, 96>}, {transform_indices = @transform_5, window_bounds = array<i64: 1, 96, 96>}, {transform_indices = @transform_6, window_bounds = array<i64: 1, 1, 96>}, {transform_indices = @transform_7, window_bounds = array<i64: 1, 1, 96>}, {transform_indices = @transform_8, window_bounds = array<i64: 1, 1, 96>}, {transform_indices = @transform_9, window_bounds = array<i64: 1, 8, 96>}]} {
    %c0 = arith.constant 0 : index
    %c0_0 = arith.constant 0 : index
    %c0_1 = arith.constant 0 : index
    %0 = vector.load %arg1[%c0, %c0_0, %c0_1] : memref<1x8x96xf32, #tpu.memory_space<vmem>>, vector<1x8x96xf32>
    %1 = vector.shape_cast %0 : vector<1x8x96xf32> to vector<8x96xf32>
    %c0_2 = arith.constant 0 : index
    %c0_3 = arith.constant 0 : index
    %c0_4 = arith.constant 0 : index
    %2 = vector.load %arg3[%c0_2, %c0_3, %c0_4] : memref<1x96x96xf32, #tpu.memory_space<vmem>>, vector<1x96x96xf32>
    %3 = vector.shape_cast %2 : vector<1x96x96xf32> to vector<96x96xf32>
    %cst = arith.constant dense<0.000000e+00> : vector<8x96xf32>
    %4 = tpu.matmul %1, %3, %cst {dimension_numbers = #tpu.dot_dimension_numbers<[1], [1], [0], [0], [0, 0, 1, 0], [], []>} : vector<8x96xf32>, vector<96x96xf32>, vector<8x96xf32> -> vector<8x96xf32>
    %c0_5 = arith.constant 0 : index
    %c0_6 = arith.constant 0 : index
    %c0_7 = arith.constant 0 : index
    %5 = vector.load %arg2[%c0_5, %c0_6, %c0_7] : memref<1x8x96xf32, #tpu.memory_space<vmem>>, vector<1x8x96xf32>
    %6 = vector.shape_cast %5 : vector<1x8x96xf32> to vector<8x96xf32>
    %7 = arith.addf %4, %6 : vector<8x96xf32>
    %c0_8 = arith.constant 0 : index
    %c0_9 = arith.constant 0 : index
    %c0_10 = arith.constant 0 : index
    %8 = vector.load %arg4[%c0_8, %c0_9, %c0_10] : memref<1x1x96xf32, #tpu.memory_space<vmem>>, vector<1x1x96xf32>
    %9 = vector.shape_cast %8 : vector<1x1x96xf32> to vector<1x96xf32>
    %c0_11 = arith.constant 0 : index
    %c0_12 = arith.constant 0 : index
    %c0_13 = arith.constant 0 : index
    %10 = vector.load %arg5[%c0_11, %c0_12, %c0_13] : memref<1x1x96xf32, #tpu.memory_space<vmem>>, vector<1x1x96xf32>
    %11 = vector.shape_cast %10 : vector<1x1x96xf32> to vector<1x96xf32>
    %cst_14 = arith.constant dense<0.000000e+00> : vector<8xf32>
    %12 = vector.multi_reduction <add>, %7, %cst_14 [1] : vector<8x96xf32> to vector<8xf32>
    %13 = vector.shape_cast %12 : vector<8xf32> to vector<8x1xf32>
    %cst_15 = arith.constant 9.600000e+01 : f32
    %14 = vector.broadcast %cst_15 : f32 to vector<8x1xf32>
    %15 = arith.divf %13, %14 : vector<8x1xf32>
    %16 = vector.broadcast %15 : vector<8x1xf32> to vector<8x96xf32>
    %17 = arith.subf %7, %16 : vector<8x96xf32>
    %18 = arith.mulf %17, %17 : vector<8x96xf32>
    %cst_16 = arith.constant dense<0.000000e+00> : vector<8xf32>
    %19 = vector.multi_reduction <add>, %18, %cst_16 [1] : vector<8x96xf32> to vector<8xf32>
    %20 = vector.shape_cast %19 : vector<8xf32> to vector<8x1xf32>
    %cst_17 = arith.constant 9.600000e+01 : f32
    %21 = vector.broadcast %cst_17 : f32 to vector<8x1xf32>
    %22 = arith.divf %20, %21 : vector<8x1xf32>
    %cst_18 = arith.constant 9.99999974E-6 : f32
    %23 = vector.broadcast %cst_18 : f32 to vector<8x1xf32>
    %24 = arith.addf %22, %23 : vector<8x1xf32>
    %25 = math.rsqrt %24 : vector<8x1xf32>
    %26 = vector.broadcast %25 : vector<8x1xf32> to vector<8x96xf32>
    %27 = arith.mulf %17, %26 : vector<8x96xf32>
    %28 = vector.broadcast %9 : vector<1x96xf32> to vector<8x96xf32>
    %29 = arith.mulf %27, %28 : vector<8x96xf32>
    %30 = vector.broadcast %11 : vector<1x96xf32> to vector<8x96xf32>
    %31 = arith.addf %29, %30 : vector<8x96xf32>
    %c0_19 = arith.constant 0 : index
    %c0_20 = arith.constant 0 : index
    %c0_21 = arith.constant 0 : index
    %32 = vector.load %arg6[%c0_19, %c0_20, %c0_21] : memref<1x96x96xf32, #tpu.memory_space<vmem>>, vector<1x96x96xf32>
    %33 = vector.shape_cast %32 : vector<1x96x96xf32> to vector<96x96xf32>
    %cst_22 = arith.constant dense<0.000000e+00> : vector<8x96xf32>
    %34 = tpu.matmul %31, %33, %cst_22 {dimension_numbers = #tpu.dot_dimension_numbers<[1], [1], [0], [0], [0, 0, 1, 0], [], []>} : vector<8x96xf32>, vector<96x96xf32>, vector<8x96xf32> -> vector<8x96xf32>
    %c0_23 = arith.constant 0 : index
    %c0_24 = arith.constant 0 : index
    %c0_25 = arith.constant 0 : index
    %35 = vector.load %arg7[%c0_23, %c0_24, %c0_25] : memref<1x1x96xf32, #tpu.memory_space<vmem>>, vector<1x1x96xf32>
    %36 = vector.shape_cast %35 : vector<1x1x96xf32> to vector<1x96xf32>
    %37 = vector.broadcast %36 : vector<1x96xf32> to vector<8x96xf32>
    %38 = arith.addf %34, %37 : vector<8x96xf32>
    %39 = arith.addf %38, %31 : vector<8x96xf32>
    %c0_26 = arith.constant 0 : index
    %c0_27 = arith.constant 0 : index
    %c0_28 = arith.constant 0 : index
    %40 = vector.load %arg8[%c0_26, %c0_27, %c0_28] : memref<1x1x96xf32, #tpu.memory_space<vmem>>, vector<1x1x96xf32>
    %41 = vector.shape_cast %40 : vector<1x1x96xf32> to vector<1x96xf32>
    %c0_29 = arith.constant 0 : index
    %c0_30 = arith.constant 0 : index
    %c0_31 = arith.constant 0 : index
    %42 = vector.load %arg9[%c0_29, %c0_30, %c0_31] : memref<1x1x96xf32, #tpu.memory_space<vmem>>, vector<1x1x96xf32>
    %43 = vector.shape_cast %42 : vector<1x1x96xf32> to vector<1x96xf32>
    %cst_32 = arith.constant dense<0.000000e+00> : vector<8xf32>
    %44 = vector.multi_reduction <add>, %39, %cst_32 [1] : vector<8x96xf32> to vector<8xf32>
    %45 = vector.shape_cast %44 : vector<8xf32> to vector<8x1xf32>
    %cst_33 = arith.constant 9.600000e+01 : f32
    %46 = vector.broadcast %cst_33 : f32 to vector<8x1xf32>
    %47 = arith.divf %45, %46 : vector<8x1xf32>
    %48 = vector.broadcast %47 : vector<8x1xf32> to vector<8x96xf32>
    %49 = arith.subf %39, %48 : vector<8x96xf32>
    %50 = arith.mulf %49, %49 : vector<8x96xf32>
    %cst_34 = arith.constant dense<0.000000e+00> : vector<8xf32>
    %51 = vector.multi_reduction <add>, %50, %cst_34 [1] : vector<8x96xf32> to vector<8xf32>
    %52 = vector.shape_cast %51 : vector<8xf32> to vector<8x1xf32>
    %cst_35 = arith.constant 9.600000e+01 : f32
    %53 = vector.broadcast %cst_35 : f32 to vector<8x1xf32>
    %54 = arith.divf %52, %53 : vector<8x1xf32>
    %cst_36 = arith.constant 9.99999974E-6 : f32
    %55 = vector.broadcast %cst_36 : f32 to vector<8x1xf32>
    %56 = arith.addf %54, %55 : vector<8x1xf32>
    %57 = math.rsqrt %56 : vector<8x1xf32>
    %58 = vector.broadcast %57 : vector<8x1xf32> to vector<8x96xf32>
    %59 = arith.mulf %49, %58 : vector<8x96xf32>
    %60 = vector.broadcast %41 : vector<1x96xf32> to vector<8x96xf32>
    %61 = arith.mulf %59, %60 : vector<8x96xf32>
    %62 = vector.broadcast %43 : vector<1x96xf32> to vector<8x96xf32>
    %63 = arith.addf %61, %62 : vector<8x96xf32>
    %c0_37 = arith.constant 0 : index
    %c0_38 = arith.constant 0 : index
    %c0_39 = arith.constant 0 : index
    %64 = vector.load %arg10[%c0_37, %c0_38, %c0_39] : memref<1x8x96xf32, #tpu.memory_space<vmem>>, vector<1x8x96xf32>
    %65 = vector.shape_cast %64 : vector<1x8x96xf32> to vector<8x96xf32>
    %66 = vector.shape_cast %63 : vector<8x96xf32> to vector<1x8x96xf32>
    tpu.vector_store %arg10[%c0_37, %c0_38, %c0_39], %66 {strides = array<i32>} : memref<1x8x96xf32, #tpu.memory_space<vmem>>, vector<1x8x96xf32>,
    return
  }
  func.func @transform_0(%arg0: i32) -> (i32, i32, i32) {
    %c0_i32 = arith.constant 0 : i32
    %c0_i32_0 = arith.constant 0 : i32
    %c0_i32_1 = arith.constant 0 : i32
    return %arg0, %c0_i32, %c0_i32_0 : i32, i32, i32
  }
  func.func @transform_1(%arg0: i32) -> (i32, i32, i32) {
    %c0_i32 = arith.constant 0 : i32
    %c0_i32_0 = arith.constant 0 : i32
    %c0_i32_1 = arith.constant 0 : i32
    return %arg0, %c0_i32, %c0_i32_0 : i32, i32, i32
  }
  func.func @transform_2(%arg0: i32) -> (i32, i32, i32) {
    %c0_i32 = arith.constant 0 : i32
    %c0_i32_0 = arith.constant 0 : i32
    %c0_i32_1 = arith.constant 0 : i32
    return %arg0, %c0_i32, %c0_i32_0 : i32, i32, i32
  }
  func.func @transform_3(%arg0: i32) -> (i32, i32, i32) {
    %c0_i32 = arith.constant 0 : i32
    %c0_i32_0 = arith.constant 0 : i32
    %c0_i32_1 = arith.constant 0 : i32
    return %arg0, %c0_i32, %c0_i32_0 : i32, i32, i32
  }
  func.func @transform_4(%arg0: i32) -> (i32, i32, i32) {
    %c0_i32 = arith.constant 0 : i32
    %c0_i32_0 = arith.constant 0 : i32
    %c0_i32_1 = arith.constant 0 : i32
    return %arg0, %c0_i32, %c0_i32_0 : i32, i32, i32
  }
  func.func @transform_5(%arg0: i32) -> (i32, i32, i32) {
    %c0_i32 = arith.constant 0 : i32
    %c0_i32_0 = arith.constant 0 : i32
    %c0_i32_1 = arith.constant 0 : i32
    return %arg0, %c0_i32, %c0_i32_0 : i32, i32, i32
  }
  func.func @transform_6(%arg0: i32) -> (i32, i32, i32) {
    %c0_i32 = arith.constant 0 : i32
    %c0_i32_0 = arith.constant 0 : i32
    %c0_i32_1 = arith.constant 0 : i32
    return %arg0, %c0_i32, %c0_i32_0 : i32, i32, i32
  }
  func.func @transform_7(%arg0: i32) -> (i32, i32, i32) {
    %c0_i32 = arith.constant 0 : i32
    %c0_i32_0 = arith.constant 0 : i32
    %c0_i32_1 = arith.constant 0 : i32
    return %arg0, %c0_i32, %c0_i32_0 : i32, i32, i32
  }
  func.func @transform_8(%arg0: i32) -> (i32, i32, i32) {
    %c0_i32 = arith.constant 0 : i32
    %c0_i32_0 = arith.constant 0 : i32
    %c0_i32_1 = arith.constant 0 : i32
    return %arg0, %c0_i32, %c0_i32_0 : i32, i32, i32
  }
  func.func @transform_9(%arg0: i32) -> (i32, i32, i32) {
    %c0_i32 = arith.constant 0 : i32
    %c0_i32_0 = arith.constant 0 : i32
    %c0_i32_1 = arith.constant 0 : i32
    return %arg0, %c0_i32, %c0_i32_0 : i32, i32, i32
  }
}

module attributes {stable_mosaic.version = 11 : i64} {
  func.func @_cross_attn_kernel(%arg0: memref<8x96xf32, #tpu.memory_space<vmem>>, %arg1: memref<48x96xf32, #tpu.memory_space<vmem>>, %arg2: memref<1x48xf32, #tpu.memory_space<vmem>>, %arg3: memref<1x48xf32, #tpu.memory_space<vmem>>, %arg4: memref<1x48xf32, #tpu.memory_space<vmem>>, %arg5: memref<1x48xf32, #tpu.memory_space<vmem>>, %arg6: memref<1x48xf32, #tpu.memory_space<vmem>>, %arg7: memref<8x96xf32, #tpu.memory_space<vmem>>, %arg8: memref<48x96xf32, #tpu.memory_space<vmem>>, %arg9: memref<1x48xf32, #tpu.memory_space<vmem>>, %arg10: memref<1x48xf32, #tpu.memory_space<vmem>>, %arg11: memref<1x48xf32, #tpu.memory_space<vmem>>, %arg12: memref<1x48xf32, #tpu.memory_space<vmem>>, %arg13: memref<1x48xf32, #tpu.memory_space<vmem>>, %arg14: memref<144x48xf32, #tpu.memory_space<vmem>>, %arg15: memref<144x48xf32, #tpu.memory_space<vmem>>, %arg16: memref<3x8x16xf32, #tpu.memory_space<vmem>>, %arg17: memref<3x8x16xf32, #tpu.memory_space<vmem>>, %arg18: memref<8x48xf32, #tpu.memory_space<vmem>>, %arg19: memref<8x48xf32, #tpu.memory_space<vmem>>, %arg20: memref<8x144xf32, #tpu.memory_space<vmem>>, %arg21: memref<8x144xf32, #tpu.memory_space<vmem>>) attributes {dimension_semantics = [], scalar_prefetch = 0 : i64, scratch_operands = 2 : i64, tpu.core_type = #tpu.core_type<tc>} {
    %c0 = arith.constant 0 : index
    %c0_0 = arith.constant 0 : index
    %0 = vector.load %arg0[%c0, %c0_0] : memref<8x96xf32, #tpu.memory_space<vmem>>, vector<8x96xf32>
    %c0_1 = arith.constant 0 : index
    %c0_2 = arith.constant 0 : index
    %1 = vector.load %arg1[%c0_1, %c0_2] : memref<48x96xf32, #tpu.memory_space<vmem>>, vector<48x96xf32>
    %cst = arith.constant dense<0.000000e+00> : vector<8x48xf32>
    %2 = tpu.matmul %0, %1, %cst {dimension_numbers = #tpu.dot_dimension_numbers<[1], [1], [0], [0], [0, 0, 1, 0], [], []>} : vector<8x96xf32>, vector<48x96xf32>, vector<8x48xf32> -> vector<8x48xf32>
    %c0_3 = arith.constant 0 : index
    %c0_4 = arith.constant 0 : index
    %3 = vector.load %arg2[%c0_3, %c0_4] : memref<1x48xf32, #tpu.memory_space<vmem>>, vector<1x48xf32>
    %4 = vector.broadcast %3 : vector<1x48xf32> to vector<8x48xf32>
    %5 = arith.addf %2, %4 : vector<8x48xf32>
    %cst_5 = arith.constant 5.000000e-01 : f32
    %6 = vector.broadcast %cst_5 : f32 to vector<8x48xf32>
    %7 = arith.mulf %5, %6 : vector<8x48xf32>
    %cst_6 = arith.constant 0.707106769 : f32
    %8 = vector.broadcast %cst_6 : f32 to vector<8x48xf32>
    %9 = arith.mulf %5, %8 : vector<8x48xf32>
    %10 = math.absf %9 : vector<8x48xf32>
    %cst_7 = arith.constant 0.327591091 : f32
    %11 = vector.broadcast %cst_7 : f32 to vector<8x48xf32>
    %12 = arith.mulf %11, %10 : vector<8x48xf32>
    %cst_8 = arith.constant 1.000000e+00 : f32
    %13 = vector.broadcast %cst_8 : f32 to vector<8x48xf32>
    %14 = arith.addf %13, %12 : vector<8x48xf32>
    %cst_9 = arith.constant 1.000000e+00 : f32
    %15 = vector.broadcast %cst_9 : f32 to vector<8x48xf32>
    %16 = arith.divf %15, %14 : vector<8x48xf32>
    %cst_10 = arith.constant 1.06140542 : f32
    %17 = vector.broadcast %cst_10 : f32 to vector<8x48xf32>
    %18 = arith.mulf %17, %16 : vector<8x48xf32>
    %cst_11 = arith.constant -1.45315206 : f32
    %19 = vector.broadcast %cst_11 : f32 to vector<8x48xf32>
    %20 = arith.addf %18, %19 : vector<8x48xf32>
    %21 = arith.mulf %20, %16 : vector<8x48xf32>
    %cst_12 = arith.constant 1.42141378 : f32
    %22 = vector.broadcast %cst_12 : f32 to vector<8x48xf32>
    %23 = arith.addf %21, %22 : vector<8x48xf32>
    %24 = arith.mulf %23, %16 : vector<8x48xf32>
    %cst_13 = arith.constant -0.284496725 : f32
    %25 = vector.broadcast %cst_13 : f32 to vector<8x48xf32>
    %26 = arith.addf %24, %25 : vector<8x48xf32>
    %27 = arith.mulf %26, %16 : vector<8x48xf32>
    %cst_14 = arith.constant 0.254829586 : f32
    %28 = vector.broadcast %cst_14 : f32 to vector<8x48xf32>
    %29 = arith.addf %27, %28 : vector<8x48xf32>
    %30 = arith.mulf %29, %16 : vector<8x48xf32>
    %cst_15 = arith.constant 0.000000e+00 : f32
    %31 = vector.broadcast %cst_15 : f32 to vector<8x48xf32>
    %32 = arith.subf %31, %10 : vector<8x48xf32>
    %33 = arith.mulf %32, %10 : vector<8x48xf32>
    %34 = math.exp %33 : vector<8x48xf32>
    %35 = arith.mulf %30, %34 : vector<8x48xf32>
    %cst_16 = arith.constant 1.000000e+00 : f32
    %36 = vector.broadcast %cst_16 : f32 to vector<8x48xf32>
    %37 = arith.subf %36, %35 : vector<8x48xf32>
    %cst_17 = arith.constant 0.000000e+00 : f32
    %38 = vector.broadcast %cst_17 : f32 to vector<8x48xf32>
    %39 = arith.cmpf oge, %9, %38 : vector<8x48xf32>
    %cst_18 = arith.constant 0.000000e+00 : f32
    %40 = vector.broadcast %cst_18 : f32 to vector<8x48xf32>
    %41 = arith.subf %40, %37 : vector<8x48xf32>
    %42 = arith.select %39, %37, %41 : vector<8x48xi1>, vector<8x48xf32>
    %cst_19 = arith.constant 1.000000e+00 : f32
    %43 = vector.broadcast %cst_19 : f32 to vector<8x48xf32>
    %44 = arith.addf %43, %42 : vector<8x48xf32>
    %45 = arith.mulf %7, %44 : vector<8x48xf32>
    %c0_20 = arith.constant 0 : index
    %c0_21 = arith.constant 0 : index
    %46 = vector.load %arg3[%c0_20, %c0_21] : memref<1x48xf32, #tpu.memory_space<vmem>>, vector<1x48xf32>
    %c0_22 = arith.constant 0 : index
    %c0_23 = arith.constant 0 : index
    %47 = vector.load %arg4[%c0_22, %c0_23] : memref<1x48xf32, #tpu.memory_space<vmem>>, vector<1x48xf32>
    %c0_24 = arith.constant 0 : index
    %c0_25 = arith.constant 0 : index
    %48 = vector.load %arg5[%c0_24, %c0_25] : memref<1x48xf32, #tpu.memory_space<vmem>>, vector<1x48xf32>
    %c0_26 = arith.constant 0 : index
    %c0_27 = arith.constant 0 : index
    %49 = vector.load %arg6[%c0_26, %c0_27] : memref<1x48xf32, #tpu.memory_space<vmem>>, vector<1x48xf32>
    %50 = vector.broadcast %48 : vector<1x48xf32> to vector<8x48xf32>
    %51 = arith.subf %45, %50 : vector<8x48xf32>
    %cst_28 = arith.constant 9.99999974E-6 : f32
    %52 = vector.broadcast %cst_28 : f32 to vector<1x48xf32>
    %53 = arith.addf %49, %52 : vector<1x48xf32>
    %54 = math.rsqrt %53 : vector<1x48xf32>
    %55 = vector.broadcast %54 : vector<1x48xf32> to vector<8x48xf32>
    %56 = arith.mulf %51, %55 : vector<8x48xf32>
    %57 = vector.broadcast %46 : vector<1x48xf32> to vector<8x48xf32>
    %58 = arith.mulf %56, %57 : vector<8x48xf32>
    %59 = vector.broadcast %47 : vector<1x48xf32> to vector<8x48xf32>
    %60 = arith.addf %58, %59 : vector<8x48xf32>
    %c0_29 = arith.constant 0 : index
    %c0_30 = arith.constant 0 : index
    %61 = vector.load %arg7[%c0_29, %c0_30] : memref<8x96xf32, #tpu.memory_space<vmem>>, vector<8x96xf32>
    %c0_31 = arith.constant 0 : index
    %c0_32 = arith.constant 0 : index
    %62 = vector.load %arg8[%c0_31, %c0_32] : memref<48x96xf32, #tpu.memory_space<vmem>>, vector<48x96xf32>
    %cst_33 = arith.constant dense<0.000000e+00> : vector<8x48xf32>
    %63 = tpu.matmul %61, %62, %cst_33 {dimension_numbers = #tpu.dot_dimension_numbers<[1], [1], [0], [0], [0, 0, 1, 0], [], []>} : vector<8x96xf32>, vector<48x96xf32>, vector<8x48xf32> -> vector<8x48xf32>
    %c0_34 = arith.constant 0 : index
    %c0_35 = arith.constant 0 : index
    %64 = vector.load %arg9[%c0_34, %c0_35] : memref<1x48xf32, #tpu.memory_space<vmem>>, vector<1x48xf32>
    %65 = vector.broadcast %64 : vector<1x48xf32> to vector<8x48xf32>
    %66 = arith.addf %63, %65 : vector<8x48xf32>
    %cst_36 = arith.constant 5.000000e-01 : f32
    %67 = vector.broadcast %cst_36 : f32 to vector<8x48xf32>
    %68 = arith.mulf %66, %67 : vector<8x48xf32>
    %cst_37 = arith.constant 0.707106769 : f32
    %69 = vector.broadcast %cst_37 : f32 to vector<8x48xf32>
    %70 = arith.mulf %66, %69 : vector<8x48xf32>
    %71 = math.absf %70 : vector<8x48xf32>
    %cst_38 = arith.constant 0.327591091 : f32
    %72 = vector.broadcast %cst_38 : f32 to vector<8x48xf32>
    %73 = arith.mulf %72, %71 : vector<8x48xf32>
    %cst_39 = arith.constant 1.000000e+00 : f32
    %74 = vector.broadcast %cst_39 : f32 to vector<8x48xf32>
    %75 = arith.addf %74, %73 : vector<8x48xf32>
    %cst_40 = arith.constant 1.000000e+00 : f32
    %76 = vector.broadcast %cst_40 : f32 to vector<8x48xf32>
    %77 = arith.divf %76, %75 : vector<8x48xf32>
    %cst_41 = arith.constant 1.06140542 : f32
    %78 = vector.broadcast %cst_41 : f32 to vector<8x48xf32>
    %79 = arith.mulf %78, %77 : vector<8x48xf32>
    %cst_42 = arith.constant -1.45315206 : f32
    %80 = vector.broadcast %cst_42 : f32 to vector<8x48xf32>
    %81 = arith.addf %79, %80 : vector<8x48xf32>
    %82 = arith.mulf %81, %77 : vector<8x48xf32>
    %cst_43 = arith.constant 1.42141378 : f32
    %83 = vector.broadcast %cst_43 : f32 to vector<8x48xf32>
    %84 = arith.addf %82, %83 : vector<8x48xf32>
    %85 = arith.mulf %84, %77 : vector<8x48xf32>
    %cst_44 = arith.constant -0.284496725 : f32
    %86 = vector.broadcast %cst_44 : f32 to vector<8x48xf32>
    %87 = arith.addf %85, %86 : vector<8x48xf32>
    %88 = arith.mulf %87, %77 : vector<8x48xf32>
    %cst_45 = arith.constant 0.254829586 : f32
    %89 = vector.broadcast %cst_45 : f32 to vector<8x48xf32>
    %90 = arith.addf %88, %89 : vector<8x48xf32>
    %91 = arith.mulf %90, %77 : vector<8x48xf32>
    %cst_46 = arith.constant 0.000000e+00 : f32
    %92 = vector.broadcast %cst_46 : f32 to vector<8x48xf32>
    %93 = arith.subf %92, %71 : vector<8x48xf32>
    %94 = arith.mulf %93, %71 : vector<8x48xf32>
    %95 = math.exp %94 : vector<8x48xf32>
    %96 = arith.mulf %91, %95 : vector<8x48xf32>
    %cst_47 = arith.constant 1.000000e+00 : f32
    %97 = vector.broadcast %cst_47 : f32 to vector<8x48xf32>
    %98 = arith.subf %97, %96 : vector<8x48xf32>
    %cst_48 = arith.constant 0.000000e+00 : f32
    %99 = vector.broadcast %cst_48 : f32 to vector<8x48xf32>
    %100 = arith.cmpf oge, %70, %99 : vector<8x48xf32>
    %cst_49 = arith.constant 0.000000e+00 : f32
    %101 = vector.broadcast %cst_49 : f32 to vector<8x48xf32>
    %102 = arith.subf %101, %98 : vector<8x48xf32>
    %103 = arith.select %100, %98, %102 : vector<8x48xi1>, vector<8x48xf32>
    %cst_50 = arith.constant 1.000000e+00 : f32
    %104 = vector.broadcast %cst_50 : f32 to vector<8x48xf32>
    %105 = arith.addf %104, %103 : vector<8x48xf32>
    %106 = arith.mulf %68, %105 : vector<8x48xf32>
    %c0_51 = arith.constant 0 : index
    %c0_52 = arith.constant 0 : index
    %107 = vector.load %arg10[%c0_51, %c0_52] : memref<1x48xf32, #tpu.memory_space<vmem>>, vector<1x48xf32>
    %c0_53 = arith.constant 0 : index
    %c0_54 = arith.constant 0 : index
    %108 = vector.load %arg11[%c0_53, %c0_54] : memref<1x48xf32, #tpu.memory_space<vmem>>, vector<1x48xf32>
    %c0_55 = arith.constant 0 : index
    %c0_56 = arith.constant 0 : index
    %109 = vector.load %arg12[%c0_55, %c0_56] : memref<1x48xf32, #tpu.memory_space<vmem>>, vector<1x48xf32>
    %c0_57 = arith.constant 0 : index
    %c0_58 = arith.constant 0 : index
    %110 = vector.load %arg13[%c0_57, %c0_58] : memref<1x48xf32, #tpu.memory_space<vmem>>, vector<1x48xf32>
    %111 = vector.broadcast %109 : vector<1x48xf32> to vector<8x48xf32>
    %112 = arith.subf %106, %111 : vector<8x48xf32>
    %cst_59 = arith.constant 9.99999974E-6 : f32
    %113 = vector.broadcast %cst_59 : f32 to vector<1x48xf32>
    %114 = arith.addf %110, %113 : vector<1x48xf32>
    %115 = math.rsqrt %114 : vector<1x48xf32>
    %116 = vector.broadcast %115 : vector<1x48xf32> to vector<8x48xf32>
    %117 = arith.mulf %112, %116 : vector<8x48xf32>
    %118 = vector.broadcast %107 : vector<1x48xf32> to vector<8x48xf32>
    %119 = arith.mulf %117, %118 : vector<8x48xf32>
    %120 = vector.broadcast %108 : vector<1x48xf32> to vector<8x48xf32>
    %121 = arith.addf %119, %120 : vector<8x48xf32>
    %c0_60 = arith.constant 0 : index
    %c0_61 = arith.constant 0 : index
    %122 = vector.load %arg18[%c0_60, %c0_61] : memref<8x48xf32, #tpu.memory_space<vmem>>, vector<8x48xf32>
    tpu.vector_store %arg18[%c0_60, %c0_61], %60 {strides = array<i32>} : memref<8x48xf32, #tpu.memory_space<vmem>>, vector<8x48xf32>,
    %c0_62 = arith.constant 0 : index
    %c0_63 = arith.constant 0 : index
    %123 = vector.load %arg19[%c0_62, %c0_63] : memref<8x48xf32, #tpu.memory_space<vmem>>, vector<8x48xf32>
    tpu.vector_store %arg19[%c0_62, %c0_63], %121 {strides = array<i32>} : memref<8x48xf32, #tpu.memory_space<vmem>>, vector<8x48xf32>,
    %c0_64 = arith.constant 0 : index
    %c0_65 = arith.constant 0 : index
    %124 = vector.load %arg14[%c0_64, %c0_65] : memref<144x48xf32, #tpu.memory_space<vmem>>, vector<144x48xf32>
    %cst_66 = arith.constant dense<0.000000e+00> : vector<8x144xf32>
    %125 = tpu.matmul %60, %124, %cst_66 {dimension_numbers = #tpu.dot_dimension_numbers<[1], [1], [0], [0], [0, 0, 1, 0], [], []>} : vector<8x48xf32>, vector<144x48xf32>, vector<8x144xf32> -> vector<8x144xf32>
    %c0_67 = arith.constant 0 : index
    %c0_68 = arith.constant 0 : index
    %126 = vector.load %arg20[%c0_67, %c0_68] : memref<8x144xf32, #tpu.memory_space<vmem>>, vector<8x144xf32>
    tpu.vector_store %arg20[%c0_67, %c0_68], %125 {strides = array<i32>} : memref<8x144xf32, #tpu.memory_space<vmem>>, vector<8x144xf32>,
    %c0_69 = arith.constant 0 : index
    %c0_70 = arith.constant 0 : index
    %127 = vector.load %arg15[%c0_69, %c0_70] : memref<144x48xf32, #tpu.memory_space<vmem>>, vector<144x48xf32>
    %cst_71 = arith.constant dense<0.000000e+00> : vector<8x144xf32>
    %128 = tpu.matmul %121, %127, %cst_71 {dimension_numbers = #tpu.dot_dimension_numbers<[1], [1], [0], [0], [0, 0, 1, 0], [], []>} : vector<8x48xf32>, vector<144x48xf32>, vector<8x144xf32> -> vector<8x144xf32>
    %c0_72 = arith.constant 0 : index
    %c0_73 = arith.constant 0 : index
    %129 = vector.load %arg21[%c0_72, %c0_73] : memref<8x144xf32, #tpu.memory_space<vmem>>, vector<8x144xf32>
    tpu.vector_store %arg21[%c0_72, %c0_73], %128 {strides = array<i32>} : memref<8x144xf32, #tpu.memory_space<vmem>>, vector<8x144xf32>,
    %c0_74 = arith.constant 0 : index
    %c0_75 = arith.constant 0 : index
    %130 = vector.load %arg20[%c0_74, %c0_75] : memref<8x144xf32, #tpu.memory_space<vmem>>, vector<8x16xf32>
    %c0_76 = arith.constant 0 : index
    %c48 = arith.constant 48 : index
    %131 = vector.load %arg20[%c0_76, %c48] : memref<8x144xf32, #tpu.memory_space<vmem>>, vector<8x16xf32>
    %c0_77 = arith.constant 0 : index
    %c96 = arith.constant 96 : index
    %132 = vector.load %arg20[%c0_77, %c96] : memref<8x144xf32, #tpu.memory_space<vmem>>, vector<8x16xf32>
    %c0_78 = arith.constant 0 : index
    %c0_79 = arith.constant 0 : index
    %133 = vector.load %arg21[%c0_78, %c0_79] : memref<8x144xf32, #tpu.memory_space<vmem>>, vector<8x16xf32>
    %c0_80 = arith.constant 0 : index
    %c48_81 = arith.constant 48 : index
    %134 = vector.load %arg21[%c0_80, %c48_81] : memref<8x144xf32, #tpu.memory_space<vmem>>, vector<8x16xf32>
    %c0_82 = arith.constant 0 : index
    %c96_83 = arith.constant 96 : index
    %135 = vector.load %arg21[%c0_82, %c96_83] : memref<8x144xf32, #tpu.memory_space<vmem>>, vector<8x16xf32>
    %cst_84 = arith.constant dense<0.000000e+00> : vector<8x8xf32>
    %136 = tpu.matmul %133, %131, %cst_84 {dimension_numbers = #tpu.dot_dimension_numbers<[1], [1], [0], [0], [0, 0, 1, 0], [], []>} : vector<8x16xf32>, vector<8x16xf32>, vector<8x8xf32> -> vector<8x8xf32>
    %cst_85 = arith.constant 2.500000e-01 : f32
    %137 = vector.broadcast %cst_85 : f32 to vector<8x8xf32>
    %138 = arith.mulf %136, %137 : vector<8x8xf32>
    %cst_86 = arith.constant dense<0xFF800000> : vector<8xf32>
    %139 = vector.multi_reduction <maximumf>, %138, %cst_86 [1] : vector<8x8xf32> to vector<8xf32>
    %140 = vector.shape_cast %139 : vector<8xf32> to vector<8x1xf32>
    %141 = vector.broadcast %140 : vector<8x1xf32> to vector<8x8xf32>
    %142 = arith.subf %138, %141 : vector<8x8xf32>
    %143 = math.exp %142 : vector<8x8xf32>
    %cst_87 = arith.constant dense<0.000000e+00> : vector<8xf32>
    %144 = vector.multi_reduction <add>, %143, %cst_87 [1] : vector<8x8xf32> to vector<8xf32>
    %145 = vector.shape_cast %144 : vector<8xf32> to vector<8x1xf32>
    %146 = tpu.reciprocal %145 {approx = true} : vector<8x1xf32> -> vector<8x1xf32>
    %147 = vector.broadcast %146 : vector<8x1xf32> to vector<8x8xf32>
    %148 = arith.mulf %143, %147 : vector<8x8xf32>
    %cst_88 = arith.constant dense<0.000000e+00> : vector<8x16xf32>
    %149 = tpu.matmul %148, %132, %cst_88 {dimension_numbers = #tpu.dot_dimension_numbers<[1], [0], [0], [1], [0, 0, 1, 1], [], []>} : vector<8x8xf32>, vector<8x16xf32>, vector<8x16xf32> -> vector<8x16xf32>
    %c0_89 = arith.constant 0 : index
    %c0_90 = arith.constant 0 : index
    %c0_91 = arith.constant 0 : index
    %150 = vector.load %arg16[%c0_89, %c0_90, %c0_91] : memref<3x8x16xf32, #tpu.memory_space<vmem>>, vector<1x8x16xf32>
    %151 = vector.shape_cast %150 : vector<1x8x16xf32> to vector<8x16xf32>
    %152 = vector.shape_cast %149 : vector<8x16xf32> to vector<1x8x16xf32>
    tpu.vector_store %arg16[%c0_89, %c0_90, %c0_91], %152 {strides = array<i32>} : memref<3x8x16xf32, #tpu.memory_space<vmem>>, vector<1x8x16xf32>,
    %cst_92 = arith.constant dense<0.000000e+00> : vector<8x8xf32>
    %153 = tpu.matmul %130, %134, %cst_92 {dimension_numbers = #tpu.dot_dimension_numbers<[1], [1], [0], [0], [0, 0, 1, 0], [], []>} : vector<8x16xf32>, vector<8x16xf32>, vector<8x8xf32> -> vector<8x8xf32>
    %cst_93 = arith.constant 2.500000e-01 : f32
    %154 = vector.broadcast %cst_93 : f32 to vector<8x8xf32>
    %155 = arith.mulf %153, %154 : vector<8x8xf32>
    %cst_94 = arith.constant dense<0xFF800000> : vector<8xf32>
    %156 = vector.multi_reduction <maximumf>, %155, %cst_94 [1] : vector<8x8xf32> to vector<8xf32>
    %157 = vector.shape_cast %156 : vector<8xf32> to vector<8x1xf32>
    %158 = vector.broadcast %157 : vector<8x1xf32> to vector<8x8xf32>
    %159 = arith.subf %155, %158 : vector<8x8xf32>
    %160 = math.exp %159 : vector<8x8xf32>
    %cst_95 = arith.constant dense<0.000000e+00> : vector<8xf32>
    %161 = vector.multi_reduction <add>, %160, %cst_95 [1] : vector<8x8xf32> to vector<8xf32>
    %162 = vector.shape_cast %161 : vector<8xf32> to vector<8x1xf32>
    %163 = tpu.reciprocal %162 {approx = true} : vector<8x1xf32> -> vector<8x1xf32>
    %164 = vector.broadcast %163 : vector<8x1xf32> to vector<8x8xf32>
    %165 = arith.mulf %160, %164 : vector<8x8xf32>
    %cst_96 = arith.constant dense<0.000000e+00> : vector<8x16xf32>
    %166 = tpu.matmul %165, %135, %cst_96 {dimension_numbers = #tpu.dot_dimension_numbers<[1], [0], [0], [1], [0, 0, 1, 1], [], []>} : vector<8x8xf32>, vector<8x16xf32>, vector<8x16xf32> -> vector<8x16xf32>
    %c0_97 = arith.constant 0 : index
    %c0_98 = arith.constant 0 : index
    %c0_99 = arith.constant 0 : index
    %167 = vector.load %arg17[%c0_97, %c0_98, %c0_99] : memref<3x8x16xf32, #tpu.memory_space<vmem>>, vector<1x8x16xf32>
    %168 = vector.shape_cast %167 : vector<1x8x16xf32> to vector<8x16xf32>
    %169 = vector.shape_cast %166 : vector<8x16xf32> to vector<1x8x16xf32>
    tpu.vector_store %arg17[%c0_97, %c0_98, %c0_99], %169 {strides = array<i32>} : memref<3x8x16xf32, #tpu.memory_space<vmem>>, vector<1x8x16xf32>,
    %c0_100 = arith.constant 0 : index
    %c16 = arith.constant 16 : index
    %170 = vector.load %arg20[%c0_100, %c16] : memref<8x144xf32, #tpu.memory_space<vmem>>, vector<8x16xf32>
    %c0_101 = arith.constant 0 : index
    %c64 = arith.constant 64 : index
    %171 = vector.load %arg20[%c0_101, %c64] : memref<8x144xf32, #tpu.memory_space<vmem>>, vector<8x16xf32>
    %c0_102 = arith.constant 0 : index
    %c112 = arith.constant 112 : index
    %172 = vector.load %arg20[%c0_102, %c112] : memref<8x144xf32, #tpu.memory_space<vmem>>, vector<8x16xf32>
    %c0_103 = arith.constant 0 : index
    %c16_104 = arith.constant 16 : index
    %173 = vector.load %arg21[%c0_103, %c16_104] : memref<8x144xf32, #tpu.memory_space<vmem>>, vector<8x16xf32>
    %c0_105 = arith.constant 0 : index
    %c64_106 = arith.constant 64 : index
    %174 = vector.load %arg21[%c0_105, %c64_106] : memref<8x144xf32, #tpu.memory_space<vmem>>, vector<8x16xf32>
    %c0_107 = arith.constant 0 : index
    %c112_108 = arith.constant 112 : index
    %175 = vector.load %arg21[%c0_107, %c112_108] : memref<8x144xf32, #tpu.memory_space<vmem>>, vector<8x16xf32>
    %cst_109 = arith.constant dense<0.000000e+00> : vector<8x8xf32>
    %176 = tpu.matmul %173, %171, %cst_109 {dimension_numbers = #tpu.dot_dimension_numbers<[1], [1], [0], [0], [0, 0, 1, 0], [], []>} : vector<8x16xf32>, vector<8x16xf32>, vector<8x8xf32> -> vector<8x8xf32>
    %cst_110 = arith.constant 2.500000e-01 : f32
    %177 = vector.broadcast %cst_110 : f32 to vector<8x8xf32>
    %178 = arith.mulf %176, %177 : vector<8x8xf32>
    %cst_111 = arith.constant dense<0xFF800000> : vector<8xf32>
    %179 = vector.multi_reduction <maximumf>, %178, %cst_111 [1] : vector<8x8xf32> to vector<8xf32>
    %180 = vector.shape_cast %179 : vector<8xf32> to vector<8x1xf32>
    %181 = vector.broadcast %180 : vector<8x1xf32> to vector<8x8xf32>
    %182 = arith.subf %178, %181 : vector<8x8xf32>
    %183 = math.exp %182 : vector<8x8xf32>
    %cst_112 = arith.constant dense<0.000000e+00> : vector<8xf32>
    %184 = vector.multi_reduction <add>, %183, %cst_112 [1] : vector<8x8xf32> to vector<8xf32>
    %185 = vector.shape_cast %184 : vector<8xf32> to vector<8x1xf32>
    %186 = tpu.reciprocal %185 {approx = true} : vector<8x1xf32> -> vector<8x1xf32>
    %187 = vector.broadcast %186 : vector<8x1xf32> to vector<8x8xf32>
    %188 = arith.mulf %183, %187 : vector<8x8xf32>
    %cst_113 = arith.constant dense<0.000000e+00> : vector<8x16xf32>
    %189 = tpu.matmul %188, %172, %cst_113 {dimension_numbers = #tpu.dot_dimension_numbers<[1], [0], [0], [1], [0, 0, 1, 1], [], []>} : vector<8x8xf32>, vector<8x16xf32>, vector<8x16xf32> -> vector<8x16xf32>
    %c1 = arith.constant 1 : index
    %c0_114 = arith.constant 0 : index
    %c0_115 = arith.constant 0 : index
    %190 = vector.load %arg16[%c1, %c0_114, %c0_115] : memref<3x8x16xf32, #tpu.memory_space<vmem>>, vector<1x8x16xf32>
    %191 = vector.shape_cast %190 : vector<1x8x16xf32> to vector<8x16xf32>
    %192 = vector.shape_cast %189 : vector<8x16xf32> to vector<1x8x16xf32>
    tpu.vector_store %arg16[%c1, %c0_114, %c0_115], %192 {strides = array<i32>} : memref<3x8x16xf32, #tpu.memory_space<vmem>>, vector<1x8x16xf32>,
    %cst_116 = arith.constant dense<0.000000e+00> : vector<8x8xf32>
    %193 = tpu.matmul %170, %174, %cst_116 {dimension_numbers = #tpu.dot_dimension_numbers<[1], [1], [0], [0], [0, 0, 1, 0], [], []>} : vector<8x16xf32>, vector<8x16xf32>, vector<8x8xf32> -> vector<8x8xf32>
    %cst_117 = arith.constant 2.500000e-01 : f32
    %194 = vector.broadcast %cst_117 : f32 to vector<8x8xf32>
    %195 = arith.mulf %193, %194 : vector<8x8xf32>
    %cst_118 = arith.constant dense<0xFF800000> : vector<8xf32>
    %196 = vector.multi_reduction <maximumf>, %195, %cst_118 [1] : vector<8x8xf32> to vector<8xf32>
    %197 = vector.shape_cast %196 : vector<8xf32> to vector<8x1xf32>
    %198 = vector.broadcast %197 : vector<8x1xf32> to vector<8x8xf32>
    %199 = arith.subf %195, %198 : vector<8x8xf32>
    %200 = math.exp %199 : vector<8x8xf32>
    %cst_119 = arith.constant dense<0.000000e+00> : vector<8xf32>
    %201 = vector.multi_reduction <add>, %200, %cst_119 [1] : vector<8x8xf32> to vector<8xf32>
    %202 = vector.shape_cast %201 : vector<8xf32> to vector<8x1xf32>
    %203 = tpu.reciprocal %202 {approx = true} : vector<8x1xf32> -> vector<8x1xf32>
    %204 = vector.broadcast %203 : vector<8x1xf32> to vector<8x8xf32>
    %205 = arith.mulf %200, %204 : vector<8x8xf32>
    %cst_120 = arith.constant dense<0.000000e+00> : vector<8x16xf32>
    %206 = tpu.matmul %205, %175, %cst_120 {dimension_numbers = #tpu.dot_dimension_numbers<[1], [0], [0], [1], [0, 0, 1, 1], [], []>} : vector<8x8xf32>, vector<8x16xf32>, vector<8x16xf32> -> vector<8x16xf32>
    %c1_121 = arith.constant 1 : index
    %c0_122 = arith.constant 0 : index
    %c0_123 = arith.constant 0 : index
    %207 = vector.load %arg17[%c1_121, %c0_122, %c0_123] : memref<3x8x16xf32, #tpu.memory_space<vmem>>, vector<1x8x16xf32>
    %208 = vector.shape_cast %207 : vector<1x8x16xf32> to vector<8x16xf32>
    %209 = vector.shape_cast %206 : vector<8x16xf32> to vector<1x8x16xf32>
    tpu.vector_store %arg17[%c1_121, %c0_122, %c0_123], %209 {strides = array<i32>} : memref<3x8x16xf32, #tpu.memory_space<vmem>>, vector<1x8x16xf32>,
    %c0_124 = arith.constant 0 : index
    %c32 = arith.constant 32 : index
    %210 = vector.load %arg20[%c0_124, %c32] : memref<8x144xf32, #tpu.memory_space<vmem>>, vector<8x16xf32>
    %c0_125 = arith.constant 0 : index
    %c80 = arith.constant 80 : index
    %211 = vector.load %arg20[%c0_125, %c80] : memref<8x144xf32, #tpu.memory_space<vmem>>, vector<8x16xf32>
    %c0_126 = arith.constant 0 : index
    %c128 = arith.constant 128 : index
    %212 = vector.load %arg20[%c0_126, %c128] : memref<8x144xf32, #tpu.memory_space<vmem>>, vector<8x16xf32>
    %c0_127 = arith.constant 0 : index
    %c32_128 = arith.constant 32 : index
    %213 = vector.load %arg21[%c0_127, %c32_128] : memref<8x144xf32, #tpu.memory_space<vmem>>, vector<8x16xf32>
    %c0_129 = arith.constant 0 : index
    %c80_130 = arith.constant 80 : index
    %214 = vector.load %arg21[%c0_129, %c80_130] : memref<8x144xf32, #tpu.memory_space<vmem>>, vector<8x16xf32>
    %c0_131 = arith.constant 0 : index
    %c128_132 = arith.constant 128 : index
    %215 = vector.load %arg21[%c0_131, %c128_132] : memref<8x144xf32, #tpu.memory_space<vmem>>, vector<8x16xf32>
    %cst_133 = arith.constant dense<0.000000e+00> : vector<8x8xf32>
    %216 = tpu.matmul %213, %211, %cst_133 {dimension_numbers = #tpu.dot_dimension_numbers<[1], [1], [0], [0], [0, 0, 1, 0], [], []>} : vector<8x16xf32>, vector<8x16xf32>, vector<8x8xf32> -> vector<8x8xf32>
    %cst_134 = arith.constant 2.500000e-01 : f32
    %217 = vector.broadcast %cst_134 : f32 to vector<8x8xf32>
    %218 = arith.mulf %216, %217 : vector<8x8xf32>
    %cst_135 = arith.constant dense<0xFF800000> : vector<8xf32>
    %219 = vector.multi_reduction <maximumf>, %218, %cst_135 [1] : vector<8x8xf32> to vector<8xf32>
    %220 = vector.shape_cast %219 : vector<8xf32> to vector<8x1xf32>
    %221 = vector.broadcast %220 : vector<8x1xf32> to vector<8x8xf32>
    %222 = arith.subf %218, %221 : vector<8x8xf32>
    %223 = math.exp %222 : vector<8x8xf32>
    %cst_136 = arith.constant dense<0.000000e+00> : vector<8xf32>
    %224 = vector.multi_reduction <add>, %223, %cst_136 [1] : vector<8x8xf32> to vector<8xf32>
    %225 = vector.shape_cast %224 : vector<8xf32> to vector<8x1xf32>
    %226 = tpu.reciprocal %225 {approx = true} : vector<8x1xf32> -> vector<8x1xf32>
    %227 = vector.broadcast %226 : vector<8x1xf32> to vector<8x8xf32>
    %228 = arith.mulf %223, %227 : vector<8x8xf32>
    %cst_137 = arith.constant dense<0.000000e+00> : vector<8x16xf32>
    %229 = tpu.matmul %228, %212, %cst_137 {dimension_numbers = #tpu.dot_dimension_numbers<[1], [0], [0], [1], [0, 0, 1, 1], [], []>} : vector<8x8xf32>, vector<8x16xf32>, vector<8x16xf32> -> vector<8x16xf32>
    %c2 = arith.constant 2 : index
    %c0_138 = arith.constant 0 : index
    %c0_139 = arith.constant 0 : index
    %230 = vector.load %arg16[%c2, %c0_138, %c0_139] : memref<3x8x16xf32, #tpu.memory_space<vmem>>, vector<1x8x16xf32>
    %231 = vector.shape_cast %230 : vector<1x8x16xf32> to vector<8x16xf32>
    %232 = vector.shape_cast %229 : vector<8x16xf32> to vector<1x8x16xf32>
    tpu.vector_store %arg16[%c2, %c0_138, %c0_139], %232 {strides = array<i32>} : memref<3x8x16xf32, #tpu.memory_space<vmem>>, vector<1x8x16xf32>,
    %cst_140 = arith.constant dense<0.000000e+00> : vector<8x8xf32>
    %233 = tpu.matmul %210, %214, %cst_140 {dimension_numbers = #tpu.dot_dimension_numbers<[1], [1], [0], [0], [0, 0, 1, 0], [], []>} : vector<8x16xf32>, vector<8x16xf32>, vector<8x8xf32> -> vector<8x8xf32>
    %cst_141 = arith.constant 2.500000e-01 : f32
    %234 = vector.broadcast %cst_141 : f32 to vector<8x8xf32>
    %235 = arith.mulf %233, %234 : vector<8x8xf32>
    %cst_142 = arith.constant dense<0xFF800000> : vector<8xf32>
    %236 = vector.multi_reduction <maximumf>, %235, %cst_142 [1] : vector<8x8xf32> to vector<8xf32>
    %237 = vector.shape_cast %236 : vector<8xf32> to vector<8x1xf32>
    %238 = vector.broadcast %237 : vector<8x1xf32> to vector<8x8xf32>
    %239 = arith.subf %235, %238 : vector<8x8xf32>
    %240 = math.exp %239 : vector<8x8xf32>
    %cst_143 = arith.constant dense<0.000000e+00> : vector<8xf32>
    %241 = vector.multi_reduction <add>, %240, %cst_143 [1] : vector<8x8xf32> to vector<8xf32>
    %242 = vector.shape_cast %241 : vector<8xf32> to vector<8x1xf32>
    %243 = tpu.reciprocal %242 {approx = true} : vector<8x1xf32> -> vector<8x1xf32>
    %244 = vector.broadcast %243 : vector<8x1xf32> to vector<8x8xf32>
    %245 = arith.mulf %240, %244 : vector<8x8xf32>
    %cst_144 = arith.constant dense<0.000000e+00> : vector<8x16xf32>
    %246 = tpu.matmul %245, %215, %cst_144 {dimension_numbers = #tpu.dot_dimension_numbers<[1], [0], [0], [1], [0, 0, 1, 1], [], []>} : vector<8x8xf32>, vector<8x16xf32>, vector<8x16xf32> -> vector<8x16xf32>
    %c2_145 = arith.constant 2 : index
    %c0_146 = arith.constant 0 : index
    %c0_147 = arith.constant 0 : index
    %247 = vector.load %arg17[%c2_145, %c0_146, %c0_147] : memref<3x8x16xf32, #tpu.memory_space<vmem>>, vector<1x8x16xf32>
    %248 = vector.shape_cast %247 : vector<1x8x16xf32> to vector<8x16xf32>
    %249 = vector.shape_cast %246 : vector<8x16xf32> to vector<1x8x16xf32>
    tpu.vector_store %arg17[%c2_145, %c0_146, %c0_147], %249 {strides = array<i32>} : memref<3x8x16xf32, #tpu.memory_space<vmem>>, vector<1x8x16xf32>,
    return
  }
}

module attributes {stable_mosaic.version = 11 : i64} {
  func.func @_cross_post_kernel(%arg0: memref<8x48xf32, #tpu.memory_space<vmem>>, %arg1: memref<8x48xf32, #tpu.memory_space<vmem>>, %arg2: memref<8x48xf32, #tpu.memory_space<vmem>>, %arg3: memref<8x48xf32, #tpu.memory_space<vmem>>, %arg4: memref<48x48xf32, #tpu.memory_space<vmem>>, %arg5: memref<48x48xf32, #tpu.memory_space<vmem>>, %arg6: memref<1x48xf32, #tpu.memory_space<vmem>>, %arg7: memref<1x48xf32, #tpu.memory_space<vmem>>, %arg8: memref<48x48xf32, #tpu.memory_space<vmem>>, %arg9: memref<1x48xf32, #tpu.memory_space<vmem>>, %arg10: memref<1x48xf32, #tpu.memory_space<vmem>>, %arg11: memref<1x48xf32, #tpu.memory_space<vmem>>, %arg12: memref<1x48xf32, #tpu.memory_space<vmem>>, %arg13: memref<1x48xf32, #tpu.memory_space<vmem>>, %arg14: memref<48x48xf32, #tpu.memory_space<vmem>>, %arg15: memref<1x48xf32, #tpu.memory_space<vmem>>, %arg16: memref<1x48xf32, #tpu.memory_space<vmem>>, %arg17: memref<1x48xf32, #tpu.memory_space<vmem>>, %arg18: memref<48x48xf32, #tpu.memory_space<vmem>>, %arg19: memref<48x48xf32, #tpu.memory_space<vmem>>, %arg20: memref<1x48xf32, #tpu.memory_space<vmem>>, %arg21: memref<8x48xf32, #tpu.memory_space<vmem>>) attributes {dimension_semantics = [], scalar_prefetch = 0 : i64, scratch_operands = 0 : i64, tpu.core_type = #tpu.core_type<tc>} {
    %c0 = arith.constant 0 : index
    %c0_0 = arith.constant 0 : index
    %0 = vector.load %arg0[%c0, %c0_0] : memref<8x48xf32, #tpu.memory_space<vmem>>, vector<8x48xf32>
    %c0_1 = arith.constant 0 : index
    %c0_2 = arith.constant 0 : index
    %1 = vector.load %arg4[%c0_1, %c0_2] : memref<48x48xf32, #tpu.memory_space<vmem>>, vector<48x48xf32>
    %cst = arith.constant dense<0.000000e+00> : vector<8x48xf32>
    %2 = tpu.matmul %0, %1, %cst {dimension_numbers = #tpu.dot_dimension_numbers<[1], [1], [0], [0], [0, 0, 1, 0], [], []>} : vector<8x48xf32>, vector<48x48xf32>, vector<8x48xf32> -> vector<8x48xf32>
    %c0_3 = arith.constant 0 : index
    %c0_4 = arith.constant 0 : index
    %3 = vector.load %arg2[%c0_3, %c0_4] : memref<8x48xf32, #tpu.memory_space<vmem>>, vector<8x48xf32>
    %4 = arith.addf %2, %3 : vector<8x48xf32>
    %c0_5 = arith.constant 0 : index
    %c0_6 = arith.constant 0 : index
    %5 = vector.load %arg6[%c0_5, %c0_6] : memref<1x48xf32, #tpu.memory_space<vmem>>, vector<1x48xf32>
    %c0_7 = arith.constant 0 : index
    %c0_8 = arith.constant 0 : index
    %6 = vector.load %arg7[%c0_7, %c0_8] : memref<1x48xf32, #tpu.memory_space<vmem>>, vector<1x48xf32>
    %cst_9 = arith.constant dense<0.000000e+00> : vector<8xf32>
    %7 = vector.multi_reduction <add>, %4, %cst_9 [1] : vector<8x48xf32> to vector<8xf32>
    %8 = vector.shape_cast %7 : vector<8xf32> to vector<8x1xf32>
    %cst_10 = arith.constant 4.800000e+01 : f32
    %9 = vector.broadcast %cst_10 : f32 to vector<8x1xf32>
    %10 = arith.divf %8, %9 : vector<8x1xf32>
    %11 = vector.broadcast %10 : vector<8x1xf32> to vector<8x48xf32>
    %12 = arith.subf %4, %11 : vector<8x48xf32>
    %13 = arith.mulf %12, %12 : vector<8x48xf32>
    %cst_11 = arith.constant dense<0.000000e+00> : vector<8xf32>
    %14 = vector.multi_reduction <add>, %13, %cst_11 [1] : vector<8x48xf32> to vector<8xf32>
    %15 = vector.shape_cast %14 : vector<8xf32> to vector<8x1xf32>
    %cst_12 = arith.constant 4.800000e+01 : f32
    %16 = vector.broadcast %cst_12 : f32 to vector<8x1xf32>
    %17 = arith.divf %15, %16 : vector<8x1xf32>
    %cst_13 = arith.constant 9.99999974E-6 : f32
    %18 = vector.broadcast %cst_13 : f32 to vector<8x1xf32>
    %19 = arith.addf %17, %18 : vector<8x1xf32>
    %20 = math.rsqrt %19 : vector<8x1xf32>
    %21 = vector.broadcast %20 : vector<8x1xf32> to vector<8x48xf32>
    %22 = arith.mulf %12, %21 : vector<8x48xf32>
    %23 = vector.broadcast %5 : vector<1x48xf32> to vector<8x48xf32>
    %24 = arith.mulf %22, %23 : vector<8x48xf32>
    %25 = vector.broadcast %6 : vector<1x48xf32> to vector<8x48xf32>
    %26 = arith.addf %24, %25 : vector<8x48xf32>
    %c0_14 = arith.constant 0 : index
    %c0_15 = arith.constant 0 : index
    %27 = vector.load %arg8[%c0_14, %c0_15] : memref<48x48xf32, #tpu.memory_space<vmem>>, vector<48x48xf32>
    %cst_16 = arith.constant dense<0.000000e+00> : vector<8x48xf32>
    %28 = tpu.matmul %26, %27, %cst_16 {dimension_numbers = #tpu.dot_dimension_numbers<[1], [1], [0], [0], [0, 0, 1, 0], [], []>} : vector<8x48xf32>, vector<48x48xf32>, vector<8x48xf32> -> vector<8x48xf32>
    %c0_17 = arith.constant 0 : index
    %c0_18 = arith.constant 0 : index
    %29 = vector.load %arg9[%c0_17, %c0_18] : memref<1x48xf32, #tpu.memory_space<vmem>>, vector<1x48xf32>
    %30 = vector.broadcast %29 : vector<1x48xf32> to vector<8x48xf32>
    %31 = arith.addf %28, %30 : vector<8x48xf32>
    %32 = arith.addf %31, %26 : vector<8x48xf32>
    %c0_19 = arith.constant 0 : index
    %c0_20 = arith.constant 0 : index
    %33 = vector.load %arg10[%c0_19, %c0_20] : memref<1x48xf32, #tpu.memory_space<vmem>>, vector<1x48xf32>
    %c0_21 = arith.constant 0 : index
    %c0_22 = arith.constant 0 : index
    %34 = vector.load %arg11[%c0_21, %c0_22] : memref<1x48xf32, #tpu.memory_space<vmem>>, vector<1x48xf32>
    %cst_23 = arith.constant dense<0.000000e+00> : vector<8xf32>
    %35 = vector.multi_reduction <add>, %32, %cst_23 [1] : vector<8x48xf32> to vector<8xf32>
    %36 = vector.shape_cast %35 : vector<8xf32> to vector<8x1xf32>
    %cst_24 = arith.constant 4.800000e+01 : f32
    %37 = vector.broadcast %cst_24 : f32 to vector<8x1xf32>
    %38 = arith.divf %36, %37 : vector<8x1xf32>
    %39 = vector.broadcast %38 : vector<8x1xf32> to vector<8x48xf32>
    %40 = arith.subf %32, %39 : vector<8x48xf32>
    %41 = arith.mulf %40, %40 : vector<8x48xf32>
    %cst_25 = arith.constant dense<0.000000e+00> : vector<8xf32>
    %42 = vector.multi_reduction <add>, %41, %cst_25 [1] : vector<8x48xf32> to vector<8xf32>
    %43 = vector.shape_cast %42 : vector<8xf32> to vector<8x1xf32>
    %cst_26 = arith.constant 4.800000e+01 : f32
    %44 = vector.broadcast %cst_26 : f32 to vector<8x1xf32>
    %45 = arith.divf %43, %44 : vector<8x1xf32>
    %cst_27 = arith.constant 9.99999974E-6 : f32
    %46 = vector.broadcast %cst_27 : f32 to vector<8x1xf32>
    %47 = arith.addf %45, %46 : vector<8x1xf32>
    %48 = math.rsqrt %47 : vector<8x1xf32>
    %49 = vector.broadcast %48 : vector<8x1xf32> to vector<8x48xf32>
    %50 = arith.mulf %40, %49 : vector<8x48xf32>
    %51 = vector.broadcast %33 : vector<1x48xf32> to vector<8x48xf32>
    %52 = arith.mulf %50, %51 : vector<8x48xf32>
    %53 = vector.broadcast %34 : vector<1x48xf32> to vector<8x48xf32>
    %54 = arith.addf %52, %53 : vector<8x48xf32>
    %c0_28 = arith.constant 0 : index
    %c0_29 = arith.constant 0 : index
    %55 = vector.load %arg1[%c0_28, %c0_29] : memref<8x48xf32, #tpu.memory_space<vmem>>, vector<8x48xf32>
    %c0_30 = arith.constant 0 : index
    %c0_31 = arith.constant 0 : index
    %56 = vector.load %arg5[%c0_30, %c0_31] : memref<48x48xf32, #tpu.memory_space<vmem>>, vector<48x48xf32>
    %cst_32 = arith.constant dense<0.000000e+00> : vector<8x48xf32>
    %57 = tpu.matmul %55, %56, %cst_32 {dimension_numbers = #tpu.dot_dimension_numbers<[1], [1], [0], [0], [0, 0, 1, 0], [], []>} : vector<8x48xf32>, vector<48x48xf32>, vector<8x48xf32> -> vector<8x48xf32>
    %c0_33 = arith.constant 0 : index
    %c0_34 = arith.constant 0 : index
    %58 = vector.load %arg3[%c0_33, %c0_34] : memref<8x48xf32, #tpu.memory_space<vmem>>, vector<8x48xf32>
    %59 = arith.addf %57, %58 : vector<8x48xf32>
    %c0_35 = arith.constant 0 : index
    %c0_36 = arith.constant 0 : index
    %60 = vector.load %arg12[%c0_35, %c0_36] : memref<1x48xf32, #tpu.memory_space<vmem>>, vector<1x48xf32>
    %c0_37 = arith.constant 0 : index
    %c0_38 = arith.constant 0 : index
    %61 = vector.load %arg13[%c0_37, %c0_38] : memref<1x48xf32, #tpu.memory_space<vmem>>, vector<1x48xf32>
    %cst_39 = arith.constant dense<0.000000e+00> : vector<8xf32>
    %62 = vector.multi_reduction <add>, %59, %cst_39 [1] : vector<8x48xf32> to vector<8xf32>
    %63 = vector.shape_cast %62 : vector<8xf32> to vector<8x1xf32>
    %cst_40 = arith.constant 4.800000e+01 : f32
    %64 = vector.broadcast %cst_40 : f32 to vector<8x1xf32>
    %65 = arith.divf %63, %64 : vector<8x1xf32>
    %66 = vector.broadcast %65 : vector<8x1xf32> to vector<8x48xf32>
    %67 = arith.subf %59, %66 : vector<8x48xf32>
    %68 = arith.mulf %67, %67 : vector<8x48xf32>
    %cst_41 = arith.constant dense<0.000000e+00> : vector<8xf32>
    %69 = vector.multi_reduction <add>, %68, %cst_41 [1] : vector<8x48xf32> to vector<8xf32>
    %70 = vector.shape_cast %69 : vector<8xf32> to vector<8x1xf32>
    %cst_42 = arith.constant 4.800000e+01 : f32
    %71 = vector.broadcast %cst_42 : f32 to vector<8x1xf32>
    %72 = arith.divf %70, %71 : vector<8x1xf32>
    %cst_43 = arith.constant 9.99999974E-6 : f32
    %73 = vector.broadcast %cst_43 : f32 to vector<8x1xf32>
    %74 = arith.addf %72, %73 : vector<8x1xf32>
    %75 = math.rsqrt %74 : vector<8x1xf32>
    %76 = vector.broadcast %75 : vector<8x1xf32> to vector<8x48xf32>
    %77 = arith.mulf %67, %76 : vector<8x48xf32>
    %78 = vector.broadcast %60 : vector<1x48xf32> to vector<8x48xf32>
    %79 = arith.mulf %77, %78 : vector<8x48xf32>
    %80 = vector.broadcast %61 : vector<1x48xf32> to vector<8x48xf32>
    %81 = arith.addf %79, %80 : vector<8x48xf32>
    %c0_44 = arith.constant 0 : index
    %c0_45 = arith.constant 0 : index
    %82 = vector.load %arg14[%c0_44, %c0_45] : memref<48x48xf32, #tpu.memory_space<vmem>>, vector<48x48xf32>
    %cst_46 = arith.constant dense<0.000000e+00> : vector<8x48xf32>
    %83 = tpu.matmul %81, %82, %cst_46 {dimension_numbers = #tpu.dot_dimension_numbers<[1], [1], [0], [0], [0, 0, 1, 0], [], []>} : vector<8x48xf32>, vector<48x48xf32>, vector<8x48xf32> -> vector<8x48xf32>
    %c0_47 = arith.constant 0 : index
    %c0_48 = arith.constant 0 : index
    %84 = vector.load %arg15[%c0_47, %c0_48] : memref<1x48xf32, #tpu.memory_space<vmem>>, vector<1x48xf32>
    %85 = vector.broadcast %84 : vector<1x48xf32> to vector<8x48xf32>
    %86 = arith.addf %83, %85 : vector<8x48xf32>
    %87 = arith.addf %86, %81 : vector<8x48xf32>
    %c0_49 = arith.constant 0 : index
    %c0_50 = arith.constant 0 : index
    %88 = vector.load %arg16[%c0_49, %c0_50] : memref<1x48xf32, #tpu.memory_space<vmem>>, vector<1x48xf32>
    %c0_51 = arith.constant 0 : index
    %c0_52 = arith.constant 0 : index
    %89 = vector.load %arg17[%c0_51, %c0_52] : memref<1x48xf32, #tpu.memory_space<vmem>>, vector<1x48xf32>
    %cst_53 = arith.constant dense<0.000000e+00> : vector<8xf32>
    %90 = vector.multi_reduction <add>, %87, %cst_53 [1] : vector<8x48xf32> to vector<8xf32>
    %91 = vector.shape_cast %90 : vector<8xf32> to vector<8x1xf32>
    %cst_54 = arith.constant 4.800000e+01 : f32
    %92 = vector.broadcast %cst_54 : f32 to vector<8x1xf32>
    %93 = arith.divf %91, %92 : vector<8x1xf32>
    %94 = vector.broadcast %93 : vector<8x1xf32> to vector<8x48xf32>
    %95 = arith.subf %87, %94 : vector<8x48xf32>
    %96 = arith.mulf %95, %95 : vector<8x48xf32>
    %cst_55 = arith.constant dense<0.000000e+00> : vector<8xf32>
    %97 = vector.multi_reduction <add>, %96, %cst_55 [1] : vector<8x48xf32> to vector<8xf32>
    %98 = vector.shape_cast %97 : vector<8xf32> to vector<8x1xf32>
    %cst_56 = arith.constant 4.800000e+01 : f32
    %99 = vector.broadcast %cst_56 : f32 to vector<8x1xf32>
    %100 = arith.divf %98, %99 : vector<8x1xf32>
    %cst_57 = arith.constant 9.99999974E-6 : f32
    %101 = vector.broadcast %cst_57 : f32 to vector<8x1xf32>
    %102 = arith.addf %100, %101 : vector<8x1xf32>
    %103 = math.rsqrt %102 : vector<8x1xf32>
    %104 = vector.broadcast %103 : vector<8x1xf32> to vector<8x48xf32>
    %105 = arith.mulf %95, %104 : vector<8x48xf32>
    %106 = vector.broadcast %88 : vector<1x48xf32> to vector<8x48xf32>
    %107 = arith.mulf %105, %106 : vector<8x48xf32>
    %108 = vector.broadcast %89 : vector<1x48xf32> to vector<8x48xf32>
    %109 = arith.addf %107, %108 : vector<8x48xf32>
    %c0_58 = arith.constant 0 : index
    %c0_59 = arith.constant 0 : index
    %110 = vector.load %arg18[%c0_58, %c0_59] : memref<48x48xf32, #tpu.memory_space<vmem>>, vector<48x48xf32>
    %cst_60 = arith.constant dense<0.000000e+00> : vector<8x48xf32>
    %111 = tpu.matmul %54, %110, %cst_60 {dimension_numbers = #tpu.dot_dimension_numbers<[1], [1], [0], [0], [0, 0, 1, 0], [], []>} : vector<8x48xf32>, vector<48x48xf32>, vector<8x48xf32> -> vector<8x48xf32>
    %c0_61 = arith.constant 0 : index
    %c0_62 = arith.constant 0 : index
    %112 = vector.load %arg19[%c0_61, %c0_62] : memref<48x48xf32, #tpu.memory_space<vmem>>, vector<48x48xf32>
    %cst_63 = arith.constant dense<0.000000e+00> : vector<8x48xf32>
    %113 = tpu.matmul %109, %112, %cst_63 {dimension_numbers = #tpu.dot_dimension_numbers<[1], [1], [0], [0], [0, 0, 1, 0], [], []>} : vector<8x48xf32>, vector<48x48xf32>, vector<8x48xf32> -> vector<8x48xf32>
    %114 = arith.addf %111, %113 : vector<8x48xf32>
    %c0_64 = arith.constant 0 : index
    %c0_65 = arith.constant 0 : index
    %115 = vector.load %arg20[%c0_64, %c0_65] : memref<1x48xf32, #tpu.memory_space<vmem>>, vector<1x48xf32>
    %116 = vector.broadcast %115 : vector<1x48xf32> to vector<8x48xf32>
    %117 = arith.addf %114, %116 : vector<8x48xf32>
    %c0_66 = arith.constant 0 : index
    %c0_67 = arith.constant 0 : index
    %118 = vector.load %arg21[%c0_66, %c0_67] : memref<8x48xf32, #tpu.memory_space<vmem>>, vector<8x48xf32>
    tpu.vector_store %arg21[%c0_66, %c0_67], %117 {strides = array<i32>} : memref<8x48xf32, #tpu.memory_space<vmem>>, vector<8x48xf32>,
    return
  }
}

</mosaic_0001>

<llo_original>
// kernel: en2_forward.5
$region0: #{en2_forward.5}
  #allocation0 [shape = 'u32[]', space=smem, size = 0x4, offset = 0x4, fixed_abs, tag = 'smem constant byte address 0x4 - core index']
  #allocation1 [shape = 'u32[144,128]{1,0:T(1,128)}', space=vmem, size = 0x12000, scoped, tag = 'internal scratch']
  %s0 = inlined_call_operand.vmem [shape: f32[2,8,96], index: 0, kind: input, shape index: {}]
  %s1 = inlined_call_operand.vmem [shape: f32[2,8,96], index: 1, kind: input, shape index: {}]
  %s2 = inlined_call_operand.vmem [shape: f32[2,96,96], index: 2, kind: input, shape index: {}]
  %s3 = inlined_call_operand.vmem [shape: f32[2,1,96], index: 3, kind: input, shape index: {}]
  %s4 = inlined_call_operand.vmem [shape: f32[2,1,96], index: 4, kind: input, shape index: {}]
  %s5 = inlined_call_operand.vmem [shape: f32[2,96,96], index: 5, kind: input, shape index: {}]
  %s6 = inlined_call_operand.vmem [shape: f32[2,1,96], index: 6, kind: input, shape index: {}]
  %s7 = inlined_call_operand.vmem [shape: f32[2,1,96], index: 7, kind: input, shape index: {}]
  %s8 = inlined_call_operand.vmem [shape: f32[2,1,96], index: 8, kind: input, shape index: {}]
  %s9 = inlined_call_operand.vmem [shape: f32[2,8,96], index: 9, kind: output, shape index: {}]
  %s10 = sld [smem:[#allocation0]]
  $region69: #{en2_forward.5} parent=0
    _
  %s12 = ssub.s32 1, %s10
  %s13 = scalar_select 0, %s12, %s10
  loop: start=0, step=1, limit=4
  $region2: #{en2_forward.5} parent=0 // loop_pre_header
    _
  $region3: #{en2_forward.5} parent=0 // loop_header
    %s15 = sphi 0, %s19
    %p16 = scmp.ge.s32.totalorder %s15, 4
    %s25 = sphi 0, %s27
    %s28 = sphi 0, %s25
    %s29 = sphi 0, %s28
    %s45 = sphi 0, %s29
    %s51 = sphi 0, %s53
    %s54 = sphi 0, %s51
    %s55 = sphi 0, %s54
    %s71 = sphi 0, %s55
    %s77 = sphi 0, %s79
    %s80 = sphi 0, %s77
    %s81 = sphi 0, %s80
    %s97 = sphi 0, %s81
    %s103 = sphi 0, %s105
    %s106 = sphi 0, %s103
    %s107 = sphi 0, %s106
    %s123 = sphi 0, %s107
    %s129 = sphi 0, %s131
    %s132 = sphi 0, %s129
    %s133 = sphi 0, %s132
    %s149 = sphi 0, %s133
    %s155 = sphi 0, %s157
    %s158 = sphi 0, %s155
    %s159 = sphi 0, %s158
    %s175 = sphi 0, %s159
    %s181 = sphi 0, %s183
    %s184 = sphi 0, %s181
    %s185 = sphi 0, %s184
    %s201 = sphi 0, %s185
    %s207 = sphi 0, %s209
    %s210 = sphi 0, %s207
    %s211 = sphi 0, %s210
    %s227 = sphi 0, %s211
    %s233 = sphi 0, %s235
    %s236 = sphi 0, %s233
    %s237 = sphi 0, %s236
    %s253 = sphi 0, %s237
    %s259 = sphi 0, %s261
    %s262 = sphi 0, %s259
    %s263 = sphi 0, %s262
    %s279 = sphi 0, %s263
  $region4: #{en2_forward.5} parent=0 // loop_header_branch
    %18 = sbr.rel (%p16) target = $region8
  $region5: #{en2_forward.5} parent=0 // loop_body
    %s20 = ssub.s32 %s15, 1
    %s21 = ssub.s32 %s15, 2
    %s22 = sadd.s32 %s15, 1
    %s23 = ssub.s32 %s15, %s22
    %p24 = scmp.eq.s32.totalorder %s23, 0
    %s26 = sadd.s32 %s25, 1
    %s27 = scalar_select %p24, %s25, %s26
    %p30 = pneg %p24
    %p31 = scmp.eq.s32.totalorder %s15, 1
    %p32 = por %p30, %p31
    %p33 = scmp.ne.s32.totalorder %s25, %s28
    %p34 = scmp.eq.s32.totalorder %s15, 0
    %p35 = por %p33, %p34
    %p36 = scmp.ne.s32.totalorder %s25, %s28
    %p37 = scmp.eq.s32.totalorder %s20, 1
    %p38 = por %p36, %p37
    %p39 = scmp.ne.s32.totalorder %s28, %s29
    %p40 = scmp.eq.s32.totalorder %s20, 0
    %p41 = por %p39, %p40
    %p42 = scmp.ne.s32.totalorder %s28, %s29
    %p43 = scmp.eq.s32.totalorder %s21, 1
    %p44 = por %p42, %p43
    %p46 = scmp.ne.s32.totalorder %s29, %s45
    %p47 = scmp.eq.s32.totalorder %s21, 0
    %p48 = por %p46, %p47
    %s49 = ssub.s32 %s15, %s22
    %p50 = scmp.eq.s32.totalorder %s49, 0
    %s52 = sadd.s32 %s51, 1
    %s53 = scalar_select %p50, %s51, %s52
    %p56 = pneg %p50
    %p57 = scmp.eq.s32.totalorder %s15, 1
    %p58 = por %p56, %p57
    %p59 = scmp.ne.s32.totalorder %s51, %s54
    %p60 = scmp.eq.s32.totalorder %s15, 0
    %p61 = por %p59, %p60
    %p62 = scmp.ne.s32.totalorder %s51, %s54
    %p63 = scmp.eq.s32.totalorder %s20, 1
    %p64 = por %p62, %p63
    %p65 = scmp.ne.s32.totalorder %s54, %s55
    %p66 = scmp.eq.s32.totalorder %s20, 0
    %p67 = por %p65, %p66
    %p68 = scmp.ne.s32.totalorder %s54, %s55
    %p69 = scmp.eq.s32.totalorder %s21, 1
    %p70 = por %p68, %p69
    %p72 = scmp.ne.s32.totalorder %s55, %s71
    %p73 = scmp.eq.s32.totalorder %s21, 0
    %p74 = por %p72, %p73
    %s75 = ssub.s32 %s15, %s22
    %p76 = scmp.eq.s32.totalorder %s75, 0
    %s78 = sadd.s32 %s77, 1
    %s79 = scalar_select %p76, %s77, %s78
    %p82 = pneg %p76
    %p83 = scmp.eq.s32.totalorder %s15, 1
    %p84 = por %p82, %p83
    %p85 = scmp.ne.s32.totalorder %s77, %s80
    %p86 = scmp.eq.s32.totalorder %s15, 0
    %p87 = por %p85, %p86
    %p88 = scmp.ne.s32.totalorder %s77, %s80
    %p89 = scmp.eq.s32.totalorder %s20, 1
    %p90 = por %p88, %p89
    %p91 = scmp.ne.s32.totalorder %s80, %s81
    %p92 = scmp.eq.s32.totalorder %s20, 0
    %p93 = por %p91, %p92
    %p94 = scmp.ne.s32.totalorder %s80, %s81
    %p95 = scmp.eq.s32.totalorder %s21, 1
    %p96 = por %p94, %p95
    %p98 = scmp.ne.s32.totalorder %s81, %s97
    %p99 = scmp.eq.s32.totalorder %s21, 0
    %p100 = por %p98, %p99
    %s101 = ssub.s32 %s15, %s22
    %p102 = scmp.eq.s32.totalorder %s101, 0
    %s104 = sadd.s32 %s103, 1
    %s105 = scalar_select %p102, %s103, %s104
    %p108 = pneg %p102
    %p109 = scmp.eq.s32.totalorder %s15, 1
    %p110 = por %p108, %p109
    %p111 = scmp.ne.s32.totalorder %s103, %s106
    %p112 = scmp.eq.s32.totalorder %s15, 0
    %p113 = por %p111, %p112
    %p114 = scmp.ne.s32.totalorder %s103, %s106
    %p115 = scmp.eq.s32.totalorder %s20, 1
    %p116 = por %p114, %p115
    %p117 = scmp.ne.s32.totalorder %s106, %s107
    %p118 = scmp.eq.s32.totalorder %s20, 0
    %p119 = por %p117, %p118
    %p120 = scmp.ne.s32.totalorder %s106, %s107
    %p121 = scmp.eq.s32.totalorder %s21, 1
    %p122 = por %p120, %p121
    %p124 = scmp.ne.s32.totalorder %s107, %s123
    %p125 = scmp.eq.s32.totalorder %s21, 0
    %p126 = por %p124, %p125
    %s127 = ssub.s32 %s15, %s22
    %p128 = scmp.eq.s32.totalorder %s127, 0
    %s130 = sadd.s32 %s129, 1
    %s131 = scalar_select %p128, %s129, %s130
    %p134 = pneg %p128
    %p135 = scmp.eq.s32.totalorder %s15, 1
    %p136 = por %p134, %p135
    %p137 = scmp.ne.s32.totalorder %s129, %s132
    %p138 = scmp.eq.s32.totalorder %s15, 0
    %p139 = por %p137, %p138
    %p140 = scmp.ne.s32.totalorder %s129, %s132
    %p141 = scmp.eq.s32.totalorder %s20, 1
    %p142 = por %p140, %p141
    %p143 = scmp.ne.s32.totalorder %s132, %s133
    %p144 = scmp.eq.s32.totalorder %s20, 0
    %p145 = por %p143, %p144
    %p146 = scmp.ne.s32.totalorder %s132, %s133
    %p147 = scmp.eq.s32.totalorder %s21, 1
    %p148 = por %p146, %p147
    %p150 = scmp.ne.s32.totalorder %s133, %s149
    %p151 = scmp.eq.s32.totalorder %s21, 0
    %p152 = por %p150, %p151
    %s153 = ssub.s32 %s15, %s22
    %p154 = scmp.eq.s32.totalorder %s153, 0
    %s156 = sadd.s32 %s155, 1
    %s157 = scalar_select %p154, %s155, %s156
    %p160 = pneg %p154
    %p161 = scmp.eq.s32.totalorder %s15, 1
    %p162 = por %p160, %p161
    %p163 = scmp.ne.s32.totalorder %s155, %s158
    %p164 = scmp.eq.s32.totalorder %s15, 0
    %p165 = por %p163, %p164
    %p166 = scmp.ne.s32.totalorder %s155, %s158
    %p167 = scmp.eq.s32.totalorder %s20, 1
    %p168 = por %p166, %p167
    %p169 = scmp.ne.s32.totalorder %s158, %s159
    %p170 = scmp.eq.s32.totalorder %s20, 0
    %p171 = por %p169, %p170
    %p172 = scmp.ne.s32.totalorder %s158, %s159
    %p173 = scmp.eq.s32.totalorder %s21, 1
    %p174 = por %p172, %p173
    %p176 = scmp.ne.s32.totalorder %s159, %s175
    %p177 = scmp.eq.s32.totalorder %s21, 0
    %p178 = por %p176, %p177
    %s179 = ssub.s32 %s15, %s22
    %p180 = scmp.eq.s32.totalorder %s179, 0
    %s182 = sadd.s32 %s181, 1
    %s183 = scalar_select %p180, %s181, %s182
    %p186 = pneg %p180
    %p187 = scmp.eq.s32.totalorder %s15, 1
    %p188 = por %p186, %p187
    %p189 = scmp.ne.s32.totalorder %s181, %s184
    %p190 = scmp.eq.s32.totalorder %s15, 0
    %p191 = por %p189, %p190
    %p192 = scmp.ne.s32.totalorder %s181, %s184
    %p193 = scmp.eq.s32.totalorder %s20, 1
    %p194 = por %p192, %p193
    %p195 = scmp.ne.s32.totalorder %s184, %s185
    %p196 = scmp.eq.s32.totalorder %s20, 0
    %p197 = por %p195, %p196
    %p198 = scmp.ne.s32.totalorder %s184, %s185
    %p199 = scmp.eq.s32.totalorder %s21, 1
    %p200 = por %p198, %p199
    %p202 = scmp.ne.s32.totalorder %s185, %s201
    %p203 = scmp.eq.s32.totalorder %s21, 0
    %p204 = por %p202, %p203
    %s205 = ssub.s32 %s15, %s22
    %p206 = scmp.eq.s32.totalorder %s205, 0
    %s208 = sadd.s32 %s207, 1
    %s209 = scalar_select %p206, %s207, %s208
    %p212 = pneg %p206
    %p213 = scmp.eq.s32.totalorder %s15, 1
    %p214 = por %p212, %p213
    %p215 = scmp.ne.s32.totalorder %s207, %s210
    %p216 = scmp.eq.s32.totalorder %s15, 0
    %p217 = por %p215, %p216
    %p218 = scmp.ne.s32.totalorder %s207, %s210
    %p219 = scmp.eq.s32.totalorder %s20, 1
    %p220 = por %p218, %p219
    %p221 = scmp.ne.s32.totalorder %s210, %s211
    %p222 = scmp.eq.s32.totalorder %s20, 0
    %p223 = por %p221, %p222
    %p224 = scmp.ne.s32.totalorder %s210, %s211
    %p225 = scmp.eq.s32.totalorder %s21, 1
    %p226 = por %p224, %p225
    %p228 = scmp.ne.s32.totalorder %s211, %s227
    %p229 = scmp.eq.s32.totalorder %s21, 0
    %p230 = por %p228, %p229
    %s231 = ssub.s32 %s15, %s22
    %p232 = scmp.eq.s32.totalorder %s231, 0
    %s234 = sadd.s32 %s233, 1
    %s235 = scalar_select %p232, %s233, %s234
    %p238 = pneg %p232
    %p239 = scmp.eq.s32.totalorder %s15, 1
    %p240 = por %p238, %p239
    %p241 = scmp.ne.s32.totalorder %s233, %s236
    %p242 = scmp.eq.s32.totalorder %s15, 0
    %p243 = por %p241, %p242
    %p244 = scmp.ne.s32.totalorder %s233, %s236
    %p245 = scmp.eq.s32.totalorder %s20, 1
    %p246 = por %p244, %p245
    %p247 = scmp.ne.s32.totalorder %s236, %s237
    %p248 = scmp.eq.s32.totalorder %s20, 0
    %p249 = por %p247, %p248
    %p250 = scmp.ne.s32.totalorder %s236, %s237
    %p251 = scmp.eq.s32.totalorder %s21, 1
    %p252 = por %p250, %p251
    %p254 = scmp.ne.s32.totalorder %s237, %s253
    %p255 = scmp.eq.s32.totalorder %s21, 0
    %p256 = por %p254, %p255
    %s257 = ssub.s32 %s15, %s22
    %p258 = scmp.eq.s32.totalorder %s257, 0
    %s260 = sadd.s32 %s259, 1
    %s261 = scalar_select %p258, %s259, %s260
    %p264 = pneg %p258
    %p265 = scmp.eq.s32.totalorder %s15, 1
    %p266 = por %p264, %p265
    %p267 = scmp.ne.s32.totalorder %s259, %s262
    %p268 = scmp.eq.s32.totalorder %s15, 0
    %p269 = por %p267, %p268
    %p270 = scmp.ne.s32.totalorder %s259, %s262
    %p271 = scmp.eq.s32.totalorder %s20, 1
    %p272 = por %p270, %p271
    %p273 = scmp.ne.s32.totalorder %s262, %s263
    %p274 = scmp.eq.s32.totalorder %s20, 0
    %p275 = por %p273, %p274
    %p276 = scmp.ne.s32.totalorder %s262, %s263
    %p277 = scmp.eq.s32.totalorder %s21, 1
    %p278 = por %p276, %p277
    %p280 = scmp.ne.s32.totalorder %s263, %s279
    %p281 = scmp.eq.s32.totalorder %s21, 0
    %p282 = por %p280, %p281
    %p283 = scmp.le.s32.totalorder 1, %s15
    %p284 = scmp.lt.s32.totalorder %s15, 3
    %p285 = pnand %p283, %p284
    %p286 = pneg %p285
    // Predicated region
    $region9: #{en2_forward.5} parent=5 // pred_check
      _
    $region10: #{en2_forward.5} parent=5 // pred_check_branch
      %288 = sbr.rel (%p285) target = $region12
    $region11: #{en2_forward.5} parent=5 // pred_region
      %s289 = ssub.s32 %s15, 1
    $region12: #{en2_forward.5} parent=5 // pred_fallthru
      _
    %p290 = scmp.lt.s32.totalorder %s15, 2
    // Predicated region
    $region13: #{en2_forward.5} parent=5 // pred_check
      %p291 = pneg %p290
    $region14: #{en2_forward.5} parent=5 // pred_check_branch
      %293 = sbr.rel (%p291) target = $region16
    $region15: #{en2_forward.5} parent=5 // pred_region
      // Predicated region
      $region17: #{en2_forward.5} parent=15 // pred_check
        %p294 = pneg %p35
      $region18: #{en2_forward.5} parent=15 // pred_check_branch
        %296 = sbr.rel (%p294) target = $region20
      $region19: #{en2_forward.5} parent=15 // pred_region
        %p297 = scmp.lt.s32.totalorder %s15, 1
        %s298 = scalar_select %p297, %s15, 1
        %s299 = smul.addr %s298, 8
        %s300 = scalar_lea.vmem %s0, %s299
      $region20: #{en2_forward.5} parent=15 // pred_fallthru
        _
      // Predicated region
      $region21: #{en2_forward.5} parent=15 // pred_check
        %p301 = pneg %p61
      $region22: #{en2_forward.5} parent=15 // pred_check_branch
        %303 = sbr.rel (%p301) target = $region24
      $region23: #{en2_forward.5} parent=15 // pred_region
        %p304 = scmp.lt.s32.totalorder %s15, 1
        %s305 = scalar_select %p304, %s15, 1
        %s306 = smul.addr %s305, 8
        %s307 = scalar_lea.vmem %s1, %s306
      $region24: #{en2_forward.5} parent=15 // pred_fallthru
        _
      // Predicated region
      $region25: #{en2_forward.5} parent=15 // pred_check
        %p308 = pneg %p87
      $region26: #{en2_forward.5} parent=15 // pred_check_branch
        %310 = sbr.rel (%p308) target = $region28
      $region27: #{en2_forward.5} parent=15 // pred_region
        %p311 = scmp.lt.s32.totalorder %s15, 1
        %s312 = scalar_select %p311, %s15, 1
        %s313 = smul.addr %s312, 12
        %s314 = smul.addr %s313, 8
        %s315 = scalar_lea.vmem %s2, %s314
      $region28: #{en2_forward.5} parent=15 // pred_fallthru
        _
      // Predicated region
      $region29: #{en2_forward.5} parent=15 // pred_check
        %p316 = pneg %p113
      $region30: #{en2_forward.5} parent=15 // pred_check_branch
        %318 = sbr.rel (%p316) target = $region32
      $region31: #{en2_forward.5} parent=15 // pred_region
        %p319 = scmp.lt.s32.totalorder %s15, 1
        %s320 = scalar_select %p319, %s15, 1
        %s321 = scalar_lea.vmem %s3, %s320
      $region32: #{en2_forward.5} parent=15 // pred_fallthru
        _
      // Predicated region
      $region33: #{en2_forward.5} parent=15 // pred_check
        %p322 = pneg %p139
      $region34: #{en2_forward.5} parent=15 // pred_check_branch
        %324 = sbr.rel (%p322) target = $region36
      $region35: #{en2_forward.5} parent=15 // pred_region
        %p325 = scmp.lt.s32.totalorder %s15, 1
        %s326 = scalar_select %p325, %s15, 1
        %s327 = scalar_lea.vmem %s4, %s326
      $region36: #{en2_forward.5} parent=15 // pred_fallthru
        _
      // Predicated region
      $region37: #{en2_forward.5} parent=15 // pred_check
        %p328 = pneg %p165
      $region38: #{en2_forward.5} parent=15 // pred_check_branch
        %330 = sbr.rel (%p328) target = $region40
      $region39: #{en2_forward.5} parent=15 // pred_region
        %p331 = scmp.lt.s32.totalorder %s15, 1
        %s332 = scalar_select %p331, %s15, 1
        %s333 = smul.addr %s332, 12
        %s334 = smul.addr %s333, 8
        %s335 = scalar_lea.vmem %s5, %s334
      $region40: #{en2_forward.5} parent=15 // pred_fallthru
        _
      // Predicated region
      $region41: #{en2_forward.5} parent=15 // pred_check
        %p336 = pneg %p191
      $region42: #{en2_forward.5} parent=15 // pred_check_branch
        %338 = sbr.rel (%p336) target = $region44
      $region43: #{en2_forward.5} parent=15 // pred_region
        %p339 = scmp.lt.s32.totalorder %s15, 1
        %s340 = scalar_select %p339, %s15, 1
        %s341 = scalar_lea.vmem %s6, %s340
      $region44: #{en2_forward.5} parent=15 // pred_fallthru
        _
      // Predicated region
      $region45: #{en2_forward.5} parent=15 // pred_check
        %p342 = pneg %p217
      $region46: #{en2_forward.5} parent=15 // pred_check_branch
        %344 = sbr.rel (%p342) target = $region48
      $region47: #{en2_forward.5} parent=15 // pred_region
        %p345 = scmp.lt.s32.totalorder %s15, 1
        %s346 = scalar_select %p345, %s15, 1
        %s347 = scalar_lea.vmem %s7, %s346
      $region48: #{en2_forward.5} parent=15 // pred_fallthru
        _
      // Predicated region
      $region49: #{en2_forward.5} parent=15 // pred_check
        %p348 = pneg %p243
      $region50: #{en2_forward.5} parent=15 // pred_check_branch
        %350 = sbr.rel (%p348) target = $region52
      $region51: #{en2_forward.5} parent=15 // pred_region
        %p351 = scmp.lt.s32.totalorder %s15, 1
        %s352 = scalar_select %p351, %s15, 1
        %s353 = scalar_lea.vmem %s8, %s352
      $region52: #{en2_forward.5} parent=15 // pred_fallthru
        _
    $region16: #{en2_forward.5} parent=5 // pred_fallthru
      _
    %p354 = scmp.le.s32.totalorder 1, %s15
    %p355 = scmp.lt.s32.totalorder %s15, 3
    %p356 = pnand %p354, %p355
    %p357 = pneg %p356
    // Predicated region
    $region53: #{en2_forward.5} parent=5 // pred_check
      _
    $region54: #{en2_forward.5} parent=5 // pred_check_branch
      %359 = sbr.rel (%p356) target = $region56
    $region55: #{en2_forward.5} parent=5 // pred_region
      %s360 = ssub.s32 %s15, 1
      %p361 = scmp.lt.s32.totalorder %s20, 1
      %s362 = scalar_select %p361, %s20, 1
      %s363 = smul.addr %s362, 8
      %s364 = scalar_lea.vmem %s0, %s363
      %p365 = pneg %p41
      %p366 = pneg %p38
      %p367 = scmp.lt.s32.totalorder %s20, 1
      %s368 = scalar_select %p367, %s20, 1
      %s369 = smul.addr %s368, 8
      %s370 = scalar_lea.vmem %s1, %s369
      %p371 = pneg %p67
      %p372 = pneg %p64
      %p373 = scmp.lt.s32.totalorder %s20, 1
      %s374 = scalar_select %p373, %s20, 1
      %s375 = smul.addr %s374, 12
      %s376 = smul.addr %s375, 8
      %s377 = scalar_lea.vmem %s2, %s376
      %p378 = pneg %p93
      %p379 = pneg %p90
      %p380 = scmp.lt.s32.totalorder %s20, 1
      %s381 = scalar_select %p380, %s20, 1
      %s382 = scalar_lea.vmem %s3, %s381
      %p383 = pneg %p119
      %p384 = pneg %p116
      %p385 = scmp.lt.s32.totalorder %s20, 1
      %s386 = scalar_select %p385, %s20, 1
      %s387 = scalar_lea.vmem %s4, %s386
      %p388 = pneg %p145
      %p389 = pneg %p142
      %p390 = scmp.lt.s32.totalorder %s20, 1
      %s391 = scalar_select %p390, %s20, 1
      %s392 = smul.addr %s391, 12
      %s393 = smul.addr %s392, 8
      %s394 = scalar_lea.vmem %s5, %s393
      %p395 = pneg %p171
      %p396 = pneg %p168
      %p397 = scmp.lt.s32.totalorder %s20, 1
      %s398 = scalar_select %p397, %s20, 1
      %s399 = scalar_lea.vmem %s6, %s398
      %p400 = pneg %p197
      %p401 = pneg %p194
      %p402 = scmp.lt.s32.totalorder %s20, 1
      %s403 = scalar_select %p402, %s20, 1
      %s404 = scalar_lea.vmem %s7, %s403
      %p405 = pneg %p223
      %p406 = pneg %p220
      %p407 = scmp.lt.s32.totalorder %s20, 1
      %s408 = scalar_select %p407, %s20, 1
      %s409 = scalar_lea.vmem %s8, %s408
      %p410 = pneg %p249
      %p411 = pneg %p246
      %p412 = pneg %p275
      %p413 = pneg %p272
      %p414 = scmp.lt.s32.totalorder %s20, 1
      %s415 = scalar_select %p414, %s20, 1
      %s416 = smul.addr %s415, 8
      %s417 = scalar_lea.vmem %s9, %s416
      %p418 = scmp.lt.s32.totalorder %s20, 1
      %s419 = scalar_select %p418, %s20, 1
      %s420 = smul.addr %s419, 8
      %s421 = scalar_lea.vmem %s0, %s420
      %p422 = scmp.lt.s32.totalorder %s20, 1
      %s423 = scalar_select %p422, %s20, 1
      %s424 = smul.addr %s423, 8
      %s425 = scalar_lea.vmem %s1, %s424
      %p426 = scmp.lt.s32.totalorder %s20, 1
      %s427 = scalar_select %p426, %s20, 1
      %s428 = smul.addr %s427, 12
      %s429 = smul.addr %s428, 8
      %s430 = scalar_lea.vmem %s2, %s429
      %p431 = scmp.lt.s32.totalorder %s20, 1
      %s432 = scalar_select %p431, %s20, 1
      %s433 = scalar_lea.vmem %s3, %s432
      %p434 = scmp.lt.s32.totalorder %s20, 1
      %s435 = scalar_select %p434, %s20, 1
      %s436 = scalar_lea.vmem %s4, %s435
      %p437 = scmp.lt.s32.totalorder %s20, 1
      %s438 = scalar_select %p437, %s20, 1
      %s439 = smul.addr %s438, 12
      %s440 = smul.addr %s439, 8
      %s441 = scalar_lea.vmem %s5, %s440
      %p442 = scmp.lt.s32.totalorder %s20, 1
      %s443 = scalar_select %p442, %s20, 1
      %s444 = scalar_lea.vmem %s6, %s443
      %p445 = scmp.lt.s32.totalorder %s20, 1
      %s446 = scalar_select %p445, %s20, 1
      %s447 = scalar_lea.vmem %s7, %s446
      %p448 = scmp.lt.s32.totalorder %s20, 1
      %s449 = scalar_select %p448, %s20, 1
      %s450 = scalar_lea.vmem %s8, %s449
      %p451 = scmp.lt.s32.totalorder %s20, 1
      %s452 = scalar_select %p451, %s20, 1
      %s453 = smul.addr %s452, 8
      %s454 = scalar_lea.vmem %s9, %s453
      %v455 = vld [vmem:[%s421] sm:$0xff]
      %v456 = vld [vmem:[%s430] sm:$0xff]
      %v457 = vld [vmem:[%s430 + $0x8] sm:$0xff]
      %v458 = vld [vmem:[%s430 + $0x10] sm:$0xff]
      %v459 = vld [vmem:[%s430 + $0x18] sm:$0xff]
      %v460 = vld [vmem:[%s430 + $0x20] sm:$0xff]
      %v461 = vld [vmem:[%s430 + $0x28] sm:$0xff]
      %v462 = vld [vmem:[%s430 + $0x30] sm:$0xff]
      %v463 = vld [vmem:[%s430 + $0x38] sm:$0xff]
      %v464 = vld [vmem:[%s430 + $0x40] sm:$0xff]
      %v465 = vld [vmem:[%s430 + $0x48] sm:$0xff]
      %v466 = vld [vmem:[%s430 + $0x50] sm:$0xff]
      %v467 = vld [vmem:[%s430 + $0x58] sm:$0xff]
      %v468 = vld [vmem:[%s425] sm:$0xff]
      %vm469 = vcmask 785408
      %v471 = vsel %vm469, %v455, 0
      %v474 = vsel %vm469, %v456, 0
      %v477 = vsel %vm469, %v457, 0
      %v480 = vsel %vm469, %v458, 0
      %v483 = vsel %vm469, %v459, 0
      %v486 = vsel %vm469, %v460, 0
      %v489 = vsel %vm469, %v461, 0
      %v492 = vsel %vm469, %v462, 0
      %v495 = vsel %vm469, %v463, 0
      %v498 = vsel %vm469, %v464, 0
      %v501 = vsel %vm469, %v465, 0
      %v504 = vsel %vm469, %v466, 0
      %v507 = vsel %vm469, %v467, 0
      %509 = vmatprep.subr.mxu0 0.0
      %510 = vmatpush1.xpose.msra.mxu0 %v474
      %511 = vmatprep.subr.mxu0 0.0
      %512 = vmatpush1.xpose.msra.mxu0 %v477
      %513 = vmatprep.subr.mxu0 0.0
      %514 = vmatpush1.xpose.msra.mxu0 %v480
      %515 = vmatprep.subr.mxu0 0.0
      %516 = vmatpush1.xpose.msra.mxu0 %v483
      %517 = vmatprep.subr.mxu0 0.0
      %518 = vmatpush1.xpose.msra.mxu0 %v486
      %519 = vmatprep.subr.mxu0 0.0
      %520 = vmatpush1.xpose.msra.mxu0 %v489
      %521 = vmatprep.subr.mxu0 0.0
      %522 = vmatpush1.xpose.msra.mxu0 %v492
      %523 = vmatprep.subr.mxu0 0.0
      %524 = vmatpush1.xpose.msra.mxu0 %v495
      %525 = vmatprep.subr.mxu0 0.0
      %526 = vmatpush1.xpose.msra.mxu0 %v498
      %527 = vmatprep.subr.mxu0 0.0
      %528 = vmatpush1.xpose.msra.mxu0 %v501
      %529 = vmatprep.subr.mxu0 0.0
      %530 = vmatpush1.xpose.msra.mxu0 %v504
      %531 = vmatprep.subr.mxu0 0.0
      %532 = vmatpush1.xpose.msra.mxu0 %v507
      %533 = vmatprep.subr.mxu0 0.0
      %534 = vmatpush1.xpose.msra.mxu0 0.0
      %535 = vmatprep.subr.mxu0 0.0
      %536 = vmatpush1.xpose.msra.mxu0 0.0
      %537 = vmatprep.subr.mxu0 0.0
      %538 = vmatpush1.xpose.msra.mxu0 0.0
      %539 = vmatprep.subr.mxu0 0.0
      %540 = vmatpush1.xpose.msra.mxu0 0.0
      %541 = vmatprep.subr.mxu0 0.0
      %542 = vmatpush1.xpose.msra.mxu0 0.0
      %543 = vmatprep.subr.mxu0 0.0
      %544 = vmatpush1.xpose.msra.mxu0 0.0
      %545 = vmatprep.subr.mxu0 0.0
      %546 = vmatpush1.xpose.msra.mxu0 0.0
      %547 = vmatprep.subr.mxu0 0.0
      %548 = vmatpush1.xpose.msra.mxu0 0.0
      %549 = vmatprep.subr.mxu0 0.0
      %550 = vmatpush1.xpose.msra.mxu0 0.0
      %551 = vmatprep.subr.mxu0 0.0
      %552 = vmatpush1.xpose.msra.mxu0 0.0
      %553 = vmatprep.subr.mxu0 0.0
      %554 = vmatpush1.xpose.msra.mxu0 0.0
      %555 = vmatprep.subr.mxu0 0.0
      %556 = vmatpush1.xpose.msra.mxu0 0.0
      %557 = vmatprep.subr.mxu0 0.0
      %558 = vmatpush1.xpose.msra.mxu0 0.0
      %559 = vmatprep.subr.mxu0 0.0
      %560 = vmatpush1.xpose.msra.mxu0 0.0
      %561 = vmatprep.subr.mxu0 0.0
      %562 = vmatpush1.xpose.msra.mxu0 0.0
      %563 = vmatprep.subr.mxu0 0.0
      %564 = vmatpush1.xpose.msra.mxu0 0.0
      %565 = vmatprep.subr.mxu0 0.0
      %566 = vmatpush1.xpose.msra.mxu0 0.0
      %567 = vmatprep.subr.mxu0 0.0
      %568 = vmatpush1.xpose.msra.mxu0 0.0
      %569 = vmatprep.subr.mxu0 0.0
      %570 = vmatpush1.xpose.msra.mxu0 0.0
      %571 = vmatprep.subr.mxu0 0.0
      %572 = vmatpush1.xpose.msra.mxu0 0.0
      %573 = vmatprep.mubr.f32.mxu0 0.0
      %574 = vmatmul.mubr.f32.gmra.mrb[0].mxu0 %v471
      %v575 = vpop.f32.mrb[0].mxu0
      %v576 = vadd.f32 %v468, %v575
      %v577 = vpop.f32.mrb[0].mxu0
      %578 = vdwg.mxu0
      %v579 = vld [vmem:[%s433] sm:$0x1]
      %v580 = vld [vmem:[%s436] sm:$0x1]
      %v581 = vsel %vm469, %v576, 0.0
      %582 = vadd.xlane.f32.xlu0 %v581
      %v583 = vpop.xlane.xlu0 %582
      %v584 = vrcp.pop 96.0
      %v585 = vmul.f32 %v583, %v584
      %v586 = vsub.f32 %v576, %v585
      %v587 = vmul.f32 %v586, %v586
      %v588 = vsel %vm469, %v587, 0.0
      %589 = vadd.xlane.f32.xlu0 %v588
      %v590 = vpop.xlane.xlu0 %589
      %v591 = vmul.f32 %v590, %v584
      %v592 = vadd.f32 %v591, 1e-05
      %v593 = vrsqrt.pop %v592
      %v594 = vmul.f32 %v586, %v593
      %v596 = vlaneseq
      %v597 = vshrl.u32 %v596, 7
      %v598 = vsub.s32 0, %v597
      %v599 = vrot.slane %v579, %v598
      %v601 = vmul.f32 %v594, %v599
      %v603 = vlaneseq
      %v604 = vshrl.u32 %v603, 7
      %v605 = vsub.s32 0, %v604
      %v606 = vrot.slane %v580, %v605
      %v608 = vadd.f32 %v601, %v606
      %v609 = vld [vmem:[%s441] sm:$0xff]
      %v610 = vld [vmem:[%s441 + $0x8] sm:$0xff]
      %v611 = vld [vmem:[%s441 + $0x10] sm:$0xff]
      %v612 = vld [vmem:[%s441 + $0x18] sm:$0xff]
      %v613 = vld [vmem:[%s441 + $0x20] sm:$0xff]
      %v614 = vld [vmem:[%s441 + $0x28] sm:$0xff]
      %v615 = vld [vmem:[%s441 + $0x30] sm:$0xff]
      %v616 = vld [vmem:[%s441 + $0x38] sm:$0xff]
      %v617 = vld [vmem:[%s441 + $0x40] sm:$0xff]
      %v618 = vld [vmem:[%s441 + $0x48] sm:$0xff]
      %v619 = vld [vmem:[%s441 + $0x50] sm:$0xff]
      %v620 = vld [vmem:[%s441 + $0x58] sm:$0xff]
      %v621 = vld [vmem:[%s444] sm:$0x1]
      %v623 = vlaneseq
      %v624 = vshrl.u32 %v623, 7
      %v625 = vsub.s32 0, %v624
      %v626 = vrot.slane %v621, %v625
      %v629 = vsel %vm469, %v608, 0
      %v632 = vsel %vm469, %v609, 0
      %v635 = vsel %vm469, %v610, 0
      %v638 = vsel %vm469, %v611, 0
      %v641 = vsel %vm469, %v612, 0
      %v644 = vsel %vm469, %v613, 0
      %v647 = vsel %vm469, %v614, 0
      %v650 = vsel %vm469, %v615, 0
      %v653 = vsel %vm469, %v616, 0
      %v656 = vsel %vm469, %v617, 0
      %v659 = vsel %vm469, %v618, 0
      %v662 = vsel %vm469, %v619, 0
      %v665 = vsel %vm469, %v620, 0
      %667 = vmatprep.subr.mxu0 0.0
      %668 = vmatpush1.xpose.msra.mxu0 %v632
      %669 = vmatprep.subr.mxu0 0.0
      %670 = vmatpush1.xpose.msra.mxu0 %v635
      %671 = vmatprep.subr.mxu0 0.0
      %672 = vmatpush1.xpose.msra.mxu0 %v638
      %673 = vmatprep.subr.mxu0 0.0
      %674 = vmatpush1.xpose.msra.mxu0 %v641
      %675 = vmatprep.subr.mxu0 0.0
      %676 = vmatpush1.xpose.msra.mxu0 %v644
      %677 = vmatprep.subr.mxu0 0.0
      %678 = vmatpush1.xpose.msra.mxu0 %v647
      %679 = vmatprep.subr.mxu0 0.0
      %680 = vmatpush1.xpose.msra.mxu0 %v650
      %681 = vmatprep.subr.mxu0 0.0
      %682 = vmatpush1.xpose.msra.mxu0 %v653
      %683 = vmatprep.subr.mxu0 0.0
      %684 = vmatpush1.xpose.msra.mxu0 %v656
      %685 = vmatprep.subr.mxu0 0.0
      %686 = vmatpush1.xpose.msra.mxu0 %v659
      %687 = vmatprep.subr.mxu0 0.0
      %688 = vmatpush1.xpose.msra.mxu0 %v662
      %689 = vmatprep.subr.mxu0 0.0
      %690 = vmatpush1.xpose.msra.mxu0 %v665
      %691 = vmatprep.subr.mxu0 0.0
      %692 = vmatpush1.xpose.msra.mxu0 0.0
      %693 = vmatprep.subr.mxu0 0.0
      %694 = vmatpush1.xpose.msra.mxu0 0.0
      %695 = vmatprep.subr.mxu0 0.0
      %696 = vmatpush1.xpose.msra.mxu0 0.0
      %697 = vmatprep.subr.mxu0 0.0
      %698 = vmatpush1.xpose.msra.mxu0 0.0
      %699 = vmatprep.subr.mxu0 0.0
      %700 = vmatpush1.xpose.msra.mxu0 0.0
      %701 = vmatprep.subr.mxu0 0.0
      %702 = vmatpush1.xpose.msra.mxu0 0.0
      %703 = vmatprep.subr.mxu0 0.0
      %704 = vmatpush1.xpose.msra.mxu0 0.0
      %705 = vmatprep.subr.mxu0 0.0
      %706 = vmatpush1.xpose.msra.mxu0 0.0
      %707 = vmatprep.subr.mxu0 0.0
      %708 = vmatpush1.xpose.msra.mxu0 0.0
      %709 = vmatprep.subr.mxu0 0.0
      %710 = vmatpush1.xpose.msra.mxu0 0.0
      %711 = vmatprep.subr.mxu0 0.0
      %712 = vmatpush1.xpose.msra.mxu0 0.0
      %713 = vmatprep.subr.mxu0 0.0
      %714 = vmatpush1.xpose.msra.mxu0 0.0
      %715 = vmatprep.subr.mxu0 0.0
      %716 = vmatpush1.xpose.msra.mxu0 0.0
      %717 = vmatprep.subr.mxu0 0.0
      %718 = vmatpush1.xpose.msra.mxu0 0.0
      %719 = vmatprep.subr.mxu0 0.0
      %720 = vmatpush1.xpose.msra.mxu0 0.0
      %721 = vmatprep.subr.mxu0 0.0
      %722 = vmatpush1.xpose.msra.mxu0 0.0
      %723 = vmatprep.subr.mxu0 0.0
      %724 = vmatpush1.xpose.msra.mxu0 0.0
      %725 = vmatprep.subr.mxu0 0.0
      %726 = vmatpush1.xpose.msra.mxu0 0.0
      %727 = vmatprep.subr.mxu0 0.0
      %728 = vmatpush1.xpose.msra.mxu0 0.0
      %729 = vmatprep.subr.mxu0 0.0
      %730 = vmatpush1.xpose.msra.mxu0 0.0
      %731 = vmatprep.mubr.f32.mxu0 0.0
      %732 = vmatmul.mubr.f32.gmra.mrb[0].mxu0 %v629
      %v733 = vpop.f32.mrb[0].mxu0
      %v734 = vadd.f32 %v626, %v733
      %v735 = vpop.f32.mrb[0].mxu0
      %736 = vdwg.mxu0
      %v737 = vadd.f32 %v734, %v608
      %v738 = vld [vmem:[%s447] sm:$0x1]
      %v739 = vld [vmem:[%s450] sm:$0x1]
      %v740 = vsel %vm469, %v737, 0.0
      %741 = vadd.xlane.f32.xlu0 %v740
      %v742 = vpop.xlane.xlu0 %741
      %v743 = vmul.f32 %v742, %v584
      %v744 = vsub.f32 %v737, %v743
      %v745 = vmul.f32 %v744, %v744
      %v746 = vsel %vm469, %v745, 0.0
      %747 = vadd.xlane.f32.xlu0 %v746
      %v748 = vpop.xlane.xlu0 %747
      %v749 = vmul.f32 %v748, %v584
      %v750 = vadd.f32 %v749, 1e-05
      %v751 = vrsqrt.pop %v750
      %v752 = vmul.f32 %v744, %v751
      %v754 = vlaneseq
      %v755 = vshrl.u32 %v754, 7
      %v756 = vsub.s32 0, %v755
      %v757 = vrot.slane %v738, %v756
      %v759 = vmul.f32 %v752, %v757
      %v761 = vlaneseq
      %v762 = vshrl.u32 %v761, 7
      %v763 = vsub.s32 0, %v762
      %v764 = vrot.slane %v739, %v763
      %v766 = vadd.f32 %v759, %v764
      %767 = vst.msk [vmem:[%s454] sm:$0xff] %vm469, %v766
      %p768 = scmp.lt.s32.totalorder %s20, 1
      %s769 = scalar_select %p768, %s20, 1
      %s770 = smul.addr %s769, 8
      %s771 = scalar_lea.vmem %s9, %s770
      // Predicated region
      $region57: #{en2_forward.5} parent=55 // pred_check
        %p772 = pneg %p272
      $region58: #{en2_forward.5} parent=55 // pred_check_branch
        %774 = sbr.rel (%p772) target = $region60
      $region59: #{en2_forward.5} parent=55 // pred_region
        _
      $region60: #{en2_forward.5} parent=55 // pred_fallthru
        _
    $region56: #{en2_forward.5} parent=5 // pred_fallthru
      _
    %p775 = scmp.le.s32.totalorder 2, %s15
    // Predicated region
    $region61: #{en2_forward.5} parent=5 // pred_check
      %p776 = pneg %p775
    $region62: #{en2_forward.5} parent=5 // pred_check_branch
      %778 = sbr.rel (%p776) target = $region64
    $region63: #{en2_forward.5} parent=5 // pred_region
      %s779 = ssub.s32 %s15, 2
      // Predicated region
      $region65: #{en2_forward.5} parent=63 // pred_check
        %p780 = pneg %p278
      $region66: #{en2_forward.5} parent=63 // pred_check_branch
        %782 = sbr.rel (%p780) target = $region68
      $region67: #{en2_forward.5} parent=63 // pred_region
        %p783 = scmp.lt.s32.totalorder %s21, 1
        %s784 = scalar_select %p783, %s21, 1
        %s785 = smul.addr %s784, 8
        %s786 = scalar_lea.vmem %s9, %s785
      $region68: #{en2_forward.5} parent=63 // pred_fallthru
        _
    $region64: #{en2_forward.5} parent=5 // pred_fallthru
      _
  $region6: #{en2_forward.5} parent=0 // loop_footer
    %s19 = sadd.s32 1, %s15
  $region7: #{en2_forward.5} parent=0 // loop_footer_branch
    %14 = sbr.rel target = $region3
  $region8: #{en2_forward.5} parent=0 // loop_exit
    _

// kernel: en2_forward.4
$region0: #{en2_forward.4}
  #allocation0 [shape = 'u32[]', space=smem, size = 0x4, offset = 0x4, fixed_abs, tag = 'smem constant byte address 0x4 - core index']
  #allocation1 [shape = 'u32[144,128]{1,0:T(1,128)}', space=vmem, size = 0x12000, scoped, tag = 'internal scratch']
  #allocation2 [shape = 'f32[8,288]{1,0:T(8,128)}', space=vmem, size = 0x3000, scoped, tag = 'scratch operand']
  %s0 = inlined_call_operand.vmem [shape: f32[2,8,32], index: 0, kind: input, shape index: {}]
  %s1 = inlined_call_operand.vmem [shape: f32[2,96,32], index: 1, kind: input, shape index: {}]
  %s2 = inlined_call_operand.vmem [shape: f32[2,1,96], index: 2, kind: input, shape index: {}]
  %s3 = inlined_call_operand.vmem [shape: f32[2,1,96], index: 3, kind: input, shape index: {}]
  %s4 = inlined_call_operand.vmem [shape: f32[2,1,96], index: 4, kind: input, shape index: {}]
  %s5 = inlined_call_operand.vmem [shape: f32[2,1,96], index: 5, kind: input, shape index: {}]
  %s6 = inlined_call_operand.vmem [shape: f32[2,1,96], index: 6, kind: input, shape index: {}]
  %s7 = inlined_call_operand.vmem [shape: f32[2,288,96], index: 7, kind: input, shape index: {}]
  %s8 = inlined_call_operand.vmem [shape: f32[2,3,8,32], index: 8, kind: output, shape index: {0}]
  %s9 = inlined_call_operand.vmem [shape: f32[2,8,96], index: 9, kind: output, shape index: {1}]
  %10 = xla_tuple %s8, %s9
  %s11 = sld [smem:[#allocation0]]
  $region73: #{en2_forward.4} parent=0
    _
  %s13 = ssub.s32 1, %s11
  %s14 = scalar_select 0, %s13, %s11
  loop: start=0, step=1, limit=4
  $region2: #{en2_forward.4} parent=0 // loop_pre_header
    _
  $region3: #{en2_forward.4} parent=0 // loop_header
    %s16 = sphi 0, %s20
    %p17 = scmp.ge.s32.totalorder %s16, 4
    %s26 = sphi 0, %s28
    %s29 = sphi 0, %s26
    %s30 = sphi 0, %s29
    %s46 = sphi 0, %s30
    %s52 = sphi 0, %s54
    %s55 = sphi 0, %s52
    %s56 = sphi 0, %s55
    %s72 = sphi 0, %s56
    %s78 = sphi 0, %s80
    %s81 = sphi 0, %s78
    %s82 = sphi 0, %s81
    %s98 = sphi 0, %s82
    %s104 = sphi 0, %s106
    %s107 = sphi 0, %s104
    %s108 = sphi 0, %s107
    %s124 = sphi 0, %s108
    %s130 = sphi 0, %s132
    %s133 = sphi 0, %s130
    %s134 = sphi 0, %s133
    %s150 = sphi 0, %s134
    %s156 = sphi 0, %s158
    %s159 = sphi 0, %s156
    %s160 = sphi 0, %s159
    %s176 = sphi 0, %s160
    %s182 = sphi 0, %s184
    %s185 = sphi 0, %s182
    %s186 = sphi 0, %s185
    %s202 = sphi 0, %s186
    %s208 = sphi 0, %s210
    %s211 = sphi 0, %s208
    %s212 = sphi 0, %s211
    %s228 = sphi 0, %s212
    %s234 = sphi 0, %s236
    %s237 = sphi 0, %s234
    %s238 = sphi 0, %s237
    %s254 = sphi 0, %s238
    %s260 = sphi 0, %s262
    %s263 = sphi 0, %s260
    %s264 = sphi 0, %s263
    %s280 = sphi 0, %s264
  $region4: #{en2_forward.4} parent=0 // loop_header_branch
    %19 = sbr.rel (%p17) target = $region8
  $region5: #{en2_forward.4} parent=0 // loop_body
    %s21 = ssub.s32 %s16, 1
    %s22 = ssub.s32 %s16, 2
    %s23 = sadd.s32 %s16, 1
    %s24 = ssub.s32 %s16, %s23
    %p25 = scmp.eq.s32.totalorder %s24, 0
    %s27 = sadd.s32 %s26, 1
    %s28 = scalar_select %p25, %s26, %s27
    %p31 = pneg %p25
    %p32 = scmp.eq.s32.totalorder %s16, 1
    %p33 = por %p31, %p32
    %p34 = scmp.ne.s32.totalorder %s26, %s29
    %p35 = scmp.eq.s32.totalorder %s16, 0
    %p36 = por %p34, %p35
    %p37 = scmp.ne.s32.totalorder %s26, %s29
    %p38 = scmp.eq.s32.totalorder %s21, 1
    %p39 = por %p37, %p38
    %p40 = scmp.ne.s32.totalorder %s29, %s30
    %p41 = scmp.eq.s32.totalorder %s21, 0
    %p42 = por %p40, %p41
    %p43 = scmp.ne.s32.totalorder %s29, %s30
    %p44 = scmp.eq.s32.totalorder %s22, 1
    %p45 = por %p43, %p44
    %p47 = scmp.ne.s32.totalorder %s30, %s46
    %p48 = scmp.eq.s32.totalorder %s22, 0
    %p49 = por %p47, %p48
    %s50 = ssub.s32 %s16, %s23
    %p51 = scmp.eq.s32.totalorder %s50, 0
    %s53 = sadd.s32 %s52, 1
    %s54 = scalar_select %p51, %s52, %s53
    %p57 = pneg %p51
    %p58 = scmp.eq.s32.totalorder %s16, 1
    %p59 = por %p57, %p58
    %p60 = scmp.ne.s32.totalorder %s52, %s55
    %p61 = scmp.eq.s32.totalorder %s16, 0
    %p62 = por %p60, %p61
    %p63 = scmp.ne.s32.totalorder %s52, %s55
    %p64 = scmp.eq.s32.totalorder %s21, 1
    %p65 = por %p63, %p64
    %p66 = scmp.ne.s32.totalorder %s55, %s56
    %p67 = scmp.eq.s32.totalorder %s21, 0
    %p68 = por %p66, %p67
    %p69 = scmp.ne.s32.totalorder %s55, %s56
    %p70 = scmp.eq.s32.totalorder %s22, 1
    %p71 = por %p69, %p70
    %p73 = scmp.ne.s32.totalorder %s56, %s72
    %p74 = scmp.eq.s32.totalorder %s22, 0
    %p75 = por %p73, %p74
    %s76 = ssub.s32 %s16, %s23
    %p77 = scmp.eq.s32.totalorder %s76, 0
    %s79 = sadd.s32 %s78, 1
    %s80 = scalar_select %p77, %s78, %s79
    %p83 = pneg %p77
    %p84 = scmp.eq.s32.totalorder %s16, 1
    %p85 = por %p83, %p84
    %p86 = scmp.ne.s32.totalorder %s78, %s81
    %p87 = scmp.eq.s32.totalorder %s16, 0
    %p88 = por %p86, %p87
    %p89 = scmp.ne.s32.totalorder %s78, %s81
    %p90 = scmp.eq.s32.totalorder %s21, 1
    %p91 = por %p89, %p90
    %p92 = scmp.ne.s32.totalorder %s81, %s82
    %p93 = scmp.eq.s32.totalorder %s21, 0
    %p94 = por %p92, %p93
    %p95 = scmp.ne.s32.totalorder %s81, %s82
    %p96 = scmp.eq.s32.totalorder %s22, 1
    %p97 = por %p95, %p96
    %p99 = scmp.ne.s32.totalorder %s82, %s98
    %p100 = scmp.eq.s32.totalorder %s22, 0
    %p101 = por %p99, %p100
    %s102 = ssub.s32 %s16, %s23
    %p103 = scmp.eq.s32.totalorder %s102, 0
    %s105 = sadd.s32 %s104, 1
    %s106 = scalar_select %p103, %s104, %s105
    %p109 = pneg %p103
    %p110 = scmp.eq.s32.totalorder %s16, 1
    %p111 = por %p109, %p110
    %p112 = scmp.ne.s32.totalorder %s104, %s107
    %p113 = scmp.eq.s32.totalorder %s16, 0
    %p114 = por %p112, %p113
    %p115 = scmp.ne.s32.totalorder %s104, %s107
    %p116 = scmp.eq.s32.totalorder %s21, 1
    %p117 = por %p115, %p116
    %p118 = scmp.ne.s32.totalorder %s107, %s108
    %p119 = scmp.eq.s32.totalorder %s21, 0
    %p120 = por %p118, %p119
    %p121 = scmp.ne.s32.totalorder %s107, %s108
    %p122 = scmp.eq.s32.totalorder %s22, 1
    %p123 = por %p121, %p122
    %p125 = scmp.ne.s32.totalorder %s108, %s124
    %p126 = scmp.eq.s32.totalorder %s22, 0
    %p127 = por %p125, %p126
    %s128 = ssub.s32 %s16, %s23
    %p129 = scmp.eq.s32.totalorder %s128, 0
    %s131 = sadd.s32 %s130, 1
    %s132 = scalar_select %p129, %s130, %s131
    %p135 = pneg %p129
    %p136 = scmp.eq.s32.totalorder %s16, 1
    %p137 = por %p135, %p136
    %p138 = scmp.ne.s32.totalorder %s130, %s133
    %p139 = scmp.eq.s32.totalorder %s16, 0
    %p140 = por %p138, %p139
    %p141 = scmp.ne.s32.totalorder %s130, %s133
    %p142 = scmp.eq.s32.totalorder %s21, 1
    %p143 = por %p141, %p142
    %p144 = scmp.ne.s32.totalorder %s133, %s134
    %p145 = scmp.eq.s32.totalorder %s21, 0
    %p146 = por %p144, %p145
    %p147 = scmp.ne.s32.totalorder %s133, %s134
    %p148 = scmp.eq.s32.totalorder %s22, 1
    %p149 = por %p147, %p148
    %p151 = scmp.ne.s32.totalorder %s134, %s150
    %p152 = scmp.eq.s32.totalorder %s22, 0
    %p153 = por %p151, %p152
    %s154 = ssub.s32 %s16, %s23
    %p155 = scmp.eq.s32.totalorder %s154, 0
    %s157 = sadd.s32 %s156, 1
    %s158 = scalar_select %p155, %s156, %s157
    %p161 = pneg %p155
    %p162 = scmp.eq.s32.totalorder %s16, 1
    %p163 = por %p161, %p162
    %p164 = scmp.ne.s32.totalorder %s156, %s159
    %p165 = scmp.eq.s32.totalorder %s16, 0
    %p166 = por %p164, %p165
    %p167 = scmp.ne.s32.totalorder %s156, %s159
    %p168 = scmp.eq.s32.totalorder %s21, 1
    %p169 = por %p167, %p168
    %p170 = scmp.ne.s32.totalorder %s159, %s160
    %p171 = scmp.eq.s32.totalorder %s21, 0
    %p172 = por %p170, %p171
    %p173 = scmp.ne.s32.totalorder %s159, %s160
    %p174 = scmp.eq.s32.totalorder %s22, 1
    %p175 = por %p173, %p174
    %p177 = scmp.ne.s32.totalorder %s160, %s176
    %p178 = scmp.eq.s32.totalorder %s22, 0
    %p179 = por %p177, %p178
    %s180 = ssub.s32 %s16, %s23
    %p181 = scmp.eq.s32.totalorder %s180, 0
    %s183 = sadd.s32 %s182, 1
    %s184 = scalar_select %p181, %s182, %s183
    %p187 = pneg %p181
    %p188 = scmp.eq.s32.totalorder %s16, 1
    %p189 = por %p187, %p188
    %p190 = scmp.ne.s32.totalorder %s182, %s185
    %p191 = scmp.eq.s32.totalorder %s16, 0
    %p192 = por %p190, %p191
    %p193 = scmp.ne.s32.totalorder %s182, %s185
    %p194 = scmp.eq.s32.totalorder %s21, 1
    %p195 = por %p193, %p194
    %p196 = scmp.ne.s32.totalorder %s185, %s186
    %p197 = scmp.eq.s32.totalorder %s21, 0
    %p198 = por %p196, %p197
    %p199 = scmp.ne.s32.totalorder %s185, %s186
    %p200 = scmp.eq.s32.totalorder %s22, 1
    %p201 = por %p199, %p200
    %p203 = scmp.ne.s32.totalorder %s186, %s202
    %p204 = scmp.eq.s32.totalorder %s22, 0
    %p205 = por %p203, %p204
    %s206 = ssub.s32 %s16, %s23
    %p207 = scmp.eq.s32.totalorder %s206, 0
    %s209 = sadd.s32 %s208, 1
    %s210 = scalar_select %p207, %s208, %s209
    %p213 = pneg %p207
    %p214 = scmp.eq.s32.totalorder %s16, 1
    %p215 = por %p213, %p214
    %p216 = scmp.ne.s32.totalorder %s208, %s211
    %p217 = scmp.eq.s32.totalorder %s16, 0
    %p218 = por %p216, %p217
    %p219 = scmp.ne.s32.totalorder %s208, %s211
    %p220 = scmp.eq.s32.totalorder %s21, 1
    %p221 = por %p219, %p220
    %p222 = scmp.ne.s32.totalorder %s211, %s212
    %p223 = scmp.eq.s32.totalorder %s21, 0
    %p224 = por %p222, %p223
    %p225 = scmp.ne.s32.totalorder %s211, %s212
    %p226 = scmp.eq.s32.totalorder %s22, 1
    %p227 = por %p225, %p226
    %p229 = scmp.ne.s32.totalorder %s212, %s228
    %p230 = scmp.eq.s32.totalorder %s22, 0
    %p231 = por %p229, %p230
    %s232 = ssub.s32 %s16, %s23
    %p233 = scmp.eq.s32.totalorder %s232, 0
    %s235 = sadd.s32 %s234, 1
    %s236 = scalar_select %p233, %s234, %s235
    %p239 = pneg %p233
    %p240 = scmp.eq.s32.totalorder %s16, 1
    %p241 = por %p239, %p240
    %p242 = scmp.ne.s32.totalorder %s234, %s237
    %p243 = scmp.eq.s32.totalorder %s16, 0
    %p244 = por %p242, %p243
    %p245 = scmp.ne.s32.totalorder %s234, %s237
    %p246 = scmp.eq.s32.totalorder %s21, 1
    %p247 = por %p245, %p246
    %p248 = scmp.ne.s32.totalorder %s237, %s238
    %p249 = scmp.eq.s32.totalorder %s21, 0
    %p250 = por %p248, %p249
    %p251 = scmp.ne.s32.totalorder %s237, %s238
    %p252 = scmp.eq.s32.totalorder %s22, 1
    %p253 = por %p251, %p252
    %p255 = scmp.ne.s32.totalorder %s238, %s254
    %p256 = scmp.eq.s32.totalorder %s22, 0
    %p257 = por %p255, %p256
    %s258 = ssub.s32 %s16, %s23
    %p259 = scmp.eq.s32.totalorder %s258, 0
    %s261 = sadd.s32 %s260, 1
    %s262 = scalar_select %p259, %s260, %s261
    %p265 = pneg %p259
    %p266 = scmp.eq.s32.totalorder %s16, 1
    %p267 = por %p265, %p266
    %p268 = scmp.ne.s32.totalorder %s260, %s263
    %p269 = scmp.eq.s32.totalorder %s16, 0
    %p270 = por %p268, %p269
    %p271 = scmp.ne.s32.totalorder %s260, %s263
    %p272 = scmp.eq.s32.totalorder %s21, 1
    %p273 = por %p271, %p272
    %p274 = scmp.ne.s32.totalorder %s263, %s264
    %p275 = scmp.eq.s32.totalorder %s21, 0
    %p276 = por %p274, %p275
    %p277 = scmp.ne.s32.totalorder %s263, %s264
    %p278 = scmp.eq.s32.totalorder %s22, 1
    %p279 = por %p277, %p278
    %p281 = scmp.ne.s32.totalorder %s264, %s280
    %p282 = scmp.eq.s32.totalorder %s22, 0
    %p283 = por %p281, %p282
    %p284 = scmp.le.s32.totalorder 1, %s16
    %p285 = scmp.lt.s32.totalorder %s16, 3
    %p286 = pnand %p284, %p285
    %p287 = pneg %p286
    // Predicated region
    $region9: #{en2_forward.4} parent=5 // pred_check
      _
    $region10: #{en2_forward.4} parent=5 // pred_check_branch
      %289 = sbr.rel (%p286) target = $region12
    $region11: #{en2_forward.4} parent=5 // pred_region
      %s290 = ssub.s32 %s16, 1
    $region12: #{en2_forward.4} parent=5 // pred_fallthru
      _
    %p291 = scmp.lt.s32.totalorder %s16, 2
    // Predicated region
    $region13: #{en2_forward.4} parent=5 // pred_check
      %p292 = pneg %p291
    $region14: #{en2_forward.4} parent=5 // pred_check_branch
      %294 = sbr.rel (%p292) target = $region16
    $region15: #{en2_forward.4} parent=5 // pred_region
      // Predicated region
      $region17: #{en2_forward.4} parent=15 // pred_check
        %p295 = pneg %p36
      $region18: #{en2_forward.4} parent=15 // pred_check_branch
        %297 = sbr.rel (%p295) target = $region20
      $region19: #{en2_forward.4} parent=15 // pred_region
        %p298 = scmp.lt.s32.totalorder %s16, 1
        %s299 = scalar_select %p298, %s16, 1
        %s300 = smul.addr %s299, 8
        %s301 = scalar_lea.vmem %s0, %s300
      $region20: #{en2_forward.4} parent=15 // pred_fallthru
        _
      // Predicated region
      $region21: #{en2_forward.4} parent=15 // pred_check
        %p302 = pneg %p62
      $region22: #{en2_forward.4} parent=15 // pred_check_branch
        %304 = sbr.rel (%p302) target = $region24
      $region23: #{en2_forward.4} parent=15 // pred_region
        %p305 = scmp.lt.s32.totalorder %s16, 1
        %s306 = scalar_select %p305, %s16, 1
        %s307 = smul.addr %s306, 12
        %s308 = smul.addr %s307, 8
        %s309 = scalar_lea.vmem %s1, %s308
      $region24: #{en2_forward.4} parent=15 // pred_fallthru
        _
      // Predicated region
      $region25: #{en2_forward.4} parent=15 // pred_check
        %p310 = pneg %p88
      $region26: #{en2_forward.4} parent=15 // pred_check_branch
        %312 = sbr.rel (%p310) target = $region28
      $region27: #{en2_forward.4} parent=15 // pred_region
        %p313 = scmp.lt.s32.totalorder %s16, 1
        %s314 = scalar_select %p313, %s16, 1
        %s315 = scalar_lea.vmem %s2, %s314
      $region28: #{en2_forward.4} parent=15 // pred_fallthru
        _
      // Predicated region
      $region29: #{en2_forward.4} parent=15 // pred_check
        %p316 = pneg %p114
      $region30: #{en2_forward.4} parent=15 // pred_check_branch
        %318 = sbr.rel (%p316) target = $region32
      $region31: #{en2_forward.4} parent=15 // pred_region
        %p319 = scmp.lt.s32.totalorder %s16, 1
        %s320 = scalar_select %p319, %s16, 1
        %s321 = scalar_lea.vmem %s3, %s320
      $region32: #{en2_forward.4} parent=15 // pred_fallthru
        _
      // Predicated region
      $region33: #{en2_forward.4} parent=15 // pred_check
        %p322 = pneg %p140
      $region34: #{en2_forward.4} parent=15 // pred_check_branch
        %324 = sbr.rel (%p322) target = $region36
      $region35: #{en2_forward.4} parent=15 // pred_region
        %p325 = scmp.lt.s32.totalorder %s16, 1
        %s326 = scalar_select %p325, %s16, 1
        %s327 = scalar_lea.vmem %s4, %s326
      $region36: #{en2_forward.4} parent=15 // pred_fallthru
        _
      // Predicated region
      $region37: #{en2_forward.4} parent=15 // pred_check
        %p328 = pneg %p166
      $region38: #{en2_forward.4} parent=15 // pred_check_branch
        %330 = sbr.rel (%p328) target = $region40
      $region39: #{en2_forward.4} parent=15 // pred_region
        %p331 = scmp.lt.s32.totalorder %s16, 1
        %s332 = scalar_select %p331, %s16, 1
        %s333 = scalar_lea.vmem %s5, %s332
      $region40: #{en2_forward.4} parent=15 // pred_fallthru
        _
      // Predicated region
      $region41: #{en2_forward.4} parent=15 // pred_check
        %p334 = pneg %p192
      $region42: #{en2_forward.4} parent=15 // pred_check_branch
        %336 = sbr.rel (%p334) target = $region44
      $region43: #{en2_forward.4} parent=15 // pred_region
        %p337 = scmp.lt.s32.totalorder %s16, 1
        %s338 = scalar_select %p337, %s16, 1
        %s339 = scalar_lea.vmem %s6, %s338
      $region44: #{en2_forward.4} parent=15 // pred_fallthru
        _
      // Predicated region
      $region45: #{en2_forward.4} parent=15 // pred_check
        %p340 = pneg %p218
      $region46: #{en2_forward.4} parent=15 // pred_check_branch
        %342 = sbr.rel (%p340) target = $region48
      $region47: #{en2_forward.4} parent=15 // pred_region
        %p343 = scmp.lt.s32.totalorder %s16, 1
        %s344 = scalar_select %p343, %s16, 1
        %s345 = smul.addr %s344, 36
        %s346 = smul.addr %s345, 8
        %s347 = scalar_lea.vmem %s7, %s346
      $region48: #{en2_forward.4} parent=15 // pred_fallthru
        _
    $region16: #{en2_forward.4} parent=5 // pred_fallthru
      _
    %p348 = scmp.le.s32.totalorder 1, %s16
    %p349 = scmp.lt.s32.totalorder %s16, 3
    %p350 = pnand %p348, %p349
    %p351 = pneg %p350
    // Predicated region
    $region49: #{en2_forward.4} parent=5 // pred_check
      _
    $region50: #{en2_forward.4} parent=5 // pred_check_branch
      %353 = sbr.rel (%p350) target = $region52
    $region51: #{en2_forward.4} parent=5 // pred_region
      %s354 = ssub.s32 %s16, 1
      %p355 = scmp.lt.s32.totalorder %s21, 1
      %s356 = scalar_select %p355, %s21, 1
      %s357 = smul.addr %s356, 8
      %s358 = scalar_lea.vmem %s0, %s357
      %p359 = pneg %p42
      %p360 = pneg %p39
      %p361 = scmp.lt.s32.totalorder %s21, 1
      %s362 = scalar_select %p361, %s21, 1
      %s363 = smul.addr %s362, 12
      %s364 = smul.addr %s363, 8
      %s365 = scalar_lea.vmem %s1, %s364
      %p366 = pneg %p68
      %p367 = pneg %p65
      %p368 = scmp.lt.s32.totalorder %s21, 1
      %s369 = scalar_select %p368, %s21, 1
      %s370 = scalar_lea.vmem %s2, %s369
      %p371 = pneg %p94
      %p372 = pneg %p91
      %p373 = scmp.lt.s32.totalorder %s21, 1
      %s374 = scalar_select %p373, %s21, 1
      %s375 = scalar_lea.vmem %s3, %s374
      %p376 = pneg %p120
      %p377 = pneg %p117
      %p378 = scmp.lt.s32.totalorder %s21, 1
      %s379 = scalar_select %p378, %s21, 1
      %s380 = scalar_lea.vmem %s4, %s379
      %p381 = pneg %p146
      %p382 = pneg %p143
      %p383 = scmp.lt.s32.totalorder %s21, 1
      %s384 = scalar_select %p383, %s21, 1
      %s385 = scalar_lea.vmem %s5, %s384
      %p386 = pneg %p172
      %p387 = pneg %p169
      %p388 = scmp.lt.s32.totalorder %s21, 1
      %s389 = scalar_select %p388, %s21, 1
      %s390 = scalar_lea.vmem %s6, %s389
      %p391 = pneg %p198
      %p392 = pneg %p195
      %p393 = scmp.lt.s32.totalorder %s21, 1
      %s394 = scalar_select %p393, %s21, 1
      %s395 = smul.addr %s394, 36
      %s396 = smul.addr %s395, 8
      %s397 = scalar_lea.vmem %s7, %s396
      %p398 = pneg %p224
      %p399 = pneg %p221
      %p400 = pneg %p250
      %p401 = pneg %p247
      %p402 = scmp.lt.s32.totalorder %s21, 1
      %s403 = scalar_select %p402, %s21, 1
      %s404 = smul.addr %s403, 3
      %s405 = smul.addr %s404, 8
      %s406 = scalar_lea.vmem %s8, %s405
      %p407 = pneg %p276
      %p408 = pneg %p273
      %p409 = scmp.lt.s32.totalorder %s21, 1
      %s410 = scalar_select %p409, %s21, 1
      %s411 = smul.addr %s410, 8
      %s412 = scalar_lea.vmem %s9, %s411
      %p413 = scmp.lt.s32.totalorder %s21, 1
      %s414 = scalar_select %p413, %s21, 1
      %s415 = smul.addr %s414, 8
      %s416 = scalar_lea.vmem %s0, %s415
      %p417 = scmp.lt.s32.totalorder %s21, 1
      %s418 = scalar_select %p417, %s21, 1
      %s419 = smul.addr %s418, 12
      %s420 = smul.addr %s419, 8
      %s421 = scalar_lea.vmem %s1, %s420
      %p422 = scmp.lt.s32.totalorder %s21, 1
      %s423 = scalar_select %p422, %s21, 1
      %s424 = scalar_lea.vmem %s2, %s423
      %p425 = scmp.lt.s32.totalorder %s21, 1
      %s426 = scalar_select %p425, %s21, 1
      %s427 = scalar_lea.vmem %s3, %s426
      %p428 = scmp.lt.s32.totalorder %s21, 1
      %s429 = scalar_select %p428, %s21, 1
      %s430 = scalar_lea.vmem %s4, %s429
      %p431 = scmp.lt.s32.totalorder %s21, 1
      %s432 = scalar_select %p431, %s21, 1
      %s433 = scalar_lea.vmem %s5, %s432
      %p434 = scmp.lt.s32.totalorder %s21, 1
      %s435 = scalar_select %p434, %s21, 1
      %s436 = scalar_lea.vmem %s6, %s435
      %p437 = scmp.lt.s32.totalorder %s21, 1
      %s438 = scalar_select %p437, %s21, 1
      %s439 = smul.addr %s438, 36
      %s440 = smul.addr %s439, 8
      %s441 = scalar_lea.vmem %s7, %s440
      %p442 = scmp.lt.s32.totalorder %s21, 1
      %s443 = scalar_select %p442, %s21, 1
      %s444 = smul.addr %s443, 3
      %s445 = smul.addr %s444, 8
      %s446 = scalar_lea.vmem %s8, %s445
      %p447 = scmp.lt.s32.totalorder %s21, 1
      %s448 = scalar_select %p447, %s21, 1
      %s449 = smul.addr %s448, 8
      %s450 = scalar_lea.vmem %s9, %s449
      %v451 = vld [vmem:[%s416] sm:$0xff]
      %v452 = vld [vmem:[%s421] sm:$0xff]
      %v453 = vld [vmem:[%s421 + $0x8] sm:$0xff]
      %v454 = vld [vmem:[%s421 + $0x10] sm:$0xff]
      %v455 = vld [vmem:[%s421 + $0x18] sm:$0xff]
      %v456 = vld [vmem:[%s421 + $0x20] sm:$0xff]
      %v457 = vld [vmem:[%s421 + $0x28] sm:$0xff]
      %v458 = vld [vmem:[%s421 + $0x30] sm:$0xff]
      %v459 = vld [vmem:[%s421 + $0x38] sm:$0xff]
      %v460 = vld [vmem:[%s421 + $0x40] sm:$0xff]
      %v461 = vld [vmem:[%s421 + $0x48] sm:$0xff]
      %v462 = vld [vmem:[%s421 + $0x50] sm:$0xff]
      %v463 = vld [vmem:[%s421 + $0x58] sm:$0xff]
      %v464 = vld [vmem:[%s424] sm:$0x1]
      %v466 = vlaneseq
      %v467 = vshrl.u32 %v466, 7
      %v468 = vsub.s32 0, %v467
      %v469 = vrot.slane %v464, %v468
      %vm471 = vcmask 261120
      %v473 = vsel %vm471, %v451, 0
      %v476 = vsel %vm471, %v452, 0
      %v479 = vsel %vm471, %v453, 0
      %v482 = vsel %vm471, %v454, 0
      %v485 = vsel %vm471, %v455, 0
      %v488 = vsel %vm471, %v456, 0
      %v491 = vsel %vm471, %v457, 0
      %v494 = vsel %vm471, %v458, 0
      %v497 = vsel %vm471, %v459, 0
      %v500 = vsel %vm471, %v460, 0
      %v503 = vsel %vm471, %v461, 0
      %v506 = vsel %vm471, %v462, 0
      %v509 = vsel %vm471, %v463, 0
      %511 = vmatprep.subr.mxu0 0.0
      %512 = vmatpush1.xpose.msra.mxu0 %v476
      %513 = vmatprep.subr.mxu0 0.0
      %514 = vmatpush1.xpose.msra.mxu0 %v479
      %515 = vmatprep.subr.mxu0 0.0
      %516 = vmatpush1.xpose.msra.mxu0 %v482
      %517 = vmatprep.subr.mxu0 0.0
      %518 = vmatpush1.xpose.msra.mxu0 %v485
      %519 = vmatprep.subr.mxu0 0.0
      %520 = vmatpush1.xpose.msra.mxu0 %v488
      %521 = vmatprep.subr.mxu0 0.0
      %522 = vmatpush1.xpose.msra.mxu0 %v491
      %523 = vmatprep.subr.mxu0 0.0
      %524 = vmatpush1.xpose.msra.mxu0 %v494
      %525 = vmatprep.subr.mxu0 0.0
      %526 = vmatpush1.xpose.msra.mxu0 %v497
      %527 = vmatprep.subr.mxu0 0.0
      %528 = vmatpush1.xpose.msra.mxu0 %v500
      %529 = vmatprep.subr.mxu0 0.0
      %530 = vmatpush1.xpose.msra.mxu0 %v503
      %531 = vmatprep.subr.mxu0 0.0
      %532 = vmatpush1.xpose.msra.mxu0 %v506
      %533 = vmatprep.subr.mxu0 0.0
      %534 = vmatpush1.xpose.msra.mxu0 %v509
      %535 = vmatprep.subr.mxu0 0.0
      %536 = vmatpush1.xpose.msra.mxu0 0.0
      %537 = vmatprep.subr.mxu0 0.0
      %538 = vmatpush1.xpose.msra.mxu0 0.0
      %539 = vmatprep.subr.mxu0 0.0
      %540 = vmatpush1.xpose.msra.mxu0 0.0
      %541 = vmatprep.subr.mxu0 0.0
      %542 = vmatpush1.xpose.msra.mxu0 0.0
      %543 = vmatprep.subr.mxu0 0.0
      %544 = vmatpush1.xpose.msra.mxu0 0.0
      %545 = vmatprep.subr.mxu0 0.0
      %546 = vmatpush1.xpose.msra.mxu0 0.0
      %547 = vmatprep.subr.mxu0 0.0
      %548 = vmatpush1.xpose.msra.mxu0 0.0
      %549 = vmatprep.subr.mxu0 0.0
      %550 = vmatpush1.xpose.msra.mxu0 0.0
      %551 = vmatprep.subr.mxu0 0.0
      %552 = vmatpush1.xpose.msra.mxu0 0.0
      %553 = vmatprep.subr.mxu0 0.0
      %554 = vmatpush1.xpose.msra.mxu0 0.0
      %555 = vmatprep.subr.mxu0 0.0
      %556 = vmatpush1.xpose.msra.mxu0 0.0
      %557 = vmatprep.subr.mxu0 0.0
      %558 = vmatpush1.xpose.msra.mxu0 0.0
      %559 = vmatprep.subr.mxu0 0.0
      %560 = vmatpush1.xpose.msra.mxu0 0.0
      %561 = vmatprep.subr.mxu0 0.0
      %562 = vmatpush1.xpose.msra.mxu0 0.0
      %563 = vmatprep.subr.mxu0 0.0
      %564 = vmatpush1.xpose.msra.mxu0 0.0
      %565 = vmatprep.subr.mxu0 0.0
      %566 = vmatpush1.xpose.msra.mxu0 0.0
      %567 = vmatprep.subr.mxu0 0.0
      %568 = vmatpush1.xpose.msra.mxu0 0.0
      %569 = vmatprep.subr.mxu0 0.0
      %570 = vmatpush1.xpose.msra.mxu0 0.0
      %571 = vmatprep.subr.mxu0 0.0
      %572 = vmatpush1.xpose.msra.mxu0 0.0
      %573 = vmatprep.subr.mxu0 0.0
      %574 = vmatpush1.xpose.msra.mxu0 0.0
      %575 = vmatprep.mubr.f32.mxu0 0.0
      %576 = vmatmul.mubr.f32.gmra.mrb[0].mxu0 %v473
      %v577 = vpop.f32.mrb[0].mxu0
      %v578 = vadd.f32 %v469, %v577
      %v579 = vpop.f32.mrb[0].mxu0
      %580 = vdwg.mxu0
      %v581 = vmul.f32 %v578, 0.5
      %v582 = vmul.f32 %v578, 0.70710677
      %v583 = vand.u32 2147483647, %v582
      %v584 = vmul.f32 %v583, 0.3275911
      %v585 = vadd.f32 %v584, 1.0
      %v586 = vrcp.pop %v585
      %v587 = vmul.f32 1.0, %v586
      %v588 = vmul.f32 %v587, 1.0614054
      %v589 = vadd.f32 %v588, -1.4531521
      %v590 = vmul.f32 %v589, %v587
      %v591 = vadd.f32 %v590, 1.4214138
      %v592 = vmul.f32 %v591, %v587
      %v593 = vadd.f32 %v592, -0.28449672
      %v594 = vmul.f32 %v593, %v587
      %v595 = vadd.f32 %v594, 0.2548296
      %v596 = vmul.f32 %v595, %v587
      %v597 = vsub.f32 0.0, %v583
      %v598 = vmul.f32 %v597, %v583
      %v599 = vmul.f32 %v598, 1.442695
      %v600 = vpow.pop %v599
      %v601 = vmul.f32 %v596, %v600
      %v602 = vsub.f32 1.0, %v601
      %vm603 = vcmp.ge.f32.partialorder %v582, 0.0
      %v604 = vsub.f32 0.0, %v602
      %v605 = vsel %vm603, %v602, %v604
      %v606 = vadd.f32 %v605, 1.0
      %v607 = vmul.f32 %v581, %v606
      %v608 = vld [vmem:[%s427] sm:$0x1]
      %v609 = vld [vmem:[%s430] sm:$0x1]
      %v610 = vld [vmem:[%s433] sm:$0x1]
      %v611 = vld [vmem:[%s436] sm:$0x1]
      %v613 = vlaneseq
      %v614 = vshrl.u32 %v613, 7
      %v615 = vsub.s32 0, %v614
      %v616 = vrot.slane %v610, %v615
      %v618 = vsub.f32 %v607, %v616
      %v619 = vadd.f32 %v611, 1e-05
      %v620 = vrsqrt.pop %v619
      %v622 = vlaneseq
      %v623 = vshrl.u32 %v622, 7
      %v624 = vsub.s32 0, %v623
      %v625 = vrot.slane %v620, %v624
      %v627 = vmul.f32 %v618, %v625
      %v629 = vlaneseq
      %v630 = vshrl.u32 %v629, 7
      %v631 = vsub.s32 0, %v630
      %v632 = vrot.slane %v608, %v631
      %v634 = vmul.f32 %v627, %v632
      %v636 = vlaneseq
      %v637 = vshrl.u32 %v636, 7
      %v638 = vsub.s32 0, %v637
      %v639 = vrot.slane %v609, %v638
      %v641 = vadd.f32 %v634, %v639
      %vm642 = vcmask 785408
      %643 = vst.msk [vmem:[%s450] sm:$0xff] %vm642, %v641
      %v644 = vld [vmem:[%s441] sm:$0xff]
      %v645 = vld [vmem:[%s441 + $0x8] sm:$0xff]
      %v646 = vld [vmem:[%s441 + $0x10] sm:$0xff]
      %v647 = vld [vmem:[%s441 + $0x18] sm:$0xff]
      %v648 = vld [vmem:[%s441 + $0x20] sm:$0xff]
      %v649 = vld [vmem:[%s441 + $0x28] sm:$0xff]
      %v650 = vld [vmem:[%s441 + $0x30] sm:$0xff]
      %v651 = vld [vmem:[%s441 + $0x38] sm:$0xff]
      %v652 = vld [vmem:[%s441 + $0x40] sm:$0xff]
      %v653 = vld [vmem:[%s441 + $0x48] sm:$0xff]
      %v654 = vld [vmem:[%s441 + $0x50] sm:$0xff]
      %v655 = vld [vmem:[%s441 + $0x58] sm:$0xff]
      %v656 = vld [vmem:[%s441 + $0x60] sm:$0xff]
      %v657 = vld [vmem:[%s441 + $0x68] sm:$0xff]
      %v658 = vld [vmem:[%s441 + $0x70] sm:$0xff]
      %v659 = vld [vmem:[%s441 + $0x78] sm:$0xff]
      %v660 = vld [vmem:[%s441 + $0x80] sm:$0xff]
      %v661 = vld [vmem:[%s441 + $0x88] sm:$0xff]
      %v662 = vld [vmem:[%s441 + $0x90] sm:$0xff]
      %v663 = vld [vmem:[%s441 + $0x98] sm:$0xff]
      %v664 = vld [vmem:[%s441 + $0xa0] sm:$0xff]
      %v665 = vld [vmem:[%s441 + $0xa8] sm:$0xff]
      %v666 = vld [vmem:[%s441 + $0xb0] sm:$0xff]
      %v667 = vld [vmem:[%s441 + $0xb8] sm:$0xff]
      %v668 = vld [vmem:[%s441 + $0xc0] sm:$0xff]
      %v669 = vld [vmem:[%s441 + $0xc8] sm:$0xff]
      %v670 = vld [vmem:[%s441 + $0xd0] sm:$0xff]
      %v671 = vld [vmem:[%s441 + $0xd8] sm:$0xff]
      %v672 = vld [vmem:[%s441 + $0xe0] sm:$0xff]
      %v673 = vld [vmem:[%s441 + $0xe8] sm:$0xff]
      %v674 = vld [vmem:[%s441 + $0xf0] sm:$0xff]
      %v675 = vld [vmem:[%s441 + $0xf8] sm:$0xff]
      %v676 = vld [vmem:[%s441 + $0x100] sm:$0xff]
      %v677 = vld [vmem:[%s441 + $0x108] sm:$0xff]
      %v678 = vld [vmem:[%s441 + $0x110] sm:$0xff]
      %v679 = vld [vmem:[%s441 + $0x118] sm:$0xff]
      %v681 = vsel %vm642, %v641, 0
      %v684 = vsel %vm642, %v644, 0
      %v687 = vsel %vm642, %v645, 0
      %v690 = vsel %vm642, %v646, 0
      %v693 = vsel %vm642, %v647, 0
      %v696 = vsel %vm642, %v648, 0
      %v699 = vsel %vm642, %v649, 0
      %v702 = vsel %vm642, %v650, 0
      %v705 = vsel %vm642, %v651, 0
      %v708 = vsel %vm642, %v652, 0
      %v711 = vsel %vm642, %v653, 0
      %v714 = vsel %vm642, %v654, 0
      %v717 = vsel %vm642, %v655, 0
      %v720 = vsel %vm642, %v656, 0
      %v723 = vsel %vm642, %v657, 0
      %v726 = vsel %vm642, %v658, 0
      %v729 = vsel %vm642, %v659, 0
      %v732 = vsel %vm642, %v660, 0
      %v735 = vsel %vm642, %v661, 0
      %v738 = vsel %vm642, %v662, 0
      %v741 = vsel %vm642, %v663, 0
      %v744 = vsel %vm642, %v664, 0
      %v747 = vsel %vm642, %v665, 0
      %v750 = vsel %vm642, %v666, 0
      %v753 = vsel %vm642, %v667, 0
      %v756 = vsel %vm642, %v668, 0
      %v759 = vsel %vm642, %v669, 0
      %v762 = vsel %vm642, %v670, 0
      %v765 = vsel %vm642, %v671, 0
      %v768 = vsel %vm642, %v672, 0
      %v771 = vsel %vm642, %v673, 0
      %v774 = vsel %vm642, %v674, 0
      %v777 = vsel %vm642, %v675, 0
      %v780 = vsel %vm642, %v676, 0
      %v783 = vsel %vm642, %v677, 0
      %v786 = vsel %vm642, %v678, 0
      %v789 = vsel %vm642, %v679, 0
      %791 = vmatprep.subr.mxu0 0.0
      %792 = vmatpush1.xpose.msra.mxu0 %v684
      %793 = vmatprep.subr.mxu0 0.0
      %794 = vmatpush1.xpose.msra.mxu0 %v687
      %795 = vmatprep.subr.mxu0 0.0
      %796 = vmatpush1.xpose.msra.mxu0 %v690
      %797 = vmatprep.subr.mxu0 0.0
      %798 = vmatpush1.xpose.msra.mxu0 %v693
      %799 = vmatprep.subr.mxu0 0.0
      %800 = vmatpush1.xpose.msra.mxu0 %v696
      %801 = vmatprep.subr.mxu0 0.0
      %802 = vmatpush1.xpose.msra.mxu0 %v699
      %803 = vmatprep.subr.mxu0 0.0
      %804 = vmatpush1.xpose.msra.mxu0 %v702
      %805 = vmatprep.subr.mxu0 0.0
      %806 = vmatpush1.xpose.msra.mxu0 %v705
      %807 = vmatprep.subr.mxu0 0.0
      %808 = vmatpush1.xpose.msra.mxu0 %v708
      %809 = vmatprep.subr.mxu0 0.0
      %810 = vmatpush1.xpose.msra.mxu0 %v711
      %811 = vmatprep.subr.mxu0 0.0
      %812 = vmatpush1.xpose.msra.mxu0 %v714
      %813 = vmatprep.subr.mxu0 0.0
      %814 = vmatpush1.xpose.msra.mxu0 %v717
      %815 = vmatprep.subr.mxu0 0.0
      %816 = vmatpush1.xpose.msra.mxu0 %v720
      %817 = vmatprep.subr.mxu0 0.0
      %818 = vmatpush1.xpose.msra.mxu0 %v723
      %819 = vmatprep.subr.mxu0 0.0
      %820 = vmatpush1.xpose.msra.mxu0 %v726
      %821 = vmatprep.subr.mxu0 0.0
      %822 = vmatpush1.xpose.msra.mxu0 %v729
      %823 = vmatprep.subr.mxu0 0.0
      %824 = vmatpush1.xpose.msra.mxu0 %v732
      %825 = vmatprep.subr.mxu0 0.0
      %826 = vmatpush1.xpose.msra.mxu0 %v735
      %827 = vmatprep.subr.mxu0 0.0
      %828 = vmatpush1.xpose.msra.mxu0 %v738
      %829 = vmatprep.subr.mxu0 0.0
      %830 = vmatpush1.xpose.msra.mxu0 %v741
      %831 = vmatprep.subr.mxu0 0.0
      %832 = vmatpush1.xpose.msra.mxu0 %v744
      %833 = vmatprep.subr.mxu0 0.0
      %834 = vmatpush1.xpose.msra.mxu0 %v747
      %835 = vmatprep.subr.mxu0 0.0
      %836 = vmatpush1.xpose.msra.mxu0 %v750
      %837 = vmatprep.subr.mxu0 0.0
      %838 = vmatpush1.xpose.msra.mxu0 %v753
      %839 = vmatprep.subr.mxu0 0.0
      %840 = vmatpush1.xpose.msra.mxu0 %v756
      %841 = vmatprep.subr.mxu0 0.0
      %842 = vmatpush1.xpose.msra.mxu0 %v759
      %843 = vmatprep.subr.mxu0 0.0
      %844 = vmatpush1.xpose.msra.mxu0 %v762
      %845 = vmatprep.subr.mxu0 0.0
      %846 = vmatpush1.xpose.msra.mxu0 %v765
      %847 = vmatprep.subr.mxu0 0.0
      %848 = vmatpush1.xpose.msra.mxu0 %v768
      %849 = vmatprep.subr.mxu0 0.0
      %850 = vmatpush1.xpose.msra.mxu0 %v771
      %851 = vmatprep.subr.mxu0 0.0
      %852 = vmatpush1.xpose.msra.mxu0 %v774
      %853 = vmatprep.subr.mxu0 0.0
      %854 = vmatpush1.xpose.msra.mxu0 %v777
      %855 = vmatprep.mubr.f32.mxu0 0.0
      %856 = vmatmul.mubr.f32.gmra.mrb[0].mxu0 %v681
      %v857 = vpop.f32.mrb[0].mxu0
      %v858 = vadd.f32 0.0, %v857
      %v859 = vpop.f32.mrb[0].mxu0
      %v860 = vadd.f32 0.0, %v859
      %861 = vdwg.mxu0
      %862 = vmatprep.subr.mxu0 0.0
      %863 = vmatpush1.xpose.msra.mxu0 %v780
      %864 = vmatprep.subr.mxu0 0.0
      %865 = vmatpush1.xpose.msra.mxu0 %v783
      %866 = vmatprep.subr.mxu0 0.0
      %867 = vmatpush1.xpose.msra.mxu0 %v786
      %868 = vmatprep.subr.mxu0 0.0
      %869 = vmatpush1.xpose.msra.mxu0 %v789
      %870 = vmatprep.subr.mxu0 0.0
      %871 = vmatpush1.xpose.msra.mxu0 0.0
      %872 = vmatprep.subr.mxu0 0.0
      %873 = vmatpush1.xpose.msra.mxu0 0.0
      %874 = vmatprep.subr.mxu0 0.0
      %875 = vmatpush1.xpose.msra.mxu0 0.0
      %876 = vmatprep.subr.mxu0 0.0
      %877 = vmatpush1.xpose.msra.mxu0 0.0
      %878 = vmatprep.subr.mxu0 0.0
      %879 = vmatpush1.xpose.msra.mxu0 0.0
      %880 = vmatprep.subr.mxu0 0.0
      %881 = vmatpush1.xpose.msra.mxu0 0.0
      %882 = vmatprep.subr.mxu0 0.0
      %883 = vmatpush1.xpose.msra.mxu0 0.0
      %884 = vmatprep.subr.mxu0 0.0
      %885 = vmatpush1.xpose.msra.mxu0 0.0
      %886 = vmatprep.subr.mxu0 0.0
      %887 = vmatpush1.xpose.msra.mxu0 0.0
      %888 = vmatprep.subr.mxu0 0.0
      %889 = vmatpush1.xpose.msra.mxu0 0.0
      %890 = vmatprep.subr.mxu0 0.0
      %891 = vmatpush1.xpose.msra.mxu0 0.0
      %892 = vmatprep.subr.mxu0 0.0
      %893 = vmatpush1.xpose.msra.mxu0 0.0
      %894 = vmatprep.subr.mxu0 0.0
      %895 = vmatpush1.xpose.msra.mxu0 0.0
      %896 = vmatprep.subr.mxu0 0.0
      %897 = vmatpush1.xpose.msra.mxu0 0.0
      %898 = vmatprep.subr.mxu0 0.0
      %899 = vmatpush1.xpose.msra.mxu0 0.0
      %900 = vmatprep.subr.mxu0 0.0
      %901 = vmatpush1.xpose.msra.mxu0 0.0
      %902 = vmatprep.subr.mxu0 0.0
      %903 = vmatpush1.xpose.msra.mxu0 0.0
      %904 = vmatprep.subr.mxu0 0.0
      %905 = vmatpush1.xpose.msra.mxu0 0.0
      %906 = vmatprep.subr.mxu0 0.0
      %907 = vmatpush1.xpose.msra.mxu0 0.0
      %908 = vmatprep.subr.mxu0 0.0
      %909 = vmatpush1.xpose.msra.mxu0 0.0
      %910 = vmatprep.subr.mxu0 0.0
      %911 = vmatpush1.xpose.msra.mxu0 0.0
      %912 = vmatprep.subr.mxu0 0.0
      %913 = vmatpush1.xpose.msra.mxu0 0.0
      %914 = vmatprep.subr.mxu0 0.0
      %915 = vmatpush1.xpose.msra.mxu0 0.0
      %916 = vmatprep.subr.mxu0 0.0
      %917 = vmatpush1.xpose.msra.mxu0 0.0
      %918 = vmatprep.subr.mxu0 0.0
      %919 = vmatpush1.xpose.msra.mxu0 0.0
      %920 = vmatprep.subr.mxu0 0.0
      %921 = vmatpush1.xpose.msra.mxu0 0.0
      %922 = vmatprep.subr.mxu0 0.0
      %923 = vmatpush1.xpose.msra.mxu0 0.0
      %924 = vmatprep.subr.mxu0 0.0
      %925 = vmatpush1.xpose.msra.mxu0 0.0
      %926 = vmatprep.mubr.f32.mxu0 0.0
      %927 = vmatmul.mubr.f32.gmra.mrb[0].mxu0 %v681
      %v928 = vpop.f32.mrb[0].mxu0
      %v929 = vadd.f32 0.0, %v928
      %v930 = vpop.f32.mrb[0].mxu0
      %931 = vdwg.mxu0
      %932 = vst [vmem:[#allocation2] sm:$0xff] %v858
      %933 = vst [vmem:[#allocation2 + $0x8] sm:$0xff] %v860
      %934 = vst.msk [vmem:[#allocation2 + $0x10] sm:$0xff] %vm471, %v929
      %v935 = vld [vmem:[#allocation2] sm:$0xff]
      %v936 = vld [vmem:[#allocation2 + $0x8] sm:$0xff]
      %938 = vrot.lane.b32.xlu0 %v935, 32
      %v939 = vpop.permute.xlu0 %938
      %v940 = vsel %vm471, %v935, 0
      %v942 = vsel %vm471, %v939, 0
      %944 = vmatprep.subr.mxu0 0.0
      %945 = vmatpush1.xpose.msra.mxu0 %v942
      %946 = vmatprep.subr.mxu0 0.0
      %947 = vmatpush1.xpose.msra.mxu0 0.0
      %948 = vmatprep.subr.mxu0 0.0
      %949 = vmatpush1.xpose.msra.mxu0 0.0
      %950 = vmatprep.subr.mxu0 0.0
      %951 = vmatpush1.xpose.msra.mxu0 0.0
      %952 = vmatprep.subr.mxu0 0.0
      %953 = vmatpush1.xpose.msra.mxu0 0.0
      %954 = vmatprep.subr.mxu0 0.0
      %955 = vmatpush1.xpose.msra.mxu0 0.0
      %956 = vmatprep.subr.mxu0 0.0
      %957 = vmatpush1.xpose.msra.mxu0 0.0
      %958 = vmatprep.subr.mxu0 0.0
      %959 = vmatpush1.xpose.msra.mxu0 0.0
      %960 = vmatprep.subr.mxu0 0.0
      %961 = vmatpush1.xpose.msra.mxu0 0.0
      %962 = vmatprep.subr.mxu0 0.0
      %963 = vmatpush1.xpose.msra.mxu0 0.0
      %964 = vmatprep.subr.mxu0 0.0
      %965 = vmatpush1.xpose.msra.mxu0 0.0
      %966 = vmatprep.subr.mxu0 0.0
      %967 = vmatpush1.xpose.msra.mxu0 0.0
      %968 = vmatprep.subr.mxu0 0.0
      %969 = vmatpush1.xpose.msra.mxu0 0.0
      %970 = vmatprep.subr.mxu0 0.0
      %971 = vmatpush1.xpose.msra.mxu0 0.0
      %972 = vmatprep.subr.mxu0 0.0
      %973 = vmatpush1.xpose.msra.mxu0 0.0
      %974 = vmatprep.subr.mxu0 0.0
      %975 = vmatpush1.xpose.msra.mxu0 0.0
      %976 = vmatprep.subr.mxu0 0.0
      %977 = vmatpush1.xpose.msra.mxu0 0.0
      %978 = vmatprep.subr.mxu0 0.0
      %979 = vmatpush1.xpose.msra.mxu0 0.0
      %980 = vmatprep.subr.mxu0 0.0
      %981 = vmatpush1.xpose.msra.mxu0 0.0
      %982 = vmatprep.subr.mxu0 0.0
      %983 = vmatpush1.xpose.msra.mxu0 0.0
      %984 = vmatprep.subr.mxu0 0.0
      %985 = vmatpush1.xpose.msra.mxu0 0.0
      %986 = vmatprep.subr.mxu0 0.0
      %987 = vmatpush1.xpose.msra.mxu0 0.0
      %988 = vmatprep.subr.mxu0 0.0
      %989 = vmatpush1.xpose.msra.mxu0 0.0
      %990 = vmatprep.subr.mxu0 0.0
      %991 = vmatpush1.xpose.msra.mxu0 0.0
      %992 = vmatprep.subr.mxu0 0.0
      %993 = vmatpush1.xpose.msra.mxu0 0.0
      %994 = vmatprep.subr.mxu0 0.0
      %995 = vmatpush1.xpose.msra.mxu0 0.0
      %996 = vmatprep.subr.mxu0 0.0
      %997 = vmatpush1.xpose.msra.mxu0 0.0
      %998 = vmatprep.subr.mxu0 0.0
      %999 = vmatpush1.xpose.msra.mxu0 0.0
      %1000 = vmatprep.subr.mxu0 0.0
      %1001 = vmatpush1.xpose.msra.mxu0 0.0
      %1002 = vmatprep.subr.mxu0 0.0
      %1003 = vmatpush1.xpose.msra.mxu0 0.0
      %1004 = vmatprep.subr.mxu0 0.0
      %1005 = vmatpush1.xpose.msra.mxu0 0.0
      %1006 = vmatprep.subr.mxu0 0.0
      %1007 = vmatpush1.xpose.msra.mxu0 0.0
      %1008 = vmatprep.mubr.f32.mxu0 0.0
      %1009 = vmatmul.mubr.f32.gmra.mrb[0].mxu0 %v940
      %v1010 = vpop.f32.mrb[0].mxu0
      %v1011 = vadd.f32 0.0, %v1010
      %v1012 = vpop.f32.mrb[0].mxu0
      %1013 = vdwg.mxu0
      %v1014 = vmul.f32 %v1011, 0.17677669
      %vm1015 = vcmask 64512
      %v1016 = vsel %vm1015, %v1014, -inf
      %1017 = vmax.xlane.f32.xlu0 %v1016
      %v1018 = vpop.xlane.xlu0 %1017
      %v1019 = vsub.f32 %v1014, %v1018
      %v1020 = vmul.f32 %v1019, 1.442695
      %v1021 = vpow.pop %v1020
      %v1022 = vsel %vm1015, %v1021, 0.0
      %1023 = vadd.xlane.f32.xlu0 %v1022
      %v1024 = vpop.xlane.xlu0 %1023
      %v1025 = vrcp.pop %v1024
      %v1026 = vmul.f32 %v1021, %v1025
      %1028 = vrot.lane.b32.xlu0 %v936, 64
      %v1029 = vpop.permute.xlu0 %1028
      %v1032 = vsel %vm1015, %v1026, 0
      %1034 = vmatprep.subr.mxu0 0.0
      %1035 = vmatpush1.msra.mxu0 %v1029
      %1036 = vmatprep.subr.mxu0 0.0
      %1037 = vmatpush1.msra.mxu0 0.0
      %1038 = vmatprep.subr.mxu0 0.0
      %1039 = vmatpush1.msra.mxu0 0.0
      %1040 = vmatprep.subr.mxu0 0.0
      %1041 = vmatpush1.msra.mxu0 0.0
      %1042 = vmatprep.subr.mxu0 0.0
      %1043 = vmatpush1.msra.mxu0 0.0
      %1044 = vmatprep.subr.mxu0 0.0
      %1045 = vmatpush1.msra.mxu0 0.0
      %1046 = vmatprep.subr.mxu0 0.0
      %1047 = vmatpush1.msra.mxu0 0.0
      %1048 = vmatprep.subr.mxu0 0.0
      %1049 = vmatpush1.msra.mxu0 0.0
      %1050 = vmatprep.subr.mxu0 0.0
      %1051 = vmatpush1.msra.mxu0 0.0
      %1052 = vmatprep.subr.mxu0 0.0
      %1053 = vmatpush1.msra.mxu0 0.0
      %1054 = vmatprep.subr.mxu0 0.0
      %1055 = vmatpush1.msra.mxu0 0.0
      %1056 = vmatprep.subr.mxu0 0.0
      %1057 = vmatpush1.msra.mxu0 0.0
      %1058 = vmatprep.subr.mxu0 0.0
      %1059 = vmatpush1.msra.mxu0 0.0
      %1060 = vmatprep.subr.mxu0 0.0
      %1061 = vmatpush1.msra.mxu0 0.0
      %1062 = vmatprep.subr.mxu0 0.0
      %1063 = vmatpush1.msra.mxu0 0.0
      %1064 = vmatprep.subr.mxu0 0.0
      %1065 = vmatpush1.msra.mxu0 0.0
      %1066 = vmatprep.subr.mxu0 0.0
      %1067 = vmatpush1.msra.mxu0 0.0
      %1068 = vmatprep.subr.mxu0 0.0
      %1069 = vmatpush1.msra.mxu0 0.0
      %1070 = vmatprep.subr.mxu0 0.0
      %1071 = vmatpush1.msra.mxu0 0.0
      %1072 = vmatprep.subr.mxu0 0.0
      %1073 = vmatpush1.msra.mxu0 0.0
      %1074 = vmatprep.subr.mxu0 0.0
      %1075 = vmatpush1.msra.mxu0 0.0
      %1076 = vmatprep.subr.mxu0 0.0
      %1077 = vmatpush1.msra.mxu0 0.0
      %1078 = vmatprep.subr.mxu0 0.0
      %1079 = vmatpush1.msra.mxu0 0.0
      %1080 = vmatprep.subr.mxu0 0.0
      %1081 = vmatpush1.msra.mxu0 0.0
      %1082 = vmatprep.subr.mxu0 0.0
      %1083 = vmatpush1.msra.mxu0 0.0
      %1084 = vmatprep.subr.mxu0 0.0
      %1085 = vmatpush1.msra.mxu0 0.0
      %1086 = vmatprep.subr.mxu0 0.0
      %1087 = vmatpush1.msra.mxu0 0.0
      %1088 = vmatprep.subr.mxu0 0.0
      %1089 = vmatpush1.msra.mxu0 0.0
      %1090 = vmatprep.subr.mxu0 0.0
      %1091 = vmatpush1.msra.mxu0 0.0
      %1092 = vmatprep.subr.mxu0 0.0
      %1093 = vmatpush1.msra.mxu0 0.0
      %1094 = vmatprep.subr.mxu0 0.0
      %1095 = vmatpush1.msra.mxu0 0.0
      %1096 = vmatprep.subr.mxu0 0.0
      %1097 = vmatpush1.msra.mxu0 0.0
      %1098 = vmatprep.mubr.f32.mxu0 0.0
      %1099 = vmatmul.mubr.f32.gmra.mrb[0].mxu0 %v1032
      %v1100 = vpop.f32.mrb[0].mxu0
      %v1101 = vadd.f32 0.0, %v1100
      %v1102 = vpop.f32.mrb[0].mxu0
      %1103 = vdwg.mxu0
      %1104 = vst.msk [vmem:[%s446] sm:$0xff] %vm471, %v1101
      %v1105 = vld [vmem:[#allocation2] sm:$0xff]
      %v1106 = vld [vmem:[#allocation2 + $0x8] sm:$0xff]
      %1108 = vrot.lane.b32.xlu0 %v1105, 96
      %v1109 = vpop.permute.xlu0 %1108
      %v1110 = vsel %vm471, %v1109, 0
      %v1113 = vsel %vm471, %v1106, 0
      %1115 = vmatprep.subr.mxu0 0.0
      %1116 = vmatpush1.xpose.msra.mxu0 %v1113
      %1117 = vmatprep.subr.mxu0 0.0
      %1118 = vmatpush1.xpose.msra.mxu0 0.0
      %1119 = vmatprep.subr.mxu0 0.0
      %1120 = vmatpush1.xpose.msra.mxu0 0.0
      %1121 = vmatprep.subr.mxu0 0.0
      %1122 = vmatpush1.xpose.msra.mxu0 0.0
      %1123 = vmatprep.subr.mxu0 0.0
      %1124 = vmatpush1.xpose.msra.mxu0 0.0
      %1125 = vmatprep.subr.mxu0 0.0
      %1126 = vmatpush1.xpose.msra.mxu0 0.0
      %1127 = vmatprep.subr.mxu0 0.0
      %1128 = vmatpush1.xpose.msra.mxu0 0.0
      %1129 = vmatprep.subr.mxu0 0.0
      %1130 = vmatpush1.xpose.msra.mxu0 0.0
      %1131 = vmatprep.subr.mxu0 0.0
      %1132 = vmatpush1.xpose.msra.mxu0 0.0
      %1133 = vmatprep.subr.mxu0 0.0
      %1134 = vmatpush1.xpose.msra.mxu0 0.0
      %1135 = vmatprep.subr.mxu0 0.0
      %1136 = vmatpush1.xpose.msra.mxu0 0.0
      %1137 = vmatprep.subr.mxu0 0.0
      %1138 = vmatpush1.xpose.msra.mxu0 0.0
      %1139 = vmatprep.subr.mxu0 0.0
      %1140 = vmatpush1.xpose.msra.mxu0 0.0
      %1141 = vmatprep.subr.mxu0 0.0
      %1142 = vmatpush1.xpose.msra.mxu0 0.0
      %1143 = vmatprep.subr.mxu0 0.0
      %1144 = vmatpush1.xpose.msra.mxu0 0.0
      %1145 = vmatprep.subr.mxu0 0.0
      %1146 = vmatpush1.xpose.msra.mxu0 0.0
      %1147 = vmatprep.subr.mxu0 0.0
      %1148 = vmatpush1.xpose.msra.mxu0 0.0
      %1149 = vmatprep.subr.mxu0 0.0
      %1150 = vmatpush1.xpose.msra.mxu0 0.0
      %1151 = vmatprep.subr.mxu0 0.0
      %1152 = vmatpush1.xpose.msra.mxu0 0.0
      %1153 = vmatprep.subr.mxu0 0.0
      %1154 = vmatpush1.xpose.msra.mxu0 0.0
      %1155 = vmatprep.subr.mxu0 0.0
      %1156 = vmatpush1.xpose.msra.mxu0 0.0
      %1157 = vmatprep.subr.mxu0 0.0
      %1158 = vmatpush1.xpose.msra.mxu0 0.0
      %1159 = vmatprep.subr.mxu0 0.0
      %1160 = vmatpush1.xpose.msra.mxu0 0.0
      %1161 = vmatprep.subr.mxu0 0.0
      %1162 = vmatpush1.xpose.msra.mxu0 0.0
      %1163 = vmatprep.subr.mxu0 0.0
      %1164 = vmatpush1.xpose.msra.mxu0 0.0
      %1165 = vmatprep.subr.mxu0 0.0
      %1166 = vmatpush1.xpose.msra.mxu0 0.0
      %1167 = vmatprep.subr.mxu0 0.0
      %1168 = vmatpush1.xpose.msra.mxu0 0.0
      %1169 = vmatprep.subr.mxu0 0.0
      %1170 = vmatpush1.xpose.msra.mxu0 0.0
      %1171 = vmatprep.subr.mxu0 0.0
      %1172 = vmatpush1.xpose.msra.mxu0 0.0
      %1173 = vmatprep.subr.mxu0 0.0
      %1174 = vmatpush1.xpose.msra.mxu0 0.0
      %1175 = vmatprep.subr.mxu0 0.0
      %1176 = vmatpush1.xpose.msra.mxu0 0.0
      %1177 = vmatprep.subr.mxu0 0.0
      %1178 = vmatpush1.xpose.msra.mxu0 0.0
      %1179 = vmatprep.mubr.f32.mxu0 0.0
      %1180 = vmatmul.mubr.f32.gmra.mrb[0].mxu0 %v1110
      %v1181 = vpop.f32.mrb[0].mxu0
      %v1182 = vadd.f32 0.0, %v1181
      %v1183 = vpop.f32.mrb[0].mxu0
      %1184 = vdwg.mxu0
      %v1185 = vmul.f32 %v1182, 0.17677669
      %v1186 = vsel %vm1015, %v1185, -inf
      %1187 = vmax.xlane.f32.xlu0 %v1186
      %v1188 = vpop.xlane.xlu0 %1187
      %v1189 = vsub.f32 %v1185, %v1188
      %v1190 = vmul.f32 %v1189, 1.442695
      %v1191 = vpow.pop %v1190
      %v1192 = vsel %vm1015, %v1191, 0.0
      %1193 = vadd.xlane.f32.xlu0 %v1192
      %v1194 = vpop.xlane.xlu0 %1193
      %v1195 = vrcp.pop %v1194
      %v1196 = vmul.f32 %v1191, %v1195
      %1197 = vrot.lane.b32.xlu0 %v1106, 32
      %v1198 = vpop.permute.xlu0 %1197
      %v1201 = vsel %vm1015, %v1196, 0
      %1203 = vmatprep.subr.mxu0 0.0
      %1204 = vmatpush1.msra.mxu0 %v1198
      %1205 = vmatprep.subr.mxu0 0.0
      %1206 = vmatpush1.msra.mxu0 0.0
      %1207 = vmatprep.subr.mxu0 0.0
      %1208 = vmatpush1.msra.mxu0 0.0
      %1209 = vmatprep.subr.mxu0 0.0
      %1210 = vmatpush1.msra.mxu0 0.0
      %1211 = vmatprep.subr.mxu0 0.0
      %1212 = vmatpush1.msra.mxu0 0.0
      %1213 = vmatprep.subr.mxu0 0.0
      %1214 = vmatpush1.msra.mxu0 0.0
      %1215 = vmatprep.subr.mxu0 0.0
      %1216 = vmatpush1.msra.mxu0 0.0
      %1217 = vmatprep.subr.mxu0 0.0
      %1218 = vmatpush1.msra.mxu0 0.0
      %1219 = vmatprep.subr.mxu0 0.0
      %1220 = vmatpush1.msra.mxu0 0.0
      %1221 = vmatprep.subr.mxu0 0.0
      %1222 = vmatpush1.msra.mxu0 0.0
      %1223 = vmatprep.subr.mxu0 0.0
      %1224 = vmatpush1.msra.mxu0 0.0
      %1225 = vmatprep.subr.mxu0 0.0
      %1226 = vmatpush1.msra.mxu0 0.0
      %1227 = vmatprep.subr.mxu0 0.0
      %1228 = vmatpush1.msra.mxu0 0.0
      %1229 = vmatprep.subr.mxu0 0.0
      %1230 = vmatpush1.msra.mxu0 0.0
      %1231 = vmatprep.subr.mxu0 0.0
      %1232 = vmatpush1.msra.mxu0 0.0
      %1233 = vmatprep.subr.mxu0 0.0
      %1234 = vmatpush1.msra.mxu0 0.0
      %1235 = vmatprep.subr.mxu0 0.0
      %1236 = vmatpush1.msra.mxu0 0.0
      %1237 = vmatprep.subr.mxu0 0.0
      %1238 = vmatpush1.msra.mxu0 0.0
      %1239 = vmatprep.subr.mxu0 0.0
      %1240 = vmatpush1.msra.mxu0 0.0
      %1241 = vmatprep.subr.mxu0 0.0
      %1242 = vmatpush1.msra.mxu0 0.0
      %1243 = vmatprep.subr.mxu0 0.0
      %1244 = vmatpush1.msra.mxu0 0.0
      %1245 = vmatprep.subr.mxu0 0.0
      %1246 = vmatpush1.msra.mxu0 0.0
      %1247 = vmatprep.subr.mxu0 0.0
      %1248 = vmatpush1.msra.mxu0 0.0
      %1249 = vmatprep.subr.mxu0 0.0
      %1250 = vmatpush1.msra.mxu0 0.0
      %1251 = vmatprep.subr.mxu0 0.0
      %1252 = vmatpush1.msra.mxu0 0.0
      %1253 = vmatprep.subr.mxu0 0.0
      %1254 = vmatpush1.msra.mxu0 0.0
      %1255 = vmatprep.subr.mxu0 0.0
      %1256 = vmatpush1.msra.mxu0 0.0
      %1257 = vmatprep.subr.mxu0 0.0
      %1258 = vmatpush1.msra.mxu0 0.0
      %1259 = vmatprep.subr.mxu0 0.0
      %1260 = vmatpush1.msra.mxu0 0.0
      %1261 = vmatprep.subr.mxu0 0.0
      %1262 = vmatpush1.msra.mxu0 0.0
      %1263 = vmatprep.subr.mxu0 0.0
      %1264 = vmatpush1.msra.mxu0 0.0
      %1265 = vmatprep.subr.mxu0 0.0
      %1266 = vmatpush1.msra.mxu0 0.0
      %1267 = vmatprep.mubr.f32.mxu0 0.0
      %1268 = vmatmul.mubr.f32.gmra.mrb[0].mxu0 %v1201
      %v1269 = vpop.f32.mrb[0].mxu0
      %v1270 = vadd.f32 0.0, %v1269
      %v1271 = vpop.f32.mrb[0].mxu0
      %1272 = vdwg.mxu0
      %s1273 = scalar_lea.vmem %s446, 8
      %1274 = vst.msk [vmem:[%s1273] sm:$0xff] %vm471, %v1270
      %v1275 = vld [vmem:[#allocation2] sm:$0xff]
      %v1276 = vld [vmem:[#allocation2 + $0x8] sm:$0xff]
      %v1277 = vld [vmem:[#allocation2 + $0x10] sm:$0xff]
      %1279 = vrot.lane.b32.xlu0 %v1275, 64
      %v1280 = vpop.permute.xlu0 %1279
      %1282 = vrot.lane.b32.xlu0 %v1276, 96
      %v1283 = vpop.permute.xlu0 %1282
      %v1284 = vsel %vm471, %v1280, 0
      %v1286 = vsel %vm471, %v1283, 0
      %1288 = vmatprep.subr.mxu0 0.0
      %1289 = vmatpush1.xpose.msra.mxu0 %v1286
      %1290 = vmatprep.subr.mxu0 0.0
      %1291 = vmatpush1.xpose.msra.mxu0 0.0
      %1292 = vmatprep.subr.mxu0 0.0
      %1293 = vmatpush1.xpose.msra.mxu0 0.0
      %1294 = vmatprep.subr.mxu0 0.0
      %1295 = vmatpush1.xpose.msra.mxu0 0.0
      %1296 = vmatprep.subr.mxu0 0.0
      %1297 = vmatpush1.xpose.msra.mxu0 0.0
      %1298 = vmatprep.subr.mxu0 0.0
      %1299 = vmatpush1.xpose.msra.mxu0 0.0
      %1300 = vmatprep.subr.mxu0 0.0
      %1301 = vmatpush1.xpose.msra.mxu0 0.0
      %1302 = vmatprep.subr.mxu0 0.0
      %1303 = vmatpush1.xpose.msra.mxu0 0.0
      %1304 = vmatprep.subr.mxu0 0.0
      %1305 = vmatpush1.xpose.msra.mxu0 0.0
      %1306 = vmatprep.subr.mxu0 0.0
      %1307 = vmatpush1.xpose.msra.mxu0 0.0
      %1308 = vmatprep.subr.mxu0 0.0
      %1309 = vmatpush1.xpose.msra.mxu0 0.0
      %1310 = vmatprep.subr.mxu0 0.0
      %1311 = vmatpush1.xpose.msra.mxu0 0.0
      %1312 = vmatprep.subr.mxu0 0.0
      %1313 = vmatpush1.xpose.msra.mxu0 0.0
      %1314 = vmatprep.subr.mxu0 0.0
      %1315 = vmatpush1.xpose.msra.mxu0 0.0
      %1316 = vmatprep.subr.mxu0 0.0
      %1317 = vmatpush1.xpose.msra.mxu0 0.0
      %1318 = vmatprep.subr.mxu0 0.0
      %1319 = vmatpush1.xpose.msra.mxu0 0.0
      %1320 = vmatprep.subr.mxu0 0.0
      %1321 = vmatpush1.xpose.msra.mxu0 0.0
      %1322 = vmatprep.subr.mxu0 0.0
      %1323 = vmatpush1.xpose.msra.mxu0 0.0
      %1324 = vmatprep.subr.mxu0 0.0
      %1325 = vmatpush1.xpose.msra.mxu0 0.0
      %1326 = vmatprep.subr.mxu0 0.0
      %1327 = vmatpush1.xpose.msra.mxu0 0.0
      %1328 = vmatprep.subr.mxu0 0.0
      %1329 = vmatpush1.xpose.msra.mxu0 0.0
      %1330 = vmatprep.subr.mxu0 0.0
      %1331 = vmatpush1.xpose.msra.mxu0 0.0
      %1332 = vmatprep.subr.mxu0 0.0
      %1333 = vmatpush1.xpose.msra.mxu0 0.0
      %1334 = vmatprep.subr.mxu0 0.0
      %1335 = vmatpush1.xpose.msra.mxu0 0.0
      %1336 = vmatprep.subr.mxu0 0.0
      %1337 = vmatpush1.xpose.msra.mxu0 0.0
      %1338 = vmatprep.subr.mxu0 0.0
      %1339 = vmatpush1.xpose.msra.mxu0 0.0
      %1340 = vmatprep.subr.mxu0 0.0
      %1341 = vmatpush1.xpose.msra.mxu0 0.0
      %1342 = vmatprep.subr.mxu0 0.0
      %1343 = vmatpush1.xpose.msra.mxu0 0.0
      %1344 = vmatprep.subr.mxu0 0.0
      %1345 = vmatpush1.xpose.msra.mxu0 0.0
      %1346 = vmatprep.subr.mxu0 0.0
      %1347 = vmatpush1.xpose.msra.mxu0 0.0
      %1348 = vmatprep.subr.mxu0 0.0
      %1349 = vmatpush1.xpose.msra.mxu0 0.0
      %1350 = vmatprep.subr.mxu0 0.0
      %1351 = vmatpush1.xpose.msra.mxu0 0.0
      %1352 = vmatprep.mubr.f32.mxu0 0.0
      %1353 = vmatmul.mubr.f32.gmra.mrb[0].mxu0 %v1284
      %v1354 = vpop.f32.mrb[0].mxu0
      %v1355 = vadd.f32 0.0, %v1354
      %v1356 = vpop.f32.mrb[0].mxu0
      %1357 = vdwg.mxu0
      %v1358 = vmul.f32 %v1355, 0.17677669
      %v1359 = vsel %vm1015, %v1358, -inf
      %1360 = vmax.xlane.f32.xlu0 %v1359
      %v1361 = vpop.xlane.xlu0 %1360
      %v1362 = vsub.f32 %v1358, %v1361
      %v1363 = vmul.f32 %v1362, 1.442695
      %v1364 = vpow.pop %v1363
      %v1365 = vsel %vm1015, %v1364, 0.0
      %1366 = vadd.xlane.f32.xlu0 %v1365
      %v1367 = vpop.xlane.xlu0 %1366
      %v1368 = vrcp.pop %v1367
      %v1369 = vmul.f32 %v1364, %v1368
      %v1371 = vsel %vm1015, %v1369, 0
      %1373 = vmatprep.subr.mxu0 0.0
      %1374 = vmatpush1.msra.mxu0 %v1277
      %1375 = vmatprep.subr.mxu0 0.0
      %1376 = vmatpush1.msra.mxu0 0.0
      %1377 = vmatprep.subr.mxu0 0.0
      %1378 = vmatpush1.msra.mxu0 0.0
      %1379 = vmatprep.subr.mxu0 0.0
      %1380 = vmatpush1.msra.mxu0 0.0
      %1381 = vmatprep.subr.mxu0 0.0
      %1382 = vmatpush1.msra.mxu0 0.0
      %1383 = vmatprep.subr.mxu0 0.0
      %1384 = vmatpush1.msra.mxu0 0.0
      %1385 = vmatprep.subr.mxu0 0.0
      %1386 = vmatpush1.msra.mxu0 0.0
      %1387 = vmatprep.subr.mxu0 0.0
      %1388 = vmatpush1.msra.mxu0 0.0
      %1389 = vmatprep.subr.mxu0 0.0
      %1390 = vmatpush1.msra.mxu0 0.0
      %1391 = vmatprep.subr.mxu0 0.0
      %1392 = vmatpush1.msra.mxu0 0.0
      %1393 = vmatprep.subr.mxu0 0.0
      %1394 = vmatpush1.msra.mxu0 0.0
      %1395 = vmatprep.subr.mxu0 0.0
      %1396 = vmatpush1.msra.mxu0 0.0
      %1397 = vmatprep.subr.mxu0 0.0
      %1398 = vmatpush1.msra.mxu0 0.0
      %1399 = vmatprep.subr.mxu0 0.0
      %1400 = vmatpush1.msra.mxu0 0.0
      %1401 = vmatprep.subr.mxu0 0.0
      %1402 = vmatpush1.msra.mxu0 0.0
      %1403 = vmatprep.subr.mxu0 0.0
      %1404 = vmatpush1.msra.mxu0 0.0
      %1405 = vmatprep.subr.mxu0 0.0
      %1406 = vmatpush1.msra.mxu0 0.0
      %1407 = vmatprep.subr.mxu0 0.0
      %1408 = vmatpush1.msra.mxu0 0.0
      %1409 = vmatprep.subr.mxu0 0.0
      %1410 = vmatpush1.msra.mxu0 0.0
      %1411 = vmatprep.subr.mxu0 0.0
      %1412 = vmatpush1.msra.mxu0 0.0
      %1413 = vmatprep.subr.mxu0 0.0
      %1414 = vmatpush1.msra.mxu0 0.0
      %1415 = vmatprep.subr.mxu0 0.0
      %1416 = vmatpush1.msra.mxu0 0.0
      %1417 = vmatprep.subr.mxu0 0.0
      %1418 = vmatpush1.msra.mxu0 0.0
      %1419 = vmatprep.subr.mxu0 0.0
      %1420 = vmatpush1.msra.mxu0 0.0
      %1421 = vmatprep.subr.mxu0 0.0
      %1422 = vmatpush1.msra.mxu0 0.0
      %1423 = vmatprep.subr.mxu0 0.0
      %1424 = vmatpush1.msra.mxu0 0.0
      %1425 = vmatprep.subr.mxu0 0.0
      %1426 = vmatpush1.msra.mxu0 0.0
      %1427 = vmatprep.subr.mxu0 0.0
      %1428 = vmatpush1.msra.mxu0 0.0
      %1429 = vmatprep.subr.mxu0 0.0
      %1430 = vmatpush1.msra.mxu0 0.0
      %1431 = vmatprep.subr.mxu0 0.0
      %1432 = vmatpush1.msra.mxu0 0.0
      %1433 = vmatprep.subr.mxu0 0.0
      %1434 = vmatpush1.msra.mxu0 0.0
      %1435 = vmatprep.subr.mxu0 0.0
      %1436 = vmatpush1.msra.mxu0 0.0
      %1437 = vmatprep.mubr.f32.mxu0 0.0
      %1438 = vmatmul.mubr.f32.gmra.mrb[0].mxu0 %v1371
      %v1439 = vpop.f32.mrb[0].mxu0
      %v1440 = vadd.f32 0.0, %v1439
      %v1441 = vpop.f32.mrb[0].mxu0
      %1442 = vdwg.mxu0
      %s1443 = scalar_lea.vmem %s446, 16
      %1444 = vst.msk [vmem:[%s1443] sm:$0xff] %vm471, %v1440
      %p1445 = scmp.lt.s32.totalorder %s21, 1
      %s1446 = scalar_select %p1445, %s21, 1
      %s1447 = smul.addr %s1446, 3
      %s1448 = smul.addr %s1447, 8
      %s1449 = scalar_lea.vmem %s8, %s1448
      %p1450 = scmp.lt.s32.totalorder %s21, 1
      %s1451 = scalar_select %p1450, %s21, 1
      %s1452 = smul.addr %s1451, 8
      %s1453 = scalar_lea.vmem %s9, %s1452
      // Predicated region
      $region53: #{en2_forward.4} parent=51 // pred_check
        %p1454 = pneg %p247
      $region54: #{en2_forward.4} parent=51 // pred_check_branch
        %1456 = sbr.rel (%p1454) target = $region56
      $region55: #{en2_forward.4} parent=51 // pred_region
        _
      $region56: #{en2_forward.4} parent=51 // pred_fallthru
        _
      // Predicated region
      $region57: #{en2_forward.4} parent=51 // pred_check
        %p1457 = pneg %p273
      $region58: #{en2_forward.4} parent=51 // pred_check_branch
        %1459 = sbr.rel (%p1457) target = $region60
      $region59: #{en2_forward.4} parent=51 // pred_region
        _
      $region60: #{en2_forward.4} parent=51 // pred_fallthru
        _
    $region52: #{en2_forward.4} parent=5 // pred_fallthru
      _
    %p1460 = scmp.le.s32.totalorder 2, %s16
    // Predicated region
    $region61: #{en2_forward.4} parent=5 // pred_check
      %p1461 = pneg %p1460
    $region62: #{en2_forward.4} parent=5 // pred_check_branch
      %1463 = sbr.rel (%p1461) target = $region64
    $region63: #{en2_forward.4} parent=5 // pred_region
      %s1464 = ssub.s32 %s16, 2
      // Predicated region
      $region65: #{en2_forward.4} parent=63 // pred_check
        %p1465 = pneg %p253
      $region66: #{en2_forward.4} parent=63 // pred_check_branch
        %1467 = sbr.rel (%p1465) target = $region68
      $region67: #{en2_forward.4} parent=63 // pred_region
        %p1468 = scmp.lt.s32.totalorder %s22, 1
        %s1469 = scalar_select %p1468, %s22, 1
        %s1470 = smul.addr %s1469, 3
        %s1471 = smul.addr %s1470, 8
        %s1472 = scalar_lea.vmem %s8, %s1471
      $region68: #{en2_forward.4} parent=63 // pred_fallthru
        _
      // Predicated region
      $region69: #{en2_forward.4} parent=63 // pred_check
        %p1473 = pneg %p279
      $region70: #{en2_forward.4} parent=63 // pred_check_branch
        %1475 = sbr.rel (%p1473) target = $region72
      $region71: #{en2_forward.4} parent=63 // pred_region
        %p1476 = scmp.lt.s32.totalorder %s22, 1
        %s1477 = scalar_select %p1476, %s22, 1
        %s1478 = smul.addr %s1477, 8
        %s1479 = scalar_lea.vmem %s9, %s1478
      $region72: #{en2_forward.4} parent=63 // pred_fallthru
        _
    $region64: #{en2_forward.4} parent=5 // pred_fallthru
      _
  $region6: #{en2_forward.4} parent=0 // loop_footer
    %s20 = sadd.s32 1, %s16
  $region7: #{en2_forward.4} parent=0 // loop_footer_branch
    %15 = sbr.rel target = $region3
  $region8: #{en2_forward.4} parent=0 // loop_exit
    _

// kernel: en2_forward.7
$region0: #{en2_forward.7}
  #allocation0 [shape = 'u32[]', space=smem, size = 0x4, offset = 0x4, fixed_abs, tag = 'smem constant byte address 0x4 - core index']
  #allocation1 [shape = 'u32[144,128]{1,0:T(1,128)}', space=vmem, size = 0x12000, scoped, tag = 'internal scratch']
  %s0 = inlined_call_operand.vmem [shape: f32[8,48], index: 0, kind: input, shape index: {}]
  %s1 = inlined_call_operand.vmem [shape: f32[8,48], index: 1, kind: input, shape index: {}]
  %s2 = inlined_call_operand.vmem [shape: f32[8,48], index: 2, kind: input, shape index: {}]
  %s3 = inlined_call_operand.vmem [shape: f32[8,48], index: 3, kind: input, shape index: {}]
  %s4 = inlined_call_operand.vmem [shape: f32[48,48], index: 4, kind: input, shape index: {}]
  %s5 = inlined_call_operand.vmem [shape: f32[48,48], index: 5, kind: input, shape index: {}]
  %s6 = inlined_call_operand.vmem [shape: f32[1,48], index: 6, kind: input, shape index: {}]
  %s7 = inlined_call_operand.vmem [shape: f32[1,48], index: 7, kind: input, shape index: {}]
  %s8 = inlined_call_operand.vmem [shape: f32[48,48], index: 8, kind: input, shape index: {}]
  %s9 = inlined_call_operand.vmem [shape: f32[1,48], index: 9, kind: input, shape index: {}]
  %s10 = inlined_call_operand.vmem [shape: f32[1,48], index: 10, kind: input, shape index: {}]
  %s11 = inlined_call_operand.vmem [shape: f32[1,48], index: 11, kind: input, shape index: {}]
  %s12 = inlined_call_operand.vmem [shape: f32[1,48], index: 12, kind: input, shape index: {}]
  %s13 = inlined_call_operand.vmem [shape: f32[1,48], index: 13, kind: input, shape index: {}]
  %s14 = inlined_call_operand.vmem [shape: f32[48,48], index: 14, kind: input, shape index: {}]
  %s15 = inlined_call_operand.vmem [shape: f32[1,48], index: 15, kind: input, shape index: {}]
  %s16 = inlined_call_operand.vmem [shape: f32[1,48], index: 16, kind: input, shape index: {}]
  %s17 = inlined_call_operand.vmem [shape: f32[1,48], index: 17, kind: input, shape index: {}]
  %s18 = inlined_call_operand.vmem [shape: f32[48,48], index: 18, kind: input, shape index: {}]
  %s19 = inlined_call_operand.vmem [shape: f32[48,48], index: 19, kind: input, shape index: {}]
  %s20 = inlined_call_operand.vmem [shape: f32[1,48], index: 20, kind: input, shape index: {}]
  %s21 = inlined_call_operand.hbm [shape: f32[8,48], index: 21, kind: output, shape index: {}]
  %s22 = sld [smem:[#allocation0]]
  $region94: #{en2_forward.7} parent=0
    _
  %s24 = ssub.s32 1, %s22
  %s25 = scalar_select 0, %s24, %s22
  $region1: #{en2_forward.7} parent=0
    #allocation2 [shape = 'u8[4096]{0}', space=vmem, size = 0x1000, scoped, tag = 'output window, operand 0, single buffered']
    #allocation3 [shape = 's32[1]{0}', space=sflag, size = 0x4, scoped, tag = 'scoped memory for en2_forward.7']
    %26 = vsyncpa [#allocation3], 0
    // Predicated region
    $region2: #{en2_forward.7} parent=1 // pred_check
      _
    $region3: #{en2_forward.7} parent=1 // pred_check_branch
      %28 = sbr.rel (0) target = $region5
    $region4: #{en2_forward.7} parent=1 // pred_region
      _
    $region5: #{en2_forward.7} parent=1 // pred_fallthru
      _
    // Predicated region
    $region6: #{en2_forward.7} parent=1 // pred_check
      _
    $region7: #{en2_forward.7} parent=1 // pred_check_branch
      %30 = sbr.rel (0) target = $region9
    $region8: #{en2_forward.7} parent=1 // pred_region
      _
    $region9: #{en2_forward.7} parent=1 // pred_fallthru
      _
    // Predicated region
    $region10: #{en2_forward.7} parent=1 // pred_check
      _
    $region11: #{en2_forward.7} parent=1 // pred_check_branch
      %32 = sbr.rel (0) target = $region13
    $region12: #{en2_forward.7} parent=1 // pred_region
      _
    $region13: #{en2_forward.7} parent=1 // pred_fallthru
      _
    // Predicated region
    $region14: #{en2_forward.7} parent=1 // pred_check
      _
    $region15: #{en2_forward.7} parent=1 // pred_check_branch
      %34 = sbr.rel (0) target = $region17
    $region16: #{en2_forward.7} parent=1 // pred_region
      _
    $region17: #{en2_forward.7} parent=1 // pred_fallthru
      _
    // Predicated region
    $region18: #{en2_forward.7} parent=1 // pred_check
      _
    $region19: #{en2_forward.7} parent=1 // pred_check_branch
      %36 = sbr.rel (0) target = $region21
    $region20: #{en2_forward.7} parent=1 // pred_region
      _
    $region21: #{en2_forward.7} parent=1 // pred_fallthru
      _
    // Predicated region
    $region22: #{en2_forward.7} parent=1 // pred_check
      _
    $region23: #{en2_forward.7} parent=1 // pred_check_branch
      %38 = sbr.rel (0) target = $region25
    $region24: #{en2_forward.7} parent=1 // pred_region
      _
    $region25: #{en2_forward.7} parent=1 // pred_fallthru
      _
    // Predicated region
    $region26: #{en2_forward.7} parent=1 // pred_check
      _
    $region27: #{en2_forward.7} parent=1 // pred_check_branch
      %40 = sbr.rel (0) target = $region29
    $region28: #{en2_forward.7} parent=1 // pred_region
      _
    $region29: #{en2_forward.7} parent=1 // pred_fallthru
      _
    // Predicated region
    $region30: #{en2_forward.7} parent=1 // pred_check
      _
    $region31: #{en2_forward.7} parent=1 // pred_check_branch
      %42 = sbr.rel (0) target = $region33
    $region32: #{en2_forward.7} parent=1 // pred_region
      _
    $region33: #{en2_forward.7} parent=1 // pred_fallthru
      _
    // Predicated region
    $region34: #{en2_forward.7} parent=1 // pred_check
      _
    $region35: #{en2_forward.7} parent=1 // pred_check_branch
      %44 = sbr.rel (0) target = $region37
    $region36: #{en2_forward.7} parent=1 // pred_region
      _
    $region37: #{en2_forward.7} parent=1 // pred_fallthru
      _
    // Predicated region
    $region38: #{en2_forward.7} parent=1 // pred_check
      _
    $region39: #{en2_forward.7} parent=1 // pred_check_branch
      %46 = sbr.rel (0) target = $region41
    $region40: #{en2_forward.7} parent=1 // pred_region
      _
    $region41: #{en2_forward.7} parent=1 // pred_fallthru
      _
    // Predicated region
    $region42: #{en2_forward.7} parent=1 // pred_check
      _
    $region43: #{en2_forward.7} parent=1 // pred_check_branch
      %48 = sbr.rel (0) target = $region45
    $region44: #{en2_forward.7} parent=1 // pred_region
      _
    $region45: #{en2_forward.7} parent=1 // pred_fallthru
      _
    // Predicated region
    $region46: #{en2_forward.7} parent=1 // pred_check
      _
    $region47: #{en2_forward.7} parent=1 // pred_check_branch
      %50 = sbr.rel (0) target = $region49
    $region48: #{en2_forward.7} parent=1 // pred_region
      _
    $region49: #{en2_forward.7} parent=1 // pred_fallthru
      _
    // Predicated region
    $region50: #{en2_forward.7} parent=1 // pred_check
      _
    $region51: #{en2_forward.7} parent=1 // pred_check_branch
      %52 = sbr.rel (0) target = $region53
    $region52: #{en2_forward.7} parent=1 // pred_region
      _
    $region53: #{en2_forward.7} parent=1 // pred_fallthru
      _
    // Predicated region
    $region54: #{en2_forward.7} parent=1 // pred_check
      _
    $region55: #{en2_forward.7} parent=1 // pred_check_branch
      %54 = sbr.rel (0) target = $region57
    $region56: #{en2_forward.7} parent=1 // pred_region
      _
    $region57: #{en2_forward.7} parent=1 // pred_fallthru
      _
    // Predicated region
    $region58: #{en2_forward.7} parent=1 // pred_check
      _
    $region59: #{en2_forward.7} parent=1 // pred_check_branch
      %56 = sbr.rel (0) target = $region61
    $region60: #{en2_forward.7} parent=1 // pred_region
      _
    $region61: #{en2_forward.7} parent=1 // pred_fallthru
      _
    // Predicated region
    $region62: #{en2_forward.7} parent=1 // pred_check
      _
    $region63: #{en2_forward.7} parent=1 // pred_check_branch
      %58 = sbr.rel (0) target = $region65
    $region64: #{en2_forward.7} parent=1 // pred_region
      _
    $region65: #{en2_forward.7} parent=1 // pred_fallthru
      _
    // Predicated region
    $region66: #{en2_forward.7} parent=1 // pred_check
      _
    $region67: #{en2_forward.7} parent=1 // pred_check_branch
      %60 = sbr.rel (0) target = $region69
    $region68: #{en2_forward.7} parent=1 // pred_region
      _
    $region69: #{en2_forward.7} parent=1 // pred_fallthru
      _
    // Predicated region
    $region70: #{en2_forward.7} parent=1 // pred_check
      _
    $region71: #{en2_forward.7} parent=1 // pred_check_branch
      %62 = sbr.rel (0) target = $region73
    $region72: #{en2_forward.7} parent=1 // pred_region
      _
    $region73: #{en2_forward.7} parent=1 // pred_fallthru
      _
    // Predicated region
    $region74: #{en2_forward.7} parent=1 // pred_check
      _
    $region75: #{en2_forward.7} parent=1 // pred_check_branch
      %64 = sbr.rel (0) target = $region77
    $region76: #{en2_forward.7} parent=1 // pred_region
      _
    $region77: #{en2_forward.7} parent=1 // pred_fallthru
      _
    // Predicated region
    $region78: #{en2_forward.7} parent=1 // pred_check
      _
    $region79: #{en2_forward.7} parent=1 // pred_check_branch
      %66 = sbr.rel (0) target = $region81
    $region80: #{en2_forward.7} parent=1 // pred_region
      _
    $region81: #{en2_forward.7} parent=1 // pred_fallthru
      _
    // Predicated region
    $region82: #{en2_forward.7} parent=1 // pred_check
      _
    $region83: #{en2_forward.7} parent=1 // pred_check_branch
      %68 = sbr.rel (0) target = $region85
    $region84: #{en2_forward.7} parent=1 // pred_region
      _
    $region85: #{en2_forward.7} parent=1 // pred_fallthru
      _
    %v69 = vld [vmem:[%s0] sm:$0xff]
    %v70 = vld [vmem:[%s4] sm:$0xff]
    %v71 = vld [vmem:[%s4 + $0x8] sm:$0xff]
    %v72 = vld [vmem:[%s4 + $0x10] sm:$0xff]
    %v73 = vld [vmem:[%s4 + $0x18] sm:$0xff]
    %v74 = vld [vmem:[%s4 + $0x20] sm:$0xff]
    %v75 = vld [vmem:[%s4 + $0x28] sm:$0xff]
    %v76 = vld [vmem:[%s2] sm:$0xff]
    %vm77 = vcmask 392192
    %v79 = vsel %vm77, %v69, 0
    %v82 = vsel %vm77, %v70, 0
    %v85 = vsel %vm77, %v71, 0
    %v88 = vsel %vm77, %v72, 0
    %v91 = vsel %vm77, %v73, 0
    %v94 = vsel %vm77, %v74, 0
    %v97 = vsel %vm77, %v75, 0
    %99 = vmatprep.subr.mxu0 0.0
    %100 = vmatpush1.xpose.msra.mxu0 %v82
    %101 = vmatprep.subr.mxu0 0.0
    %102 = vmatpush1.xpose.msra.mxu0 %v85
    %103 = vmatprep.subr.mxu0 0.0
    %104 = vmatpush1.xpose.msra.mxu0 %v88
    %105 = vmatprep.subr.mxu0 0.0
    %106 = vmatpush1.xpose.msra.mxu0 %v91
    %107 = vmatprep.subr.mxu0 0.0
    %108 = vmatpush1.xpose.msra.mxu0 %v94
    %109 = vmatprep.subr.mxu0 0.0
    %110 = vmatpush1.xpose.msra.mxu0 %v97
    %111 = vmatprep.subr.mxu0 0.0
    %112 = vmatpush1.xpose.msra.mxu0 0.0
    %113 = vmatprep.subr.mxu0 0.0
    %114 = vmatpush1.xpose.msra.mxu0 0.0
    %115 = vmatprep.subr.mxu0 0.0
    %116 = vmatpush1.xpose.msra.mxu0 0.0
    %117 = vmatprep.subr.mxu0 0.0
    %118 = vmatpush1.xpose.msra.mxu0 0.0
    %119 = vmatprep.subr.mxu0 0.0
    %120 = vmatpush1.xpose.msra.mxu0 0.0
    %121 = vmatprep.subr.mxu0 0.0
    %122 = vmatpush1.xpose.msra.mxu0 0.0
    %123 = vmatprep.subr.mxu0 0.0
    %124 = vmatpush1.xpose.msra.mxu0 0.0
    %125 = vmatprep.subr.mxu0 0.0
    %126 = vmatpush1.xpose.msra.mxu0 0.0
    %127 = vmatprep.subr.mxu0 0.0
    %128 = vmatpush1.xpose.msra.mxu0 0.0
    %129 = vmatprep.subr.mxu0 0.0
    %130 = vmatpush1.xpose.msra.mxu0 0.0
    %131 = vmatprep.subr.mxu0 0.0
    %132 = vmatpush1.xpose.msra.mxu0 0.0
    %133 = vmatprep.subr.mxu0 0.0
    %134 = vmatpush1.xpose.msra.mxu0 0.0
    %135 = vmatprep.subr.mxu0 0.0
    %136 = vmatpush1.xpose.msra.mxu0 0.0
    %137 = vmatprep.subr.mxu0 0.0
    %138 = vmatpush1.xpose.msra.mxu0 0.0
    %139 = vmatprep.subr.mxu0 0.0
    %140 = vmatpush1.xpose.msra.mxu0 0.0
    %141 = vmatprep.subr.mxu0 0.0
    %142 = vmatpush1.xpose.msra.mxu0 0.0
    %143 = vmatprep.subr.mxu0 0.0
    %144 = vmatpush1.xpose.msra.mxu0 0.0
    %145 = vmatprep.subr.mxu0 0.0
    %146 = vmatpush1.xpose.msra.mxu0 0.0
    %147 = vmatprep.subr.mxu0 0.0
    %148 = vmatpush1.xpose.msra.mxu0 0.0
    %149 = vmatprep.subr.mxu0 0.0
    %150 = vmatpush1.xpose.msra.mxu0 0.0
    %151 = vmatprep.subr.mxu0 0.0
    %152 = vmatpush1.xpose.msra.mxu0 0.0
    %153 = vmatprep.subr.mxu0 0.0
    %154 = vmatpush1.xpose.msra.mxu0 0.0
    %155 = vmatprep.subr.mxu0 0.0
    %156 = vmatpush1.xpose.msra.mxu0 0.0
    %157 = vmatprep.subr.mxu0 0.0
    %158 = vmatpush1.xpose.msra.mxu0 0.0
    %159 = vmatprep.subr.mxu0 0.0
    %160 = vmatpush1.xpose.msra.mxu0 0.0
    %161 = vmatprep.subr.mxu0 0.0
    %162 = vmatpush1.xpose.msra.mxu0 0.0
    %163 = vmatprep.mubr.f32.mxu0 0.0
    %164 = vmatmul.mubr.f32.gmra.mrb[0].mxu0 %v79
    %v165 = vpop.f32.mrb[0].mxu0
    %v166 = vadd.f32 %v76, %v165
    %v167 = vpop.f32.mrb[0].mxu0
    %168 = vdwg.mxu0
    %v169 = vld [vmem:[%s6] sm:$0x1]
    %v170 = vld [vmem:[%s7] sm:$0x1]
    %v171 = vsel %vm77, %v166, 0.0
    %172 = vadd.xlane.f32.xlu0 %v171
    %v173 = vpop.xlane.xlu0 %172
    %v174 = vrcp.pop 48.0
    %v175 = vmul.f32 %v173, %v174
    %v176 = vsub.f32 %v166, %v175
    %v177 = vmul.f32 %v176, %v176
    %v178 = vsel %vm77, %v177, 0.0
    %179 = vadd.xlane.f32.xlu0 %v178
    %v180 = vpop.xlane.xlu0 %179
    %v181 = vmul.f32 %v180, %v174
    %v182 = vadd.f32 %v181, 1e-05
    %v183 = vrsqrt.pop %v182
    %v184 = vmul.f32 %v176, %v183
    %v186 = vlaneseq
    %v187 = vshrl.u32 %v186, 7
    %v188 = vsub.s32 0, %v187
    %v189 = vrot.slane %v169, %v188
    %v191 = vmul.f32 %v184, %v189
    %v193 = vlaneseq
    %v194 = vshrl.u32 %v193, 7
    %v195 = vsub.s32 0, %v194
    %v196 = vrot.slane %v170, %v195
    %v198 = vadd.f32 %v191, %v196
    %v199 = vld [vmem:[%s8] sm:$0xff]
    %v200 = vld [vmem:[%s8 + $0x8] sm:$0xff]
    %v201 = vld [vmem:[%s8 + $0x10] sm:$0xff]
    %v202 = vld [vmem:[%s8 + $0x18] sm:$0xff]
    %v203 = vld [vmem:[%s8 + $0x20] sm:$0xff]
    %v204 = vld [vmem:[%s8 + $0x28] sm:$0xff]
    %v205 = vld [vmem:[%s9] sm:$0x1]
    %v207 = vlaneseq
    %v208 = vshrl.u32 %v207, 7
    %v209 = vsub.s32 0, %v208
    %v210 = vrot.slane %v205, %v209
    %v213 = vsel %vm77, %v198, 0
    %v216 = vsel %vm77, %v199, 0
    %v219 = vsel %vm77, %v200, 0
    %v222 = vsel %vm77, %v201, 0
    %v225 = vsel %vm77, %v202, 0
    %v228 = vsel %vm77, %v203, 0
    %v231 = vsel %vm77, %v204, 0
    %233 = vmatprep.subr.mxu0 0.0
    %234 = vmatpush1.xpose.msra.mxu0 %v216
    %235 = vmatprep.subr.mxu0 0.0
    %236 = vmatpush1.xpose.msra.mxu0 %v219
    %237 = vmatprep.subr.mxu0 0.0
    %238 = vmatpush1.xpose.msra.mxu0 %v222
    %239 = vmatprep.subr.mxu0 0.0
    %240 = vmatpush1.xpose.msra.mxu0 %v225
    %241 = vmatprep.subr.mxu0 0.0
    %242 = vmatpush1.xpose.msra.mxu0 %v228
    %243 = vmatprep.subr.mxu0 0.0
    %244 = vmatpush1.xpose.msra.mxu0 %v231
    %245 = vmatprep.subr.mxu0 0.0
    %246 = vmatpush1.xpose.msra.mxu0 0.0
    %247 = vmatprep.subr.mxu0 0.0
    %248 = vmatpush1.xpose.msra.mxu0 0.0
    %249 = vmatprep.subr.mxu0 0.0
    %250 = vmatpush1.xpose.msra.mxu0 0.0
    %251 = vmatprep.subr.mxu0 0.0
    %252 = vmatpush1.xpose.msra.mxu0 0.0
    %253 = vmatprep.subr.mxu0 0.0
    %254 = vmatpush1.xpose.msra.mxu0 0.0
    %255 = vmatprep.subr.mxu0 0.0
    %256 = vmatpush1.xpose.msra.mxu0 0.0
    %257 = vmatprep.subr.mxu0 0.0
    %258 = vmatpush1.xpose.msra.mxu0 0.0
    %259 = vmatprep.subr.mxu0 0.0
    %260 = vmatpush1.xpose.msra.mxu0 0.0
    %261 = vmatprep.subr.mxu0 0.0
    %262 = vmatpush1.xpose.msra.mxu0 0.0
    %263 = vmatprep.subr.mxu0 0.0
    %264 = vmatpush1.xpose.msra.mxu0 0.0
    %265 = vmatprep.subr.mxu0 0.0
    %266 = vmatpush1.xpose.msra.mxu0 0.0
    %267 = vmatprep.subr.mxu0 0.0
    %268 = vmatpush1.xpose.msra.mxu0 0.0
    %269 = vmatprep.subr.mxu0 0.0
    %270 = vmatpush1.xpose.msra.mxu0 0.0
    %271 = vmatprep.subr.mxu0 0.0
    %272 = vmatpush1.xpose.msra.mxu0 0.0
    %273 = vmatprep.subr.mxu0 0.0
    %274 = vmatpush1.xpose.msra.mxu0 0.0
    %275 = vmatprep.subr.mxu0 0.0
    %276 = vmatpush1.xpose.msra.mxu0 0.0
    %277 = vmatprep.subr.mxu0 0.0
    %278 = vmatpush1.xpose.msra.mxu0 0.0
    %279 = vmatprep.subr.mxu0 0.0
    %280 = vmatpush1.xpose.msra.mxu0 0.0
    %281 = vmatprep.subr.mxu0 0.0
    %282 = vmatpush1.xpose.msra.mxu0 0.0
    %283 = vmatprep.subr.mxu0 0.0
    %284 = vmatpush1.xpose.msra.mxu0 0.0
    %285 = vmatprep.subr.mxu0 0.0
    %286 = vmatpush1.xpose.msra.mxu0 0.0
    %287 = vmatprep.subr.mxu0 0.0
    %288 = vmatpush1.xpose.msra.mxu0 0.0
    %289 = vmatprep.subr.mxu0 0.0
    %290 = vmatpush1.xpose.msra.mxu0 0.0
    %291 = vmatprep.subr.mxu0 0.0
    %292 = vmatpush1.xpose.msra.mxu0 0.0
    %293 = vmatprep.subr.mxu0 0.0
    %294 = vmatpush1.xpose.msra.mxu0 0.0
    %295 = vmatprep.subr.mxu0 0.0
    %296 = vmatpush1.xpose.msra.mxu0 0.0
    %297 = vmatprep.mubr.f32.mxu0 0.0
    %298 = vmatmul.mubr.f32.gmra.mrb[0].mxu0 %v213
    %v299 = vpop.f32.mrb[0].mxu0
    %v300 = vadd.f32 %v210, %v299
    %v301 = vpop.f32.mrb[0].mxu0
    %302 = vdwg.mxu0
    %v303 = vadd.f32 %v300, %v198
    %v304 = vld [vmem:[%s10] sm:$0x1]
    %v305 = vld [vmem:[%s11] sm:$0x1]
    %v306 = vsel %vm77, %v303, 0.0
    %307 = vadd.xlane.f32.xlu0 %v306
    %v308 = vpop.xlane.xlu0 %307
    %v309 = vmul.f32 %v308, %v174
    %v310 = vsub.f32 %v303, %v309
    %v311 = vmul.f32 %v310, %v310
    %v312 = vsel %vm77, %v311, 0.0
    %313 = vadd.xlane.f32.xlu0 %v312
    %v314 = vpop.xlane.xlu0 %313
    %v315 = vmul.f32 %v314, %v174
    %v316 = vadd.f32 %v315, 1e-05
    %v317 = vrsqrt.pop %v316
    %v318 = vmul.f32 %v310, %v317
    %v320 = vlaneseq
    %v321 = vshrl.u32 %v320, 7
    %v322 = vsub.s32 0, %v321
    %v323 = vrot.slane %v304, %v322
    %v325 = vmul.f32 %v318, %v323
    %v327 = vlaneseq
    %v328 = vshrl.u32 %v327, 7
    %v329 = vsub.s32 0, %v328
    %v330 = vrot.slane %v305, %v329
    %v332 = vadd.f32 %v325, %v330
    %v333 = vld [vmem:[%s1] sm:$0xff]
    %v334 = vld [vmem:[%s5] sm:$0xff]
    %v335 = vld [vmem:[%s5 + $0x8] sm:$0xff]
    %v336 = vld [vmem:[%s5 + $0x10] sm:$0xff]
    %v337 = vld [vmem:[%s5 + $0x18] sm:$0xff]
    %v338 = vld [vmem:[%s5 + $0x20] sm:$0xff]
    %v339 = vld [vmem:[%s5 + $0x28] sm:$0xff]
    %v340 = vld [vmem:[%s3] sm:$0xff]
    %v342 = vsel %vm77, %v333, 0
    %v345 = vsel %vm77, %v334, 0
    %v348 = vsel %vm77, %v335, 0
    %v351 = vsel %vm77, %v336, 0
    %v354 = vsel %vm77, %v337, 0
    %v357 = vsel %vm77, %v338, 0
    %v360 = vsel %vm77, %v339, 0
    %362 = vmatprep.subr.mxu0 0.0
    %363 = vmatpush1.xpose.msra.mxu0 %v345
    %364 = vmatprep.subr.mxu0 0.0
    %365 = vmatpush1.xpose.msra.mxu0 %v348
    %366 = vmatprep.subr.mxu0 0.0
    %367 = vmatpush1.xpose.msra.mxu0 %v351
    %368 = vmatprep.subr.mxu0 0.0
    %369 = vmatpush1.xpose.msra.mxu0 %v354
    %370 = vmatprep.subr.mxu0 0.0
    %371 = vmatpush1.xpose.msra.mxu0 %v357
    %372 = vmatprep.subr.mxu0 0.0
    %373 = vmatpush1.xpose.msra.mxu0 %v360
    %374 = vmatprep.subr.mxu0 0.0
    %375 = vmatpush1.xpose.msra.mxu0 0.0
    %376 = vmatprep.subr.mxu0 0.0
    %377 = vmatpush1.xpose.msra.mxu0 0.0
    %378 = vmatprep.subr.mxu0 0.0
    %379 = vmatpush1.xpose.msra.mxu0 0.0
    %380 = vmatprep.subr.mxu0 0.0
    %381 = vmatpush1.xpose.msra.mxu0 0.0
    %382 = vmatprep.subr.mxu0 0.0
    %383 = vmatpush1.xpose.msra.mxu0 0.0
    %384 = vmatprep.subr.mxu0 0.0
    %385 = vmatpush1.xpose.msra.mxu0 0.0
    %386 = vmatprep.subr.mxu0 0.0
    %387 = vmatpush1.xpose.msra.mxu0 0.0
    %388 = vmatprep.subr.mxu0 0.0
    %389 = vmatpush1.xpose.msra.mxu0 0.0
    %390 = vmatprep.subr.mxu0 0.0
    %391 = vmatpush1.xpose.msra.mxu0 0.0
    %392 = vmatprep.subr.mxu0 0.0
    %393 = vmatpush1.xpose.msra.mxu0 0.0
    %394 = vmatprep.subr.mxu0 0.0
    %395 = vmatpush1.xpose.msra.mxu0 0.0
    %396 = vmatprep.subr.mxu0 0.0
    %397 = vmatpush1.xpose.msra.mxu0 0.0
    %398 = vmatprep.subr.mxu0 0.0
    %399 = vmatpush1.xpose.msra.mxu0 0.0
    %400 = vmatprep.subr.mxu0 0.0
    %401 = vmatpush1.xpose.msra.mxu0 0.0
    %402 = vmatprep.subr.mxu0 0.0
    %403 = vmatpush1.xpose.msra.mxu0 0.0
    %404 = vmatprep.subr.mxu0 0.0
    %405 = vmatpush1.xpose.msra.mxu0 0.0
    %406 = vmatprep.subr.mxu0 0.0
    %407 = vmatpush1.xpose.msra.mxu0 0.0
    %408 = vmatprep.subr.mxu0 0.0
    %409 = vmatpush1.xpose.msra.mxu0 0.0
    %410 = vmatprep.subr.mxu0 0.0
    %411 = vmatpush1.xpose.msra.mxu0 0.0
    %412 = vmatprep.subr.mxu0 0.0
    %413 = vmatpush1.xpose.msra.mxu0 0.0
    %414 = vmatprep.subr.mxu0 0.0
    %415 = vmatpush1.xpose.msra.mxu0 0.0
    %416 = vmatprep.subr.mxu0 0.0
    %417 = vmatpush1.xpose.msra.mxu0 0.0
    %418 = vmatprep.subr.mxu0 0.0
    %419 = vmatpush1.xpose.msra.mxu0 0.0
    %420 = vmatprep.subr.mxu0 0.0
    %421 = vmatpush1.xpose.msra.mxu0 0.0
    %422 = vmatprep.subr.mxu0 0.0
    %423 = vmatpush1.xpose.msra.mxu0 0.0
    %424 = vmatprep.subr.mxu0 0.0
    %425 = vmatpush1.xpose.msra.mxu0 0.0
    %426 = vmatprep.mubr.f32.mxu0 0.0
    %427 = vmatmul.mubr.f32.gmra.mrb[0].mxu0 %v342
    %v428 = vpop.f32.mrb[0].mxu0
    %v429 = vadd.f32 %v340, %v428
    %v430 = vpop.f32.mrb[0].mxu0
    %431 = vdwg.mxu0
    %v432 = vld [vmem:[%s12] sm:$0x1]
    %v433 = vld [vmem:[%s13] sm:$0x1]
    %v434 = vsel %vm77, %v429, 0.0
    %435 = vadd.xlane.f32.xlu0 %v434
    %v436 = vpop.xlane.xlu0 %435
    %v437 = vmul.f32 %v436, %v174
    %v438 = vsub.f32 %v429, %v437
    %v439 = vmul.f32 %v438, %v438
    %v440 = vsel %vm77, %v439, 0.0
    %441 = vadd.xlane.f32.xlu0 %v440
    %v442 = vpop.xlane.xlu0 %441
    %v443 = vmul.f32 %v442, %v174
    %v444 = vadd.f32 %v443, 1e-05
    %v445 = vrsqrt.pop %v444
    %v446 = vmul.f32 %v438, %v445
    %v448 = vlaneseq
    %v449 = vshrl.u32 %v448, 7
    %v450 = vsub.s32 0, %v449
    %v451 = vrot.slane %v432, %v450
    %v453 = vmul.f32 %v446, %v451
    %v455 = vlaneseq
    %v456 = vshrl.u32 %v455, 7
    %v457 = vsub.s32 0, %v456
    %v458 = vrot.slane %v433, %v457
    %v460 = vadd.f32 %v453, %v458
    %v461 = vld [vmem:[%s14] sm:$0xff]
    %v462 = vld [vmem:[%s14 + $0x8] sm:$0xff]
    %v463 = vld [vmem:[%s14 + $0x10] sm:$0xff]
    %v464 = vld [vmem:[%s14 + $0x18] sm:$0xff]
    %v465 = vld [vmem:[%s14 + $0x20] sm:$0xff]
    %v466 = vld [vmem:[%s14 + $0x28] sm:$0xff]
    %v467 = vld [vmem:[%s15] sm:$0x1]
    %v469 = vlaneseq
    %v470 = vshrl.u32 %v469, 7
    %v471 = vsub.s32 0, %v470
    %v472 = vrot.slane %v467, %v471
    %v475 = vsel %vm77, %v460, 0
    %v478 = vsel %vm77, %v461, 0
    %v481 = vsel %vm77, %v462, 0
    %v484 = vsel %vm77, %v463, 0
    %v487 = vsel %vm77, %v464, 0
    %v490 = vsel %vm77, %v465, 0
    %v493 = vsel %vm77, %v466, 0
    %495 = vmatprep.subr.mxu0 0.0
    %496 = vmatpush1.xpose.msra.mxu0 %v478
    %497 = vmatprep.subr.mxu0 0.0
    %498 = vmatpush1.xpose.msra.mxu0 %v481
    %499 = vmatprep.subr.mxu0 0.0
    %500 = vmatpush1.xpose.msra.mxu0 %v484
    %501 = vmatprep.subr.mxu0 0.0
    %502 = vmatpush1.xpose.msra.mxu0 %v487
    %503 = vmatprep.subr.mxu0 0.0
    %504 = vmatpush1.xpose.msra.mxu0 %v490
    %505 = vmatprep.subr.mxu0 0.0
    %506 = vmatpush1.xpose.msra.mxu0 %v493
    %507 = vmatprep.subr.mxu0 0.0
    %508 = vmatpush1.xpose.msra.mxu0 0.0
    %509 = vmatprep.subr.mxu0 0.0
    %510 = vmatpush1.xpose.msra.mxu0 0.0
    %511 = vmatprep.subr.mxu0 0.0
    %512 = vmatpush1.xpose.msra.mxu0 0.0
    %513 = vmatprep.subr.mxu0 0.0
    %514 = vmatpush1.xpose.msra.mxu0 0.0
    %515 = vmatprep.subr.mxu0 0.0
    %516 = vmatpush1.xpose.msra.mxu0 0.0
    %517 = vmatprep.subr.mxu0 0.0
    %518 = vmatpush1.xpose.msra.mxu0 0.0
    %519 = vmatprep.subr.mxu0 0.0
    %520 = vmatpush1.xpose.msra.mxu0 0.0
    %521 = vmatprep.subr.mxu0 0.0
    %522 = vmatpush1.xpose.msra.mxu0 0.0
    %523 = vmatprep.subr.mxu0 0.0
    %524 = vmatpush1.xpose.msra.mxu0 0.0
    %525 = vmatprep.subr.mxu0 0.0
    %526 = vmatpush1.xpose.msra.mxu0 0.0
    %527 = vmatprep.subr.mxu0 0.0
    %528 = vmatpush1.xpose.msra.mxu0 0.0
    %529 = vmatprep.subr.mxu0 0.0
    %530 = vmatpush1.xpose.msra.mxu0 0.0
    %531 = vmatprep.subr.mxu0 0.0
    %532 = vmatpush1.xpose.msra.mxu0 0.0
    %533 = vmatprep.subr.mxu0 0.0
    %534 = vmatpush1.xpose.msra.mxu0 0.0
    %535 = vmatprep.subr.mxu0 0.0
    %536 = vmatpush1.xpose.msra.mxu0 0.0
    %537 = vmatprep.subr.mxu0 0.0
    %538 = vmatpush1.xpose.msra.mxu0 0.0
    %539 = vmatprep.subr.mxu0 0.0
    %540 = vmatpush1.xpose.msra.mxu0 0.0
    %541 = vmatprep.subr.mxu0 0.0
    %542 = vmatpush1.xpose.msra.mxu0 0.0
    %543 = vmatprep.subr.mxu0 0.0
    %544 = vmatpush1.xpose.msra.mxu0 0.0
    %545 = vmatprep.subr.mxu0 0.0
    %546 = vmatpush1.xpose.msra.mxu0 0.0
    %547 = vmatprep.subr.mxu0 0.0
    %548 = vmatpush1.xpose.msra.mxu0 0.0
    %549 = vmatprep.subr.mxu0 0.0
    %550 = vmatpush1.xpose.msra.mxu0 0.0
    %551 = vmatprep.subr.mxu0 0.0
    %552 = vmatpush1.xpose.msra.mxu0 0.0
    %553 = vmatprep.subr.mxu0 0.0
    %554 = vmatpush1.xpose.msra.mxu0 0.0
    %555 = vmatprep.subr.mxu0 0.0
    %556 = vmatpush1.xpose.msra.mxu0 0.0
    %557 = vmatprep.subr.mxu0 0.0
    %558 = vmatpush1.xpose.msra.mxu0 0.0
    %559 = vmatprep.mubr.f32.mxu0 0.0
    %560 = vmatmul.mubr.f32.gmra.mrb[0].mxu0 %v475
    %v561 = vpop.f32.mrb[0].mxu0
    %v562 = vadd.f32 %v472, %v561
    %v563 = vpop.f32.mrb[0].mxu0
    %564 = vdwg.mxu0
    %v565 = vadd.f32 %v562, %v460
    %v566 = vld [vmem:[%s16] sm:$0x1]
    %v567 = vld [vmem:[%s17] sm:$0x1]
    %v568 = vsel %vm77, %v565, 0.0
    %569 = vadd.xlane.f32.xlu0 %v568
    %v570 = vpop.xlane.xlu0 %569
    %v571 = vmul.f32 %v570, %v174
    %v572 = vsub.f32 %v565, %v571
    %v573 = vmul.f32 %v572, %v572
    %v574 = vsel %vm77, %v573, 0.0
    %575 = vadd.xlane.f32.xlu0 %v574
    %v576 = vpop.xlane.xlu0 %575
    %v577 = vmul.f32 %v576, %v174
    %v578 = vadd.f32 %v577, 1e-05
    %v579 = vrsqrt.pop %v578
    %v580 = vmul.f32 %v572, %v579
    %v582 = vlaneseq
    %v583 = vshrl.u32 %v582, 7
    %v584 = vsub.s32 0, %v583
    %v585 = vrot.slane %v566, %v584
    %v587 = vmul.f32 %v580, %v585
    %v589 = vlaneseq
    %v590 = vshrl.u32 %v589, 7
    %v591 = vsub.s32 0, %v590
    %v592 = vrot.slane %v567, %v591
    %v594 = vadd.f32 %v587, %v592
    %v595 = vld [vmem:[%s18] sm:$0xff]
    %v596 = vld [vmem:[%s18 + $0x8] sm:$0xff]
    %v597 = vld [vmem:[%s18 + $0x10] sm:$0xff]
    %v598 = vld [vmem:[%s18 + $0x18] sm:$0xff]
    %v599 = vld [vmem:[%s18 + $0x20] sm:$0xff]
    %v600 = vld [vmem:[%s18 + $0x28] sm:$0xff]
    %v601 = vld [vmem:[%s19] sm:$0xff]
    %v602 = vld [vmem:[%s19 + $0x8] sm:$0xff]
    %v603 = vld [vmem:[%s19 + $0x10] sm:$0xff]
    %v604 = vld [vmem:[%s19 + $0x18] sm:$0xff]
    %v605 = vld [vmem:[%s19 + $0x20] sm:$0xff]
    %v606 = vld [vmem:[%s19 + $0x28] sm:$0xff]
    %v608 = vsel %vm77, %v594, 0
    %v611 = vsel %vm77, %v601, 0
    %v614 = vsel %vm77, %v602, 0
    %v617 = vsel %vm77, %v603, 0
    %v620 = vsel %vm77, %v604, 0
    %v623 = vsel %vm77, %v605, 0
    %v626 = vsel %vm77, %v606, 0
    %628 = vmatprep.subr.mxu0 0.0
    %629 = vmatpush1.xpose.msra.mxu0 %v611
    %630 = vmatprep.subr.mxu0 0.0
    %631 = vmatpush1.xpose.msra.mxu0 %v614
    %632 = vmatprep.subr.mxu0 0.0
    %633 = vmatpush1.xpose.msra.mxu0 %v617
    %634 = vmatprep.subr.mxu0 0.0
    %635 = vmatpush1.xpose.msra.mxu0 %v620
    %636 = vmatprep.subr.mxu0 0.0
    %637 = vmatpush1.xpose.msra.mxu0 %v623
    %638 = vmatprep.subr.mxu0 0.0
    %639 = vmatpush1.xpose.msra.mxu0 %v626
    %640 = vmatprep.subr.mxu0 0.0
    %641 = vmatpush1.xpose.msra.mxu0 0.0
    %642 = vmatprep.subr.mxu0 0.0
    %643 = vmatpush1.xpose.msra.mxu0 0.0
    %644 = vmatprep.subr.mxu0 0.0
    %645 = vmatpush1.xpose.msra.mxu0 0.0
    %646 = vmatprep.subr.mxu0 0.0
    %647 = vmatpush1.xpose.msra.mxu0 0.0
    %648 = vmatprep.subr.mxu0 0.0
    %649 = vmatpush1.xpose.msra.mxu0 0.0
    %650 = vmatprep.subr.mxu0 0.0
    %651 = vmatpush1.xpose.msra.mxu0 0.0
    %652 = vmatprep.subr.mxu0 0.0
    %653 = vmatpush1.xpose.msra.mxu0 0.0
    %654 = vmatprep.subr.mxu0 0.0
    %655 = vmatpush1.xpose.msra.mxu0 0.0
    %656 = vmatprep.subr.mxu0 0.0
    %657 = vmatpush1.xpose.msra.mxu0 0.0
    %658 = vmatprep.subr.mxu0 0.0
    %659 = vmatpush1.xpose.msra.mxu0 0.0
    %660 = vmatprep.subr.mxu0 0.0
    %661 = vmatpush1.xpose.msra.mxu0 0.0
    %662 = vmatprep.subr.mxu0 0.0
    %663 = vmatpush1.xpose.msra.mxu0 0.0
    %664 = vmatprep.subr.mxu0 0.0
    %665 = vmatpush1.xpose.msra.mxu0 0.0
    %666 = vmatprep.subr.mxu0 0.0
    %667 = vmatpush1.xpose.msra.mxu0 0.0
    %668 = vmatprep.subr.mxu0 0.0
    %669 = vmatpush1.xpose.msra.mxu0 0.0
    %670 = vmatprep.subr.mxu0 0.0
    %671 = vmatpush1.xpose.msra.mxu0 0.0
    %672 = vmatprep.subr.mxu0 0.0
    %673 = vmatpush1.xpose.msra.mxu0 0.0
    %674 = vmatprep.subr.mxu0 0.0
    %675 = vmatpush1.xpose.msra.mxu0 0.0
    %676 = vmatprep.subr.mxu0 0.0
    %677 = vmatpush1.xpose.msra.mxu0 0.0
    %678 = vmatprep.subr.mxu0 0.0
    %679 = vmatpush1.xpose.msra.mxu0 0.0
    %680 = vmatprep.subr.mxu0 0.0
    %681 = vmatpush1.xpose.msra.mxu0 0.0
    %682 = vmatprep.subr.mxu0 0.0
    %683 = vmatpush1.xpose.msra.mxu0 0.0
    %684 = vmatprep.subr.mxu0 0.0
    %685 = vmatpush1.xpose.msra.mxu0 0.0
    %686 = vmatprep.subr.mxu0 0.0
    %687 = vmatpush1.xpose.msra.mxu0 0.0
    %688 = vmatprep.subr.mxu0 0.0
    %689 = vmatpush1.xpose.msra.mxu0 0.0
    %690 = vmatprep.subr.mxu0 0.0
    %691 = vmatpush1.xpose.msra.mxu0 0.0
    %692 = vmatprep.mubr.f32.mxu0 0.0
    %693 = vmatmul.mubr.f32.gmra.mrb[0].mxu0 %v608
    %v694 = vpop.f32.mrb[0].mxu0
    %v695 = vadd.f32 0.0, %v694
    %v696 = vpop.f32.mrb[0].mxu0
    %697 = vdwg.mxu0
    %v699 = vsel %vm77, %v332, 0
    %v702 = vsel %vm77, %v595, 0
    %v705 = vsel %vm77, %v596, 0
    %v708 = vsel %vm77, %v597, 0
    %v711 = vsel %vm77, %v598, 0
    %v714 = vsel %vm77, %v599, 0
    %v717 = vsel %vm77, %v600, 0
    %719 = vmatprep.subr.mxu0 0.0
    %720 = vmatpush1.xpose.msra.mxu0 %v702
    %721 = vmatprep.subr.mxu0 0.0
    %722 = vmatpush1.xpose.msra.mxu0 %v705
    %723 = vmatprep.subr.mxu0 0.0
    %724 = vmatpush1.xpose.msra.mxu0 %v708
    %725 = vmatprep.subr.mxu0 0.0
    %726 = vmatpush1.xpose.msra.mxu0 %v711
    %727 = vmatprep.subr.mxu0 0.0
    %728 = vmatpush1.xpose.msra.mxu0 %v714
    %729 = vmatprep.subr.mxu0 0.0
    %730 = vmatpush1.xpose.msra.mxu0 %v717
    %731 = vmatprep.subr.mxu0 0.0
    %732 = vmatpush1.xpose.msra.mxu0 0.0
    %733 = vmatprep.subr.mxu0 0.0
    %734 = vmatpush1.xpose.msra.mxu0 0.0
    %735 = vmatprep.subr.mxu0 0.0
    %736 = vmatpush1.xpose.msra.mxu0 0.0
    %737 = vmatprep.subr.mxu0 0.0
    %738 = vmatpush1.xpose.msra.mxu0 0.0
    %739 = vmatprep.subr.mxu0 0.0
    %740 = vmatpush1.xpose.msra.mxu0 0.0
    %741 = vmatprep.subr.mxu0 0.0
    %742 = vmatpush1.xpose.msra.mxu0 0.0
    %743 = vmatprep.subr.mxu0 0.0
    %744 = vmatpush1.xpose.msra.mxu0 0.0
    %745 = vmatprep.subr.mxu0 0.0
    %746 = vmatpush1.xpose.msra.mxu0 0.0
    %747 = vmatprep.subr.mxu0 0.0
    %748 = vmatpush1.xpose.msra.mxu0 0.0
    %749 = vmatprep.subr.mxu0 0.0
    %750 = vmatpush1.xpose.msra.mxu0 0.0
    %751 = vmatprep.subr.mxu0 0.0
    %752 = vmatpush1.xpose.msra.mxu0 0.0
    %753 = vmatprep.subr.mxu0 0.0
    %754 = vmatpush1.xpose.msra.mxu0 0.0
    %755 = vmatprep.subr.mxu0 0.0
    %756 = vmatpush1.xpose.msra.mxu0 0.0
    %757 = vmatprep.subr.mxu0 0.0
    %758 = vmatpush1.xpose.msra.mxu0 0.0
    %759 = vmatprep.subr.mxu0 0.0
    %760 = vmatpush1.xpose.msra.mxu0 0.0
    %761 = vmatprep.subr.mxu0 0.0
    %762 = vmatpush1.xpose.msra.mxu0 0.0
    %763 = vmatprep.subr.mxu0 0.0
    %764 = vmatpush1.xpose.msra.mxu0 0.0
    %765 = vmatprep.subr.mxu0 0.0
    %766 = vmatpush1.xpose.msra.mxu0 0.0
    %767 = vmatprep.subr.mxu0 0.0
    %768 = vmatpush1.xpose.msra.mxu0 0.0
    %769 = vmatprep.subr.mxu0 0.0
    %770 = vmatpush1.xpose.msra.mxu0 0.0
    %771 = vmatprep.subr.mxu0 0.0
    %772 = vmatpush1.xpose.msra.mxu0 0.0
    %773 = vmatprep.subr.mxu0 0.0
    %774 = vmatpush1.xpose.msra.mxu0 0.0
    %775 = vmatprep.subr.mxu0 0.0
    %776 = vmatpush1.xpose.msra.mxu0 0.0
    %777 = vmatprep.subr.mxu0 0.0
    %778 = vmatpush1.xpose.msra.mxu0 0.0
    %779 = vmatprep.subr.mxu0 0.0
    %780 = vmatpush1.xpose.msra.mxu0 0.0
    %781 = vmatprep.subr.mxu0 0.0
    %782 = vmatpush1.xpose.msra.mxu0 0.0
    %783 = vmatprep.mubr.f32.mxu0 0.0
    %784 = vmatmul.mubr.f32.gmra.mrb[0].mxu0 %v699
    %v785 = vpop.f32.mrb[0].mxu0
    %v786 = vadd.f32 %v695, %v785
    %v787 = vpop.f32.mrb[0].mxu0
    %788 = vdwg.mxu0
    %v789 = vld [vmem:[%s20] sm:$0x1]
    %v791 = vlaneseq
    %v792 = vshrl.u32 %v791, 7
    %v793 = vsub.s32 0, %v792
    %v794 = vrot.slane %v789, %v793
    %v796 = vadd.f32 %v786, %v794
    %797 = vst.msk [vmem:[#allocation2] sm:$0xff] %vm77, %v796
    // Predicated region
    $region86: #{en2_forward.7} parent=1 // pred_check
      _
    $region87: #{en2_forward.7} parent=1 // pred_check_branch
      %799 = sbr.rel (0) target = $region89
    $region88: #{en2_forward.7} parent=1 // pred_region
      %s801 = ssub.s32 128, 128
      %802 = vsyncadd [#allocation3], %s801
      %s804 = sshll.u32 [#allocation2], 4
      %s805 = int_to_ptr.vmem [resolvable:$true] %s804
      %807 = dma.vmem_to_hbm [thread:$0]  %s805, 128, %s21, [#allocation3]
    $region89: #{en2_forward.7} parent=1 // pred_fallthru
      _
    // Predicated region
    $region90: #{en2_forward.7} parent=1 // pred_check
      _
    $region91: #{en2_forward.7} parent=1 // pred_check_branch
      %809 = sbr.rel (0) target = $region93
    $region92: #{en2_forward.7} parent=1 // pred_region
      %810 = dma.done [#allocation3], 128
    $region93: #{en2_forward.7} parent=1 // pred_fallthru
      _
    %811 = vsyncpa [#allocation3], 1

// kernel: en2_forward.6
$region0: #{en2_forward.6}
  #allocation0 [shape = 'u32[]', space=smem, size = 0x4, offset = 0x4, fixed_abs, tag = 'smem constant byte address 0x4 - core index']
  #allocation1 [shape = 'u32[144,128]{1,0:T(1,128)}', space=vmem, size = 0x12000, scoped, tag = 'internal scratch']
  #allocation2 [shape = 'f32[8,144]{1,0:T(8,128)}', space=vmem, size = 0x2000, scoped, tag = 'scratch operand']
  #allocation3 [shape = 'f32[8,144]{1,0:T(8,128)}', space=vmem, size = 0x2000, scoped, tag = 'scratch operand']
  %s0 = inlined_call_operand.vmem [shape: f32[8,96], index: 0, kind: input, shape index: {}]
  %s1 = inlined_call_operand.vmem [shape: f32[48,96], index: 1, kind: input, shape index: {}]
  %s2 = inlined_call_operand.vmem [shape: f32[1,48], index: 2, kind: input, shape index: {}]
  %s3 = inlined_call_operand.vmem [shape: f32[1,48], index: 3, kind: input, shape index: {}]
  %s4 = inlined_call_operand.vmem [shape: f32[1,48], index: 4, kind: input, shape index: {}]
  %s5 = inlined_call_operand.vmem [shape: f32[1,48], index: 5, kind: input, shape index: {}]
  %s6 = inlined_call_operand.vmem [shape: f32[1,48], index: 6, kind: input, shape index: {}]
  %s7 = inlined_call_operand.vmem [shape: f32[8,96], index: 7, kind: input, shape index: {}]
  %s8 = inlined_call_operand.vmem [shape: f32[48,96], index: 8, kind: input, shape index: {}]
  %s9 = inlined_call_operand.vmem [shape: f32[1,48], index: 9, kind: input, shape index: {}]
  %s10 = inlined_call_operand.vmem [shape: f32[1,48], index: 10, kind: input, shape index: {}]
  %s11 = inlined_call_operand.vmem [shape: f32[1,48], index: 11, kind: input, shape index: {}]
  %s12 = inlined_call_operand.vmem [shape: f32[1,48], index: 12, kind: input, shape index: {}]
  %s13 = inlined_call_operand.vmem [shape: f32[1,48], index: 13, kind: input, shape index: {}]
  %s14 = inlined_call_operand.vmem [shape: f32[144,48], index: 14, kind: input, shape index: {}]
  %s15 = inlined_call_operand.vmem [shape: f32[144,48], index: 15, kind: input, shape index: {}]
  %s16 = inlined_call_operand.vmem [shape: f32[3,8,16], index: 16, kind: output, shape index: {0}]
  %s17 = inlined_call_operand.vmem [shape: f32[3,8,16], index: 17, kind: output, shape index: {1}]
  %s18 = inlined_call_operand.vmem [shape: f32[8,48], index: 18, kind: output, shape index: {2}]
  %s19 = inlined_call_operand.vmem [shape: f32[8,48], index: 19, kind: output, shape index: {3}]
  %20 = xla_tuple %s16, %s17, %s18, %s19
  %s21 = sld [smem:[#allocation0]]
  $region98: #{en2_forward.6} parent=0
    _
  %s23 = ssub.s32 1, %s21
  %s24 = scalar_select 0, %s23, %s21
  // Predicated region
  $region2: #{en2_forward.6} parent=0 // pred_check
    _
  $region3: #{en2_forward.6} parent=0 // pred_check_branch
    %26 = sbr.rel (0) target = $region5
  $region4: #{en2_forward.6} parent=0 // pred_region
    _
  $region5: #{en2_forward.6} parent=0 // pred_fallthru
    _
  // Predicated region
  $region6: #{en2_forward.6} parent=0 // pred_check
    _
  $region7: #{en2_forward.6} parent=0 // pred_check_branch
    %28 = sbr.rel (0) target = $region9
  $region8: #{en2_forward.6} parent=0 // pred_region
    _
  $region9: #{en2_forward.6} parent=0 // pred_fallthru
    _
  // Predicated region
  $region10: #{en2_forward.6} parent=0 // pred_check
    _
  $region11: #{en2_forward.6} parent=0 // pred_check_branch
    %30 = sbr.rel (0) target = $region13
  $region12: #{en2_forward.6} parent=0 // pred_region
    _
  $region13: #{en2_forward.6} parent=0 // pred_fallthru
    _
  // Predicated region
  $region14: #{en2_forward.6} parent=0 // pred_check
    _
  $region15: #{en2_forward.6} parent=0 // pred_check_branch
    %32 = sbr.rel (0) target = $region17
  $region16: #{en2_forward.6} parent=0 // pred_region
    _
  $region17: #{en2_forward.6} parent=0 // pred_fallthru
    _
  // Predicated region
  $region18: #{en2_forward.6} parent=0 // pred_check
    _
  $region19: #{en2_forward.6} parent=0 // pred_check_branch
    %34 = sbr.rel (0) target = $region21
  $region20: #{en2_forward.6} parent=0 // pred_region
    _
  $region21: #{en2_forward.6} parent=0 // pred_fallthru
    _
  // Predicated region
  $region22: #{en2_forward.6} parent=0 // pred_check
    _
  $region23: #{en2_forward.6} parent=0 // pred_check_branch
    %36 = sbr.rel (0) target = $region25
  $region24: #{en2_forward.6} parent=0 // pred_region
    _
  $region25: #{en2_forward.6} parent=0 // pred_fallthru
    _
  // Predicated region
  $region26: #{en2_forward.6} parent=0 // pred_check
    _
  $region27: #{en2_forward.6} parent=0 // pred_check_branch
    %38 = sbr.rel (0) target = $region29
  $region28: #{en2_forward.6} parent=0 // pred_region
    _
  $region29: #{en2_forward.6} parent=0 // pred_fallthru
    _
  // Predicated region
  $region30: #{en2_forward.6} parent=0 // pred_check
    _
  $region31: #{en2_forward.6} parent=0 // pred_check_branch
    %40 = sbr.rel (0) target = $region33
  $region32: #{en2_forward.6} parent=0 // pred_region
    _
  $region33: #{en2_forward.6} parent=0 // pred_fallthru
    _
  // Predicated region
  $region34: #{en2_forward.6} parent=0 // pred_check
    _
  $region35: #{en2_forward.6} parent=0 // pred_check_branch
    %42 = sbr.rel (0) target = $region37
  $region36: #{en2_forward.6} parent=0 // pred_region
    _
  $region37: #{en2_forward.6} parent=0 // pred_fallthru
    _
  // Predicated region
  $region38: #{en2_forward.6} parent=0 // pred_check
    _
  $region39: #{en2_forward.6} parent=0 // pred_check_branch
    %44 = sbr.rel (0) target = $region41
  $region40: #{en2_forward.6} parent=0 // pred_region
    _
  $region41: #{en2_forward.6} parent=0 // pred_fallthru
    _
  // Predicated region
  $region42: #{en2_forward.6} parent=0 // pred_check
    _
  $region43: #{en2_forward.6} parent=0 // pred_check_branch
    %46 = sbr.rel (0) target = $region45
  $region44: #{en2_forward.6} parent=0 // pred_region
    _
  $region45: #{en2_forward.6} parent=0 // pred_fallthru
    _
  // Predicated region
  $region46: #{en2_forward.6} parent=0 // pred_check
    _
  $region47: #{en2_forward.6} parent=0 // pred_check_branch
    %48 = sbr.rel (0) target = $region49
  $region48: #{en2_forward.6} parent=0 // pred_region
    _
  $region49: #{en2_forward.6} parent=0 // pred_fallthru
    _
  // Predicated region
  $region50: #{en2_forward.6} parent=0 // pred_check
    _
  $region51: #{en2_forward.6} parent=0 // pred_check_branch
    %50 = sbr.rel (0) target = $region53
  $region52: #{en2_forward.6} parent=0 // pred_region
    _
  $region53: #{en2_forward.6} parent=0 // pred_fallthru
    _
  // Predicated region
  $region54: #{en2_forward.6} parent=0 // pred_check
    _
  $region55: #{en2_forward.6} parent=0 // pred_check_branch
    %52 = sbr.rel (0) target = $region57
  $region56: #{en2_forward.6} parent=0 // pred_region
    _
  $region57: #{en2_forward.6} parent=0 // pred_fallthru
    _
  // Predicated region
  $region58: #{en2_forward.6} parent=0 // pred_check
    _
  $region59: #{en2_forward.6} parent=0 // pred_check_branch
    %54 = sbr.rel (0) target = $region61
  $region60: #{en2_forward.6} parent=0 // pred_region
    _
  $region61: #{en2_forward.6} parent=0 // pred_fallthru
    _
  // Predicated region
  $region62: #{en2_forward.6} parent=0 // pred_check
    _
  $region63: #{en2_forward.6} parent=0 // pred_check_branch
    %56 = sbr.rel (0) target = $region65
  $region64: #{en2_forward.6} parent=0 // pred_region
    _
  $region65: #{en2_forward.6} parent=0 // pred_fallthru
    _
  %v57 = vld [vmem:[%s0] sm:$0xff]
  %v58 = vld [vmem:[%s1] sm:$0xff]
  %v59 = vld [vmem:[%s1 + $0x8] sm:$0xff]
  %v60 = vld [vmem:[%s1 + $0x10] sm:$0xff]
  %v61 = vld [vmem:[%s1 + $0x18] sm:$0xff]
  %v62 = vld [vmem:[%s1 + $0x20] sm:$0xff]
  %v63 = vld [vmem:[%s1 + $0x28] sm:$0xff]
  %v64 = vld [vmem:[%s2] sm:$0x1]
  %v66 = vlaneseq
  %v67 = vshrl.u32 %v66, 7
  %v68 = vsub.s32 0, %v67
  %v69 = vrot.slane %v64, %v68
  %vm71 = vcmask 785408
  %v73 = vsel %vm71, %v57, 0
  %v76 = vsel %vm71, %v58, 0
  %v79 = vsel %vm71, %v59, 0
  %v82 = vsel %vm71, %v60, 0
  %v85 = vsel %vm71, %v61, 0
  %v88 = vsel %vm71, %v62, 0
  %v91 = vsel %vm71, %v63, 0
  %93 = vmatprep.subr.mxu0 0.0
  %94 = vmatpush1.xpose.msra.mxu0 %v76
  %95 = vmatprep.subr.mxu0 0.0
  %96 = vmatpush1.xpose.msra.mxu0 %v79
  %97 = vmatprep.subr.mxu0 0.0
  %98 = vmatpush1.xpose.msra.mxu0 %v82
  %99 = vmatprep.subr.mxu0 0.0
  %100 = vmatpush1.xpose.msra.mxu0 %v85
  %101 = vmatprep.subr.mxu0 0.0
  %102 = vmatpush1.xpose.msra.mxu0 %v88
  %103 = vmatprep.subr.mxu0 0.0
  %104 = vmatpush1.xpose.msra.mxu0 %v91
  %105 = vmatprep.subr.mxu0 0.0
  %106 = vmatpush1.xpose.msra.mxu0 0.0
  %107 = vmatprep.subr.mxu0 0.0
  %108 = vmatpush1.xpose.msra.mxu0 0.0
  %109 = vmatprep.subr.mxu0 0.0
  %110 = vmatpush1.xpose.msra.mxu0 0.0
  %111 = vmatprep.subr.mxu0 0.0
  %112 = vmatpush1.xpose.msra.mxu0 0.0
  %113 = vmatprep.subr.mxu0 0.0
  %114 = vmatpush1.xpose.msra.mxu0 0.0
  %115 = vmatprep.subr.mxu0 0.0
  %116 = vmatpush1.xpose.msra.mxu0 0.0
  %117 = vmatprep.subr.mxu0 0.0
  %118 = vmatpush1.xpose.msra.mxu0 0.0
  %119 = vmatprep.subr.mxu0 0.0
  %120 = vmatpush1.xpose.msra.mxu0 0.0
  %121 = vmatprep.subr.mxu0 0.0
  %122 = vmatpush1.xpose.msra.mxu0 0.0
  %123 = vmatprep.subr.mxu0 0.0
  %124 = vmatpush1.xpose.msra.mxu0 0.0
  %125 = vmatprep.subr.mxu0 0.0
  %126 = vmatpush1.xpose.msra.mxu0 0.0
  %127 = vmatprep.subr.mxu0 0.0
  %128 = vmatpush1.xpose.msra.mxu0 0.0
  %129 = vmatprep.subr.mxu0 0.0
  %130 = vmatpush1.xpose.msra.mxu0 0.0
  %131 = vmatprep.subr.mxu0 0.0
  %132 = vmatpush1.xpose.msra.mxu0 0.0
  %133 = vmatprep.subr.mxu0 0.0
  %134 = vmatpush1.xpose.msra.mxu0 0.0
  %135 = vmatprep.subr.mxu0 0.0
  %136 = vmatpush1.xpose.msra.mxu0 0.0
  %137 = vmatprep.subr.mxu0 0.0
  %138 = vmatpush1.xpose.msra.mxu0 0.0
  %139 = vmatprep.subr.mxu0 0.0
  %140 = vmatpush1.xpose.msra.mxu0 0.0
  %141 = vmatprep.subr.mxu0 0.0
  %142 = vmatpush1.xpose.msra.mxu0 0.0
  %143 = vmatprep.subr.mxu0 0.0
  %144 = vmatpush1.xpose.msra.mxu0 0.0
  %145 = vmatprep.subr.mxu0 0.0
  %146 = vmatpush1.xpose.msra.mxu0 0.0
  %147 = vmatprep.subr.mxu0 0.0
  %148 = vmatpush1.xpose.msra.mxu0 0.0
  %149 = vmatprep.subr.mxu0 0.0
  %150 = vmatpush1.xpose.msra.mxu0 0.0
  %151 = vmatprep.subr.mxu0 0.0
  %152 = vmatpush1.xpose.msra.mxu0 0.0
  %153 = vmatprep.subr.mxu0 0.0
  %154 = vmatpush1.xpose.msra.mxu0 0.0
  %155 = vmatprep.subr.mxu0 0.0
  %156 = vmatpush1.xpose.msra.mxu0 0.0
  %157 = vmatprep.mubr.f32.mxu0 0.0
  %158 = vmatmul.mubr.f32.gmra.mrb[0].mxu0 %v73
  %v159 = vpop.f32.mrb[0].mxu0
  %v160 = vadd.f32 %v69, %v159
  %v161 = vpop.f32.mrb[0].mxu0
  %162 = vdwg.mxu0
  %v163 = vmul.f32 %v160, 0.5
  %v164 = vmul.f32 %v160, 0.70710677
  %v165 = vand.u32 2147483647, %v164
  %v166 = vmul.f32 %v165, 0.3275911
  %v167 = vadd.f32 %v166, 1.0
  %v168 = vrcp.pop %v167
  %v169 = vmul.f32 1.0, %v168
  %v170 = vmul.f32 %v169, 1.0614054
  %v171 = vadd.f32 %v170, -1.4531521
  %v172 = vmul.f32 %v171, %v169
  %v173 = vadd.f32 %v172, 1.4214138
  %v174 = vmul.f32 %v173, %v169
  %v175 = vadd.f32 %v174, -0.28449672
  %v176 = vmul.f32 %v175, %v169
  %v177 = vadd.f32 %v176, 0.2548296
  %v178 = vmul.f32 %v177, %v169
  %v179 = vsub.f32 0.0, %v165
  %v180 = vmul.f32 %v179, %v165
  %v181 = vmul.f32 %v180, 1.442695
  %v182 = vpow.pop %v181
  %v183 = vmul.f32 %v178, %v182
  %v184 = vsub.f32 1.0, %v183
  %vm185 = vcmp.ge.f32.partialorder %v164, 0.0
  %v186 = vsub.f32 0.0, %v184
  %v187 = vsel %vm185, %v184, %v186
  %v188 = vadd.f32 %v187, 1.0
  %v189 = vmul.f32 %v163, %v188
  %v190 = vld [vmem:[%s3] sm:$0x1]
  %v191 = vld [vmem:[%s4] sm:$0x1]
  %v192 = vld [vmem:[%s5] sm:$0x1]
  %v193 = vld [vmem:[%s6] sm:$0x1]
  %v195 = vlaneseq
  %v196 = vshrl.u32 %v195, 7
  %v197 = vsub.s32 0, %v196
  %v198 = vrot.slane %v192, %v197
  %v200 = vsub.f32 %v189, %v198
  %v201 = vadd.f32 %v193, 1e-05
  %v202 = vrsqrt.pop %v201
  %v204 = vlaneseq
  %v205 = vshrl.u32 %v204, 7
  %v206 = vsub.s32 0, %v205
  %v207 = vrot.slane %v202, %v206
  %v209 = vmul.f32 %v200, %v207
  %v211 = vlaneseq
  %v212 = vshrl.u32 %v211, 7
  %v213 = vsub.s32 0, %v212
  %v214 = vrot.slane %v190, %v213
  %v216 = vmul.f32 %v209, %v214
  %v218 = vlaneseq
  %v219 = vshrl.u32 %v218, 7
  %v220 = vsub.s32 0, %v219
  %v221 = vrot.slane %v191, %v220
  %v223 = vadd.f32 %v216, %v221
  %v224 = vld [vmem:[%s7] sm:$0xff]
  %v225 = vld [vmem:[%s8] sm:$0xff]
  %v226 = vld [vmem:[%s8 + $0x8] sm:$0xff]
  %v227 = vld [vmem:[%s8 + $0x10] sm:$0xff]
  %v228 = vld [vmem:[%s8 + $0x18] sm:$0xff]
  %v229 = vld [vmem:[%s8 + $0x20] sm:$0xff]
  %v230 = vld [vmem:[%s8 + $0x28] sm:$0xff]
  %v231 = vld [vmem:[%s9] sm:$0x1]
  %v233 = vlaneseq
  %v234 = vshrl.u32 %v233, 7
  %v235 = vsub.s32 0, %v234
  %v236 = vrot.slane %v231, %v235
  %v239 = vsel %vm71, %v224, 0
  %v242 = vsel %vm71, %v225, 0
  %v245 = vsel %vm71, %v226, 0
  %v248 = vsel %vm71, %v227, 0
  %v251 = vsel %vm71, %v228, 0
  %v254 = vsel %vm71, %v229, 0
  %v257 = vsel %vm71, %v230, 0
  %259 = vmatprep.subr.mxu0 0.0
  %260 = vmatpush1.xpose.msra.mxu0 %v242
  %261 = vmatprep.subr.mxu0 0.0
  %262 = vmatpush1.xpose.msra.mxu0 %v245
  %263 = vmatprep.subr.mxu0 0.0
  %264 = vmatpush1.xpose.msra.mxu0 %v248
  %265 = vmatprep.subr.mxu0 0.0
  %266 = vmatpush1.xpose.msra.mxu0 %v251
  %267 = vmatprep.subr.mxu0 0.0
  %268 = vmatpush1.xpose.msra.mxu0 %v254
  %269 = vmatprep.subr.mxu0 0.0
  %270 = vmatpush1.xpose.msra.mxu0 %v257
  %271 = vmatprep.subr.mxu0 0.0
  %272 = vmatpush1.xpose.msra.mxu0 0.0
  %273 = vmatprep.subr.mxu0 0.0
  %274 = vmatpush1.xpose.msra.mxu0 0.0
  %275 = vmatprep.subr.mxu0 0.0
  %276 = vmatpush1.xpose.msra.mxu0 0.0
  %277 = vmatprep.subr.mxu0 0.0
  %278 = vmatpush1.xpose.msra.mxu0 0.0
  %279 = vmatprep.subr.mxu0 0.0
  %280 = vmatpush1.xpose.msra.mxu0 0.0
  %281 = vmatprep.subr.mxu0 0.0
  %282 = vmatpush1.xpose.msra.mxu0 0.0
  %283 = vmatprep.subr.mxu0 0.0
  %284 = vmatpush1.xpose.msra.mxu0 0.0
  %285 = vmatprep.subr.mxu0 0.0
  %286 = vmatpush1.xpose.msra.mxu0 0.0
  %287 = vmatprep.subr.mxu0 0.0
  %288 = vmatpush1.xpose.msra.mxu0 0.0
  %289 = vmatprep.subr.mxu0 0.0
  %290 = vmatpush1.xpose.msra.mxu0 0.0
  %291 = vmatprep.subr.mxu0 0.0
  %292 = vmatpush1.xpose.msra.mxu0 0.0
  %293 = vmatprep.subr.mxu0 0.0
  %294 = vmatpush1.xpose.msra.mxu0 0.0
  %295 = vmatprep.subr.mxu0 0.0
  %296 = vmatpush1.xpose.msra.mxu0 0.0
  %297 = vmatprep.subr.mxu0 0.0
  %298 = vmatpush1.xpose.msra.mxu0 0.0
  %299 = vmatprep.subr.mxu0 0.0
  %300 = vmatpush1.xpose.msra.mxu0 0.0
  %301 = vmatprep.subr.mxu0 0.0
  %302 = vmatpush1.xpose.msra.mxu0 0.0
  %303 = vmatprep.subr.mxu0 0.0
  %304 = vmatpush1.xpose.msra.mxu0 0.0
  %305 = vmatprep.subr.mxu0 0.0
  %306 = vmatpush1.xpose.msra.mxu0 0.0
  %307 = vmatprep.subr.mxu0 0.0
  %308 = vmatpush1.xpose.msra.mxu0 0.0
  %309 = vmatprep.subr.mxu0 0.0
  %310 = vmatpush1.xpose.msra.mxu0 0.0
  %311 = vmatprep.subr.mxu0 0.0
  %312 = vmatpush1.xpose.msra.mxu0 0.0
  %313 = vmatprep.subr.mxu0 0.0
  %314 = vmatpush1.xpose.msra.mxu0 0.0
  %315 = vmatprep.subr.mxu0 0.0
  %316 = vmatpush1.xpose.msra.mxu0 0.0
  %317 = vmatprep.subr.mxu0 0.0
  %318 = vmatpush1.xpose.msra.mxu0 0.0
  %319 = vmatprep.subr.mxu0 0.0
  %320 = vmatpush1.xpose.msra.mxu0 0.0
  %321 = vmatprep.subr.mxu0 0.0
  %322 = vmatpush1.xpose.msra.mxu0 0.0
  %323 = vmatprep.mubr.f32.mxu0 0.0
  %324 = vmatmul.mubr.f32.gmra.mrb[0].mxu0 %v239
  %v325 = vpop.f32.mrb[0].mxu0
  %v326 = vadd.f32 %v236, %v325
  %v327 = vpop.f32.mrb[0].mxu0
  %328 = vdwg.mxu0
  %v329 = vmul.f32 %v326, 0.5
  %v330 = vmul.f32 %v326, 0.70710677
  %v331 = vand.u32 2147483647, %v330
  %v332 = vmul.f32 %v331, 0.3275911
  %v333 = vadd.f32 %v332, 1.0
  %v334 = vrcp.pop %v333
  %v335 = vmul.f32 1.0, %v334
  %v336 = vmul.f32 %v335, 1.0614054
  %v337 = vadd.f32 %v336, -1.4531521
  %v338 = vmul.f32 %v337, %v335
  %v339 = vadd.f32 %v338, 1.4214138
  %v340 = vmul.f32 %v339, %v335
  %v341 = vadd.f32 %v340, -0.28449672
  %v342 = vmul.f32 %v341, %v335
  %v343 = vadd.f32 %v342, 0.2548296
  %v344 = vmul.f32 %v343, %v335
  %v345 = vsub.f32 0.0, %v331
  %v346 = vmul.f32 %v345, %v331
  %v347 = vmul.f32 %v346, 1.442695
  %v348 = vpow.pop %v347
  %v349 = vmul.f32 %v344, %v348
  %v350 = vsub.f32 1.0, %v349
  %vm351 = vcmp.ge.f32.partialorder %v330, 0.0
  %v352 = vsub.f32 0.0, %v350
  %v353 = vsel %vm351, %v350, %v352
  %v354 = vadd.f32 %v353, 1.0
  %v355 = vmul.f32 %v329, %v354
  %v356 = vld [vmem:[%s10] sm:$0x1]
  %v357 = vld [vmem:[%s11] sm:$0x1]
  %v358 = vld [vmem:[%s12] sm:$0x1]
  %v359 = vld [vmem:[%s13] sm:$0x1]
  %v361 = vlaneseq
  %v362 = vshrl.u32 %v361, 7
  %v363 = vsub.s32 0, %v362
  %v364 = vrot.slane %v358, %v363
  %v366 = vsub.f32 %v355, %v364
  %v367 = vadd.f32 %v359, 1e-05
  %v368 = vrsqrt.pop %v367
  %v370 = vlaneseq
  %v371 = vshrl.u32 %v370, 7
  %v372 = vsub.s32 0, %v371
  %v373 = vrot.slane %v368, %v372
  %v375 = vmul.f32 %v366, %v373
  %v377 = vlaneseq
  %v378 = vshrl.u32 %v377, 7
  %v379 = vsub.s32 0, %v378
  %v380 = vrot.slane %v356, %v379
  %v382 = vmul.f32 %v375, %v380
  %v384 = vlaneseq
  %v385 = vshrl.u32 %v384, 7
  %v386 = vsub.s32 0, %v385
  %v387 = vrot.slane %v357, %v386
  %v389 = vadd.f32 %v382, %v387
  %vm390 = vcmask 392192
  %391 = vst.msk [vmem:[%s18] sm:$0xff] %vm390, %v223
  %392 = vst.msk [vmem:[%s19] sm:$0xff] %vm390, %v389
  %v393 = vld [vmem:[%s14] sm:$0xff]
  %v394 = vld [vmem:[%s14 + $0x8] sm:$0xff]
  %v395 = vld [vmem:[%s14 + $0x10] sm:$0xff]
  %v396 = vld [vmem:[%s14 + $0x18] sm:$0xff]
  %v397 = vld [vmem:[%s14 + $0x20] sm:$0xff]
  %v398 = vld [vmem:[%s14 + $0x28] sm:$0xff]
  %v399 = vld [vmem:[%s14 + $0x30] sm:$0xff]
  %v400 = vld [vmem:[%s14 + $0x38] sm:$0xff]
  %v401 = vld [vmem:[%s14 + $0x40] sm:$0xff]
  %v402 = vld [vmem:[%s14 + $0x48] sm:$0xff]
  %v403 = vld [vmem:[%s14 + $0x50] sm:$0xff]
  %v404 = vld [vmem:[%s14 + $0x58] sm:$0xff]
  %v405 = vld [vmem:[%s14 + $0x60] sm:$0xff]
  %v406 = vld [vmem:[%s14 + $0x68] sm:$0xff]
  %v407 = vld [vmem:[%s14 + $0x70] sm:$0xff]
  %v408 = vld [vmem:[%s14 + $0x78] sm:$0xff]
  %v409 = vld [vmem:[%s14 + $0x80] sm:$0xff]
  %v410 = vld [vmem:[%s14 + $0x88] sm:$0xff]
  %v412 = vsel %vm390, %v223, 0
  %v415 = vsel %vm390, %v393, 0
  %v418 = vsel %vm390, %v394, 0
  %v421 = vsel %vm390, %v395, 0
  %v424 = vsel %vm390, %v396, 0
  %v427 = vsel %vm390, %v397, 0
  %v430 = vsel %vm390, %v398, 0
  %v433 = vsel %vm390, %v399, 0
  %v436 = vsel %vm390, %v400, 0
  %v439 = vsel %vm390, %v401, 0
  %v442 = vsel %vm390, %v402, 0
  %v445 = vsel %vm390, %v403, 0
  %v448 = vsel %vm390, %v404, 0
  %v451 = vsel %vm390, %v405, 0
  %v454 = vsel %vm390, %v406, 0
  %v457 = vsel %vm390, %v407, 0
  %v460 = vsel %vm390, %v408, 0
  %v463 = vsel %vm390, %v409, 0
  %v466 = vsel %vm390, %v410, 0
  %468 = vmatprep.subr.mxu0 0.0
  %469 = vmatpush1.xpose.msra.mxu0 %v415
  %470 = vmatprep.subr.mxu0 0.0
  %471 = vmatpush1.xpose.msra.mxu0 %v418
  %472 = vmatprep.subr.mxu0 0.0
  %473 = vmatpush1.xpose.msra.mxu0 %v421
  %474 = vmatprep.subr.mxu0 0.0
  %475 = vmatpush1.xpose.msra.mxu0 %v424
  %476 = vmatprep.subr.mxu0 0.0
  %477 = vmatpush1.xpose.msra.mxu0 %v427
  %478 = vmatprep.subr.mxu0 0.0
  %479 = vmatpush1.xpose.msra.mxu0 %v430
  %480 = vmatprep.subr.mxu0 0.0
  %481 = vmatpush1.xpose.msra.mxu0 %v433
  %482 = vmatprep.subr.mxu0 0.0
  %483 = vmatpush1.xpose.msra.mxu0 %v436
  %484 = vmatprep.subr.mxu0 0.0
  %485 = vmatpush1.xpose.msra.mxu0 %v439
  %486 = vmatprep.subr.mxu0 0.0
  %487 = vmatpush1.xpose.msra.mxu0 %v442
  %488 = vmatprep.subr.mxu0 0.0
  %489 = vmatpush1.xpose.msra.mxu0 %v445
  %490 = vmatprep.subr.mxu0 0.0
  %491 = vmatpush1.xpose.msra.mxu0 %v448
  %492 = vmatprep.subr.mxu0 0.0
  %493 = vmatpush1.xpose.msra.mxu0 %v451
  %494 = vmatprep.subr.mxu0 0.0
  %495 = vmatpush1.xpose.msra.mxu0 %v454
  %496 = vmatprep.subr.mxu0 0.0
  %497 = vmatpush1.xpose.msra.mxu0 %v457
  %498 = vmatprep.subr.mxu0 0.0
  %499 = vmatpush1.xpose.msra.mxu0 %v460
  %500 = vmatprep.subr.mxu0 0.0
  %501 = vmatpush1.xpose.msra.mxu0 %v463
  %502 = vmatprep.subr.mxu0 0.0
  %503 = vmatpush1.xpose.msra.mxu0 %v466
  %504 = vmatprep.subr.mxu0 0.0
  %505 = vmatpush1.xpose.msra.mxu0 0.0
  %506 = vmatprep.subr.mxu0 0.0
  %507 = vmatpush1.xpose.msra.mxu0 0.0
  %508 = vmatprep.subr.mxu0 0.0
  %509 = vmatpush1.xpose.msra.mxu0 0.0
  %510 = vmatprep.subr.mxu0 0.0
  %511 = vmatpush1.xpose.msra.mxu0 0.0
  %512 = vmatprep.subr.mxu0 0.0
  %513 = vmatpush1.xpose.msra.mxu0 0.0
  %514 = vmatprep.subr.mxu0 0.0
  %515 = vmatpush1.xpose.msra.mxu0 0.0
  %516 = vmatprep.subr.mxu0 0.0
  %517 = vmatpush1.xpose.msra.mxu0 0.0
  %518 = vmatprep.subr.mxu0 0.0
  %519 = vmatpush1.xpose.msra.mxu0 0.0
  %520 = vmatprep.subr.mxu0 0.0
  %521 = vmatpush1.xpose.msra.mxu0 0.0
  %522 = vmatprep.subr.mxu0 0.0
  %523 = vmatpush1.xpose.msra.mxu0 0.0
  %524 = vmatprep.subr.mxu0 0.0
  %525 = vmatpush1.xpose.msra.mxu0 0.0
  %526 = vmatprep.subr.mxu0 0.0
  %527 = vmatpush1.xpose.msra.mxu0 0.0
  %528 = vmatprep.subr.mxu0 0.0
  %529 = vmatpush1.xpose.msra.mxu0 0.0
  %530 = vmatprep.subr.mxu0 0.0
  %531 = vmatpush1.xpose.msra.mxu0 0.0
  %532 = vmatprep.mubr.f32.mxu0 0.0
  %533 = vmatmul.mubr.f32.gmra.mrb[0].mxu0 %v412
  %v534 = vpop.f32.mrb[0].mxu0
  %v535 = vadd.f32 0.0, %v534
  %v536 = vpop.f32.mrb[0].mxu0
  %v537 = vadd.f32 0.0, %v536
  %538 = vdwg.mxu0
  %539 = vst [vmem:[#allocation2] sm:$0xff] %v535
  %vm540 = vcmask 130048
  %541 = vst.msk [vmem:[#allocation2 + $0x8] sm:$0xff] %vm540, %v537
  %v542 = vld [vmem:[%s15] sm:$0xff]
  %v543 = vld [vmem:[%s15 + $0x8] sm:$0xff]
  %v544 = vld [vmem:[%s15 + $0x10] sm:$0xff]
  %v545 = vld [vmem:[%s15 + $0x18] sm:$0xff]
  %v546 = vld [vmem:[%s15 + $0x20] sm:$0xff]
  %v547 = vld [vmem:[%s15 + $0x28] sm:$0xff]
  %v548 = vld [vmem:[%s15 + $0x30] sm:$0xff]
  %v549 = vld [vmem:[%s15 + $0x38] sm:$0xff]
  %v550 = vld [vmem:[%s15 + $0x40] sm:$0xff]
  %v551 = vld [vmem:[%s15 + $0x48] sm:$0xff]
  %v552 = vld [vmem:[%s15 + $0x50] sm:$0xff]
  %v553 = vld [vmem:[%s15 + $0x58] sm:$0xff]
  %v554 = vld [vmem:[%s15 + $0x60] sm:$0xff]
  %v555 = vld [vmem:[%s15 + $0x68] sm:$0xff]
  %v556 = vld [vmem:[%s15 + $0x70] sm:$0xff]
  %v557 = vld [vmem:[%s15 + $0x78] sm:$0xff]
  %v558 = vld [vmem:[%s15 + $0x80] sm:$0xff]
  %v559 = vld [vmem:[%s15 + $0x88] sm:$0xff]
  %v561 = vsel %vm390, %v389, 0
  %v564 = vsel %vm390, %v542, 0
  %v567 = vsel %vm390, %v543, 0
  %v570 = vsel %vm390, %v544, 0
  %v573 = vsel %vm390, %v545, 0
  %v576 = vsel %vm390, %v546, 0
  %v579 = vsel %vm390, %v547, 0
  %v582 = vsel %vm390, %v548, 0
  %v585 = vsel %vm390, %v549, 0
  %v588 = vsel %vm390, %v550, 0
  %v591 = vsel %vm390, %v551, 0
  %v594 = vsel %vm390, %v552, 0
  %v597 = vsel %vm390, %v553, 0
  %v600 = vsel %vm390, %v554, 0
  %v603 = vsel %vm390, %v555, 0
  %v606 = vsel %vm390, %v556, 0
  %v609 = vsel %vm390, %v557, 0
  %v612 = vsel %vm390, %v558, 0
  %v615 = vsel %vm390, %v559, 0
  %617 = vmatprep.subr.mxu0 0.0
  %618 = vmatpush1.xpose.msra.mxu0 %v564
  %619 = vmatprep.subr.mxu0 0.0
  %620 = vmatpush1.xpose.msra.mxu0 %v567
  %621 = vmatprep.subr.mxu0 0.0
  %622 = vmatpush1.xpose.msra.mxu0 %v570
  %623 = vmatprep.subr.mxu0 0.0
  %624 = vmatpush1.xpose.msra.mxu0 %v573
  %625 = vmatprep.subr.mxu0 0.0
  %626 = vmatpush1.xpose.msra.mxu0 %v576
  %627 = vmatprep.subr.mxu0 0.0
  %628 = vmatpush1.xpose.msra.mxu0 %v579
  %629 = vmatprep.subr.mxu0 0.0
  %630 = vmatpush1.xpose.msra.mxu0 %v582
  %631 = vmatprep.subr.mxu0 0.0
  %632 = vmatpush1.xpose.msra.mxu0 %v585
  %633 = vmatprep.subr.mxu0 0.0
  %634 = vmatpush1.xpose.msra.mxu0 %v588
  %635 = vmatprep.subr.mxu0 0.0
  %636 = vmatpush1.xpose.msra.mxu0 %v591
  %637 = vmatprep.subr.mxu0 0.0
  %638 = vmatpush1.xpose.msra.mxu0 %v594
  %639 = vmatprep.subr.mxu0 0.0
  %640 = vmatpush1.xpose.msra.mxu0 %v597
  %641 = vmatprep.subr.mxu0 0.0
  %642 = vmatpush1.xpose.msra.mxu0 %v600
  %643 = vmatprep.subr.mxu0 0.0
  %644 = vmatpush1.xpose.msra.mxu0 %v603
  %645 = vmatprep.subr.mxu0 0.0
  %646 = vmatpush1.xpose.msra.mxu0 %v606
  %647 = vmatprep.subr.mxu0 0.0
  %648 = vmatpush1.xpose.msra.mxu0 %v609
  %649 = vmatprep.subr.mxu0 0.0
  %650 = vmatpush1.xpose.msra.mxu0 %v612
  %651 = vmatprep.subr.mxu0 0.0
  %652 = vmatpush1.xpose.msra.mxu0 %v615
  %653 = vmatprep.subr.mxu0 0.0
  %654 = vmatpush1.xpose.msra.mxu0 0.0
  %655 = vmatprep.subr.mxu0 0.0
  %656 = vmatpush1.xpose.msra.mxu0 0.0
  %657 = vmatprep.subr.mxu0 0.0
  %658 = vmatpush1.xpose.msra.mxu0 0.0
  %659 = vmatprep.subr.mxu0 0.0
  %660 = vmatpush1.xpose.msra.mxu0 0.0
  %661 = vmatprep.subr.mxu0 0.0
  %662 = vmatpush1.xpose.msra.mxu0 0.0
  %663 = vmatprep.subr.mxu0 0.0
  %664 = vmatpush1.xpose.msra.mxu0 0.0
  %665 = vmatprep.subr.mxu0 0.0
  %666 = vmatpush1.xpose.msra.mxu0 0.0
  %667 = vmatprep.subr.mxu0 0.0
  %668 = vmatpush1.xpose.msra.mxu0 0.0
  %669 = vmatprep.subr.mxu0 0.0
  %670 = vmatpush1.xpose.msra.mxu0 0.0
  %671 = vmatprep.subr.mxu0 0.0
  %672 = vmatpush1.xpose.msra.mxu0 0.0
  %673 = vmatprep.subr.mxu0 0.0
  %674 = vmatpush1.xpose.msra.mxu0 0.0
  %675 = vmatprep.subr.mxu0 0.0
  %676 = vmatpush1.xpose.msra.mxu0 0.0
  %677 = vmatprep.subr.mxu0 0.0
  %678 = vmatpush1.xpose.msra.mxu0 0.0
  %679 = vmatprep.subr.mxu0 0.0
  %680 = vmatpush1.xpose.msra.mxu0 0.0
  %681 = vmatprep.mubr.f32.mxu0 0.0
  %682 = vmatmul.mubr.f32.gmra.mrb[0].mxu0 %v561
  %v683 = vpop.f32.mrb[0].mxu0
  %v684 = vadd.f32 0.0, %v683
  %v685 = vpop.f32.mrb[0].mxu0
  %v686 = vadd.f32 0.0, %v685
  %687 = vdwg.mxu0
  %688 = vst [vmem:[#allocation3] sm:$0xff] %v684
  %689 = vst.msk [vmem:[#allocation3 + $0x8] sm:$0xff] %vm540, %v686
  %v690 = vld [vmem:[#allocation2] sm:$0xff]
  %v691 = vld [vmem:[#allocation3] sm:$0xff]
  %693 = vrot.lane.b32.xlu0 %v690, 80
  %v694 = vpop.permute.xlu0 %693
  %v696 = vsel %vm540, %v691, 0
  %v698 = vsel %vm540, %v694, 0
  %700 = vmatprep.subr.mxu0 0.0
  %701 = vmatpush1.xpose.msra.mxu0 %v698
  %702 = vmatprep.subr.mxu0 0.0
  %703 = vmatpush1.xpose.msra.mxu0 0.0
  %704 = vmatprep.subr.mxu0 0.0
  %705 = vmatpush1.xpose.msra.mxu0 0.0
  %706 = vmatprep.subr.mxu0 0.0
  %707 = vmatpush1.xpose.msra.mxu0 0.0
  %708 = vmatprep.subr.mxu0 0.0
  %709 = vmatpush1.xpose.msra.mxu0 0.0
  %710 = vmatprep.subr.mxu0 0.0
  %711 = vmatpush1.xpose.msra.mxu0 0.0
  %712 = vmatprep.subr.mxu0 0.0
  %713 = vmatpush1.xpose.msra.mxu0 0.0
  %714 = vmatprep.subr.mxu0 0.0
  %715 = vmatpush1.xpose.msra.mxu0 0.0
  %716 = vmatprep.subr.mxu0 0.0
  %717 = vmatpush1.xpose.msra.mxu0 0.0
  %718 = vmatprep.subr.mxu0 0.0
  %719 = vmatpush1.xpose.msra.mxu0 0.0
  %720 = vmatprep.subr.mxu0 0.0
  %721 = vmatpush1.xpose.msra.mxu0 0.0
  %722 = vmatprep.subr.mxu0 0.0
  %723 = vmatpush1.xpose.msra.mxu0 0.0
  %724 = vmatprep.subr.mxu0 0.0
  %725 = vmatpush1.xpose.msra.mxu0 0.0
  %726 = vmatprep.subr.mxu0 0.0
  %727 = vmatpush1.xpose.msra.mxu0 0.0
  %728 = vmatprep.subr.mxu0 0.0
  %729 = vmatpush1.xpose.msra.mxu0 0.0
  %730 = vmatprep.subr.mxu0 0.0
  %731 = vmatpush1.xpose.msra.mxu0 0.0
  %732 = vmatprep.subr.mxu0 0.0
  %733 = vmatpush1.xpose.msra.mxu0 0.0
  %734 = vmatprep.subr.mxu0 0.0
  %735 = vmatpush1.xpose.msra.mxu0 0.0
  %736 = vmatprep.subr.mxu0 0.0
  %737 = vmatpush1.xpose.msra.mxu0 0.0
  %738 = vmatprep.subr.mxu0 0.0
  %739 = vmatpush1.xpose.msra.mxu0 0.0
  %740 = vmatprep.subr.mxu0 0.0
  %741 = vmatpush1.xpose.msra.mxu0 0.0
  %742 = vmatprep.subr.mxu0 0.0
  %743 = vmatpush1.xpose.msra.mxu0 0.0
  %744 = vmatprep.subr.mxu0 0.0
  %745 = vmatpush1.xpose.msra.mxu0 0.0
  %746 = vmatprep.subr.mxu0 0.0
  %747 = vmatpush1.xpose.msra.mxu0 0.0
  %748 = vmatprep.subr.mxu0 0.0
  %749 = vmatpush1.xpose.msra.mxu0 0.0
  %750 = vmatprep.subr.mxu0 0.0
  %751 = vmatpush1.xpose.msra.mxu0 0.0
  %752 = vmatprep.subr.mxu0 0.0
  %753 = vmatpush1.xpose.msra.mxu0 0.0
  %754 = vmatprep.subr.mxu0 0.0
  %755 = vmatpush1.xpose.msra.mxu0 0.0
  %756 = vmatprep.subr.mxu0 0.0
  %757 = vmatpush1.xpose.msra.mxu0 0.0
  %758 = vmatprep.subr.mxu0 0.0
  %759 = vmatpush1.xpose.msra.mxu0 0.0
  %760 = vmatprep.subr.mxu0 0.0
  %761 = vmatpush1.xpose.msra.mxu0 0.0
  %762 = vmatprep.subr.mxu0 0.0
  %763 = vmatpush1.xpose.msra.mxu0 0.0
  %764 = vmatprep.mubr.f32.mxu0 0.0
  %765 = vmatmul.mubr.f32.gmra.mrb[0].mxu0 %v696
  %v766 = vpop.f32.mrb[0].mxu0
  %v767 = vadd.f32 0.0, %v766
  %v768 = vpop.f32.mrb[0].mxu0
  %769 = vdwg.mxu0
  %v770 = vmul.f32 %v767, 0.25
  %vm771 = vcmask 64512
  %v772 = vsel %vm771, %v770, -inf
  %773 = vmax.xlane.f32.xlu0 %v772
  %v774 = vpop.xlane.xlu0 %773
  %v775 = vsub.f32 %v770, %v774
  %v776 = vmul.f32 %v775, 1.442695
  %v777 = vpow.pop %v776
  %v778 = vsel %vm771, %v777, 0.0
  %779 = vadd.xlane.f32.xlu0 %v778
  %v780 = vpop.xlane.xlu0 %779
  %v781 = vrcp.pop %v780
  %v782 = vmul.f32 %v777, %v781
  %783 = vrot.lane.b32.xlu0 %v690, 32
  %v784 = vpop.permute.xlu0 %783
  %v787 = vsel %vm771, %v782, 0
  %789 = vmatprep.subr.mxu0 0.0
  %790 = vmatpush1.msra.mxu0 %v784
  %791 = vmatprep.subr.mxu0 0.0
  %792 = vmatpush1.msra.mxu0 0.0
  %793 = vmatprep.subr.mxu0 0.0
  %794 = vmatpush1.msra.mxu0 0.0
  %795 = vmatprep.subr.mxu0 0.0
  %796 = vmatpush1.msra.mxu0 0.0
  %797 = vmatprep.subr.mxu0 0.0
  %798 = vmatpush1.msra.mxu0 0.0
  %799 = vmatprep.subr.mxu0 0.0
  %800 = vmatpush1.msra.mxu0 0.0
  %801 = vmatprep.subr.mxu0 0.0
  %802 = vmatpush1.msra.mxu0 0.0
  %803 = vmatprep.subr.mxu0 0.0
  %804 = vmatpush1.msra.mxu0 0.0
  %805 = vmatprep.subr.mxu0 0.0
  %806 = vmatpush1.msra.mxu0 0.0
  %807 = vmatprep.subr.mxu0 0.0
  %808 = vmatpush1.msra.mxu0 0.0
  %809 = vmatprep.subr.mxu0 0.0
  %810 = vmatpush1.msra.mxu0 0.0
  %811 = vmatprep.subr.mxu0 0.0
  %812 = vmatpush1.msra.mxu0 0.0
  %813 = vmatprep.subr.mxu0 0.0
  %814 = vmatpush1.msra.mxu0 0.0
  %815 = vmatprep.subr.mxu0 0.0
  %816 = vmatpush1.msra.mxu0 0.0
  %817 = vmatprep.subr.mxu0 0.0
  %818 = vmatpush1.msra.mxu0 0.0
  %819 = vmatprep.subr.mxu0 0.0
  %820 = vmatpush1.msra.mxu0 0.0
  %821 = vmatprep.subr.mxu0 0.0
  %822 = vmatpush1.msra.mxu0 0.0
  %823 = vmatprep.subr.mxu0 0.0
  %824 = vmatpush1.msra.mxu0 0.0
  %825 = vmatprep.subr.mxu0 0.0
  %826 = vmatpush1.msra.mxu0 0.0
  %827 = vmatprep.subr.mxu0 0.0
  %828 = vmatpush1.msra.mxu0 0.0
  %829 = vmatprep.subr.mxu0 0.0
  %830 = vmatpush1.msra.mxu0 0.0
  %831 = vmatprep.subr.mxu0 0.0
  %832 = vmatpush1.msra.mxu0 0.0
  %833 = vmatprep.subr.mxu0 0.0
  %834 = vmatpush1.msra.mxu0 0.0
  %835 = vmatprep.subr.mxu0 0.0
  %836 = vmatpush1.msra.mxu0 0.0
  %837 = vmatprep.subr.mxu0 0.0
  %838 = vmatpush1.msra.mxu0 0.0
  %839 = vmatprep.subr.mxu0 0.0
  %840 = vmatpush1.msra.mxu0 0.0
  %841 = vmatprep.subr.mxu0 0.0
  %842 = vmatpush1.msra.mxu0 0.0
  %843 = vmatprep.subr.mxu0 0.0
  %844 = vmatpush1.msra.mxu0 0.0
  %845 = vmatprep.subr.mxu0 0.0
  %846 = vmatpush1.msra.mxu0 0.0
  %847 = vmatprep.subr.mxu0 0.0
  %848 = vmatpush1.msra.mxu0 0.0
  %849 = vmatprep.subr.mxu0 0.0
  %850 = vmatpush1.msra.mxu0 0.0
  %851 = vmatprep.subr.mxu0 0.0
  %852 = vmatpush1.msra.mxu0 0.0
  %853 = vmatprep.mubr.f32.mxu0 0.0
  %854 = vmatmul.mubr.f32.gmra.mrb[0].mxu0 %v787
  %v855 = vpop.f32.mrb[0].mxu0
  %v856 = vadd.f32 0.0, %v855
  %v857 = vpop.f32.mrb[0].mxu0
  %858 = vdwg.mxu0
  %859 = vst.msk [vmem:[%s16] sm:$0xff] %vm540, %v856
  %860 = vrot.lane.b32.xlu0 %v691, 80
  %v861 = vpop.permute.xlu0 %860
  %v862 = vsel %vm540, %v690, 0
  %v864 = vsel %vm540, %v861, 0
  %866 = vmatprep.subr.mxu0 0.0
  %867 = vmatpush1.xpose.msra.mxu0 %v864
  %868 = vmatprep.subr.mxu0 0.0
  %869 = vmatpush1.xpose.msra.mxu0 0.0
  %870 = vmatprep.subr.mxu0 0.0
  %871 = vmatpush1.xpose.msra.mxu0 0.0
  %872 = vmatprep.subr.mxu0 0.0
  %873 = vmatpush1.xpose.msra.mxu0 0.0
  %874 = vmatprep.subr.mxu0 0.0
  %875 = vmatpush1.xpose.msra.mxu0 0.0
  %876 = vmatprep.subr.mxu0 0.0
  %877 = vmatpush1.xpose.msra.mxu0 0.0
  %878 = vmatprep.subr.mxu0 0.0
  %879 = vmatpush1.xpose.msra.mxu0 0.0
  %880 = vmatprep.subr.mxu0 0.0
  %881 = vmatpush1.xpose.msra.mxu0 0.0
  %882 = vmatprep.subr.mxu0 0.0
  %883 = vmatpush1.xpose.msra.mxu0 0.0
  %884 = vmatprep.subr.mxu0 0.0
  %885 = vmatpush1.xpose.msra.mxu0 0.0
  %886 = vmatprep.subr.mxu0 0.0
  %887 = vmatpush1.xpose.msra.mxu0 0.0
  %888 = vmatprep.subr.mxu0 0.0
  %889 = vmatpush1.xpose.msra.mxu0 0.0
  %890 = vmatprep.subr.mxu0 0.0
  %891 = vmatpush1.xpose.msra.mxu0 0.0
  %892 = vmatprep.subr.mxu0 0.0
  %893 = vmatpush1.xpose.msra.mxu0 0.0
  %894 = vmatprep.subr.mxu0 0.0
  %895 = vmatpush1.xpose.msra.mxu0 0.0
  %896 = vmatprep.subr.mxu0 0.0
  %897 = vmatpush1.xpose.msra.mxu0 0.0
  %898 = vmatprep.subr.mxu0 0.0
  %899 = vmatpush1.xpose.msra.mxu0 0.0
  %900 = vmatprep.subr.mxu0 0.0
  %901 = vmatpush1.xpose.msra.mxu0 0.0
  %902 = vmatprep.subr.mxu0 0.0
  %903 = vmatpush1.xpose.msra.mxu0 0.0
  %904 = vmatprep.subr.mxu0 0.0
  %905 = vmatpush1.xpose.msra.mxu0 0.0
  %906 = vmatprep.subr.mxu0 0.0
  %907 = vmatpush1.xpose.msra.mxu0 0.0
  %908 = vmatprep.subr.mxu0 0.0
  %909 = vmatpush1.xpose.msra.mxu0 0.0
  %910 = vmatprep.subr.mxu0 0.0
  %911 = vmatpush1.xpose.msra.mxu0 0.0
  %912 = vmatprep.subr.mxu0 0.0
  %913 = vmatpush1.xpose.msra.mxu0 0.0
  %914 = vmatprep.subr.mxu0 0.0
  %915 = vmatpush1.xpose.msra.mxu0 0.0
  %916 = vmatprep.subr.mxu0 0.0
  %917 = vmatpush1.xpose.msra.mxu0 0.0
  %918 = vmatprep.subr.mxu0 0.0
  %919 = vmatpush1.xpose.msra.mxu0 0.0
  %920 = vmatprep.subr.mxu0 0.0
  %921 = vmatpush1.xpose.msra.mxu0 0.0
  %922 = vmatprep.subr.mxu0 0.0
  %923 = vmatpush1.xpose.msra.mxu0 0.0
  %924 = vmatprep.subr.mxu0 0.0
  %925 = vmatpush1.xpose.msra.mxu0 0.0
  %926 = vmatprep.subr.mxu0 0.0
  %927 = vmatpush1.xpose.msra.mxu0 0.0
  %928 = vmatprep.subr.mxu0 0.0
  %929 = vmatpush1.xpose.msra.mxu0 0.0
  %930 = vmatprep.mubr.f32.mxu0 0.0
  %931 = vmatmul.mubr.f32.gmra.mrb[0].mxu0 %v862
  %v932 = vpop.f32.mrb[0].mxu0
  %v933 = vadd.f32 0.0, %v932
  %v934 = vpop.f32.mrb[0].mxu0
  %935 = vdwg.mxu0
  %v936 = vmul.f32 %v933, 0.25
  %v937 = vsel %vm771, %v936, -inf
  %938 = vmax.xlane.f32.xlu0 %v937
  %v939 = vpop.xlane.xlu0 %938
  %v940 = vsub.f32 %v936, %v939
  %v941 = vmul.f32 %v940, 1.442695
  %v942 = vpow.pop %v941
  %v943 = vsel %vm771, %v942, 0.0
  %944 = vadd.xlane.f32.xlu0 %v943
  %v945 = vpop.xlane.xlu0 %944
  %v946 = vrcp.pop %v945
  %v947 = vmul.f32 %v942, %v946
  %948 = vrot.lane.b32.xlu0 %v691, 32
  %v949 = vpop.permute.xlu0 %948
  %v952 = vsel %vm771, %v947, 0
  %954 = vmatprep.subr.mxu0 0.0
  %955 = vmatpush1.msra.mxu0 %v949
  %956 = vmatprep.subr.mxu0 0.0
  %957 = vmatpush1.msra.mxu0 0.0
  %958 = vmatprep.subr.mxu0 0.0
  %959 = vmatpush1.msra.mxu0 0.0
  %960 = vmatprep.subr.mxu0 0.0
  %961 = vmatpush1.msra.mxu0 0.0
  %962 = vmatprep.subr.mxu0 0.0
  %963 = vmatpush1.msra.mxu0 0.0
  %964 = vmatprep.subr.mxu0 0.0
  %965 = vmatpush1.msra.mxu0 0.0
  %966 = vmatprep.subr.mxu0 0.0
  %967 = vmatpush1.msra.mxu0 0.0
  %968 = vmatprep.subr.mxu0 0.0
  %969 = vmatpush1.msra.mxu0 0.0
  %970 = vmatprep.subr.mxu0 0.0
  %971 = vmatpush1.msra.mxu0 0.0
  %972 = vmatprep.subr.mxu0 0.0
  %973 = vmatpush1.msra.mxu0 0.0
  %974 = vmatprep.subr.mxu0 0.0
  %975 = vmatpush1.msra.mxu0 0.0
  %976 = vmatprep.subr.mxu0 0.0
  %977 = vmatpush1.msra.mxu0 0.0
  %978 = vmatprep.subr.mxu0 0.0
  %979 = vmatpush1.msra.mxu0 0.0
  %980 = vmatprep.subr.mxu0 0.0
  %981 = vmatpush1.msra.mxu0 0.0
  %982 = vmatprep.subr.mxu0 0.0
  %983 = vmatpush1.msra.mxu0 0.0
  %984 = vmatprep.subr.mxu0 0.0
  %985 = vmatpush1.msra.mxu0 0.0
  %986 = vmatprep.subr.mxu0 0.0
  %987 = vmatpush1.msra.mxu0 0.0
  %988 = vmatprep.subr.mxu0 0.0
  %989 = vmatpush1.msra.mxu0 0.0
  %990 = vmatprep.subr.mxu0 0.0
  %991 = vmatpush1.msra.mxu0 0.0
  %992 = vmatprep.subr.mxu0 0.0
  %993 = vmatpush1.msra.mxu0 0.0
  %994 = vmatprep.subr.mxu0 0.0
  %995 = vmatpush1.msra.mxu0 0.0
  %996 = vmatprep.subr.mxu0 0.0
  %997 = vmatpush1.msra.mxu0 0.0
  %998 = vmatprep.subr.mxu0 0.0
  %999 = vmatpush1.msra.mxu0 0.0
  %1000 = vmatprep.subr.mxu0 0.0
  %1001 = vmatpush1.msra.mxu0 0.0
  %1002 = vmatprep.subr.mxu0 0.0
  %1003 = vmatpush1.msra.mxu0 0.0
  %1004 = vmatprep.subr.mxu0 0.0
  %1005 = vmatpush1.msra.mxu0 0.0
  %1006 = vmatprep.subr.mxu0 0.0
  %1007 = vmatpush1.msra.mxu0 0.0
  %1008 = vmatprep.subr.mxu0 0.0
  %1009 = vmatpush1.msra.mxu0 0.0
  %1010 = vmatprep.subr.mxu0 0.0
  %1011 = vmatpush1.msra.mxu0 0.0
  %1012 = vmatprep.subr.mxu0 0.0
  %1013 = vmatpush1.msra.mxu0 0.0
  %1014 = vmatprep.subr.mxu0 0.0
  %1015 = vmatpush1.msra.mxu0 0.0
  %1016 = vmatprep.subr.mxu0 0.0
  %1017 = vmatpush1.msra.mxu0 0.0
  %1018 = vmatprep.mubr.f32.mxu0 0.0
  %1019 = vmatmul.mubr.f32.gmra.mrb[0].mxu0 %v952
  %v1020 = vpop.f32.mrb[0].mxu0
  %v1021 = vadd.f32 0.0, %v1020
  %v1022 = vpop.f32.mrb[0].mxu0
  %1023 = vdwg.mxu0
  %1024 = vst.msk [vmem:[%s17] sm:$0xff] %vm540, %v1021
  %v1025 = vld [vmem:[#allocation2] sm:$0xff]
  %v1026 = vld [vmem:[#allocation3] sm:$0xff]
  %1028 = vrot.lane.b32.xlu0 %v1026, 112
  %v1029 = vpop.permute.xlu0 %1028
  %1031 = vrot.lane.b32.xlu0 %v1025, 64
  %v1032 = vpop.permute.xlu0 %1031
  %v1033 = vsel %vm540, %v1029, 0
  %v1035 = vsel %vm540, %v1032, 0
  %1037 = vmatprep.subr.mxu0 0.0
  %1038 = vmatpush1.xpose.msra.mxu0 %v1035
  %1039 = vmatprep.subr.mxu0 0.0
  %1040 = vmatpush1.xpose.msra.mxu0 0.0
  %1041 = vmatprep.subr.mxu0 0.0
  %1042 = vmatpush1.xpose.msra.mxu0 0.0
  %1043 = vmatprep.subr.mxu0 0.0
  %1044 = vmatpush1.xpose.msra.mxu0 0.0
  %1045 = vmatprep.subr.mxu0 0.0
  %1046 = vmatpush1.xpose.msra.mxu0 0.0
  %1047 = vmatprep.subr.mxu0 0.0
  %1048 = vmatpush1.xpose.msra.mxu0 0.0
  %1049 = vmatprep.subr.mxu0 0.0
  %1050 = vmatpush1.xpose.msra.mxu0 0.0
  %1051 = vmatprep.subr.mxu0 0.0
  %1052 = vmatpush1.xpose.msra.mxu0 0.0
  %1053 = vmatprep.subr.mxu0 0.0
  %1054 = vmatpush1.xpose.msra.mxu0 0.0
  %1055 = vmatprep.subr.mxu0 0.0
  %1056 = vmatpush1.xpose.msra.mxu0 0.0
  %1057 = vmatprep.subr.mxu0 0.0
  %1058 = vmatpush1.xpose.msra.mxu0 0.0
  %1059 = vmatprep.subr.mxu0 0.0
  %1060 = vmatpush1.xpose.msra.mxu0 0.0
  %1061 = vmatprep.subr.mxu0 0.0
  %1062 = vmatpush1.xpose.msra.mxu0 0.0
  %1063 = vmatprep.subr.mxu0 0.0
  %1064 = vmatpush1.xpose.msra.mxu0 0.0
  %1065 = vmatprep.subr.mxu0 0.0
  %1066 = vmatpush1.xpose.msra.mxu0 0.0
  %1067 = vmatprep.subr.mxu0 0.0
  %1068 = vmatpush1.xpose.msra.mxu0 0.0
  %1069 = vmatprep.subr.mxu0 0.0
  %1070 = vmatpush1.xpose.msra.mxu0 0.0
  %1071 = vmatprep.subr.mxu0 0.0
  %1072 = vmatpush1.xpose.msra.mxu0 0.0
  %1073 = vmatprep.subr.mxu0 0.0
  %1074 = vmatpush1.xpose.msra.mxu0 0.0
  %1075 = vmatprep.subr.mxu0 0.0
  %1076 = vmatpush1.xpose.msra.mxu0 0.0
  %1077 = vmatprep.subr.mxu0 0.0
  %1078 = vmatpush1.xpose.msra.mxu0 0.0
  %1079 = vmatprep.subr.mxu0 0.0
  %1080 = vmatpush1.xpose.msra.mxu0 0.0
  %1081 = vmatprep.subr.mxu0 0.0
  %1082 = vmatpush1.xpose.msra.mxu0 0.0
  %1083 = vmatprep.subr.mxu0 0.0
  %1084 = vmatpush1.xpose.msra.mxu0 0.0
  %1085 = vmatprep.subr.mxu0 0.0
  %1086 = vmatpush1.xpose.msra.mxu0 0.0
  %1087 = vmatprep.subr.mxu0 0.0
  %1088 = vmatpush1.xpose.msra.mxu0 0.0
  %1089 = vmatprep.subr.mxu0 0.0
  %1090 = vmatpush1.xpose.msra.mxu0 0.0
  %1091 = vmatprep.subr.mxu0 0.0
  %1092 = vmatpush1.xpose.msra.mxu0 0.0
  %1093 = vmatprep.subr.mxu0 0.0
  %1094 = vmatpush1.xpose.msra.mxu0 0.0
  %1095 = vmatprep.subr.mxu0 0.0
  %1096 = vmatpush1.xpose.msra.mxu0 0.0
  %1097 = vmatprep.subr.mxu0 0.0
  %1098 = vmatpush1.xpose.msra.mxu0 0.0
  %1099 = vmatprep.subr.mxu0 0.0
  %1100 = vmatpush1.xpose.msra.mxu0 0.0
  %1101 = vmatprep.mubr.f32.mxu0 0.0
  %1102 = vmatmul.mubr.f32.gmra.mrb[0].mxu0 %v1033
  %v1103 = vpop.f32.mrb[0].mxu0
  %v1104 = vadd.f32 0.0, %v1103
  %v1105 = vpop.f32.mrb[0].mxu0
  %1106 = vdwg.mxu0
  %v1107 = vmul.f32 %v1104, 0.25
  %v1108 = vsel %vm771, %v1107, -inf
  %1109 = vmax.xlane.f32.xlu0 %v1108
  %v1110 = vpop.xlane.xlu0 %1109
  %v1111 = vsub.f32 %v1107, %v1110
  %v1112 = vmul.f32 %v1111, 1.442695
  %v1113 = vpow.pop %v1112
  %v1114 = vsel %vm771, %v1113, 0.0
  %1115 = vadd.xlane.f32.xlu0 %v1114
  %v1116 = vpop.xlane.xlu0 %1115
  %v1117 = vrcp.pop %v1116
  %v1118 = vmul.f32 %v1113, %v1117
  %1119 = vrot.lane.b32.xlu0 %v1025, 16
  %v1120 = vpop.permute.xlu0 %1119
  %v1123 = vsel %vm771, %v1118, 0
  %1125 = vmatprep.subr.mxu0 0.0
  %1126 = vmatpush1.msra.mxu0 %v1120
  %1127 = vmatprep.subr.mxu0 0.0
  %1128 = vmatpush1.msra.mxu0 0.0
  %1129 = vmatprep.subr.mxu0 0.0
  %1130 = vmatpush1.msra.mxu0 0.0
  %1131 = vmatprep.subr.mxu0 0.0
  %1132 = vmatpush1.msra.mxu0 0.0
  %1133 = vmatprep.subr.mxu0 0.0
  %1134 = vmatpush1.msra.mxu0 0.0
  %1135 = vmatprep.subr.mxu0 0.0
  %1136 = vmatpush1.msra.mxu0 0.0
  %1137 = vmatprep.subr.mxu0 0.0
  %1138 = vmatpush1.msra.mxu0 0.0
  %1139 = vmatprep.subr.mxu0 0.0
  %1140 = vmatpush1.msra.mxu0 0.0
  %1141 = vmatprep.subr.mxu0 0.0
  %1142 = vmatpush1.msra.mxu0 0.0
  %1143 = vmatprep.subr.mxu0 0.0
  %1144 = vmatpush1.msra.mxu0 0.0
  %1145 = vmatprep.subr.mxu0 0.0
  %1146 = vmatpush1.msra.mxu0 0.0
  %1147 = vmatprep.subr.mxu0 0.0
  %1148 = vmatpush1.msra.mxu0 0.0
  %1149 = vmatprep.subr.mxu0 0.0
  %1150 = vmatpush1.msra.mxu0 0.0
  %1151 = vmatprep.subr.mxu0 0.0
  %1152 = vmatpush1.msra.mxu0 0.0
  %1153 = vmatprep.subr.mxu0 0.0
  %1154 = vmatpush1.msra.mxu0 0.0
  %1155 = vmatprep.subr.mxu0 0.0
  %1156 = vmatpush1.msra.mxu0 0.0
  %1157 = vmatprep.subr.mxu0 0.0
  %1158 = vmatpush1.msra.mxu0 0.0
  %1159 = vmatprep.subr.mxu0 0.0
  %1160 = vmatpush1.msra.mxu0 0.0
  %1161 = vmatprep.subr.mxu0 0.0
  %1162 = vmatpush1.msra.mxu0 0.0
  %1163 = vmatprep.subr.mxu0 0.0
  %1164 = vmatpush1.msra.mxu0 0.0
  %1165 = vmatprep.subr.mxu0 0.0
  %1166 = vmatpush1.msra.mxu0 0.0
  %1167 = vmatprep.subr.mxu0 0.0
  %1168 = vmatpush1.msra.mxu0 0.0
  %1169 = vmatprep.subr.mxu0 0.0
  %1170 = vmatpush1.msra.mxu0 0.0
  %1171 = vmatprep.subr.mxu0 0.0
  %1172 = vmatpush1.msra.mxu0 0.0
  %1173 = vmatprep.subr.mxu0 0.0
  %1174 = vmatpush1.msra.mxu0 0.0
  %1175 = vmatprep.subr.mxu0 0.0
  %1176 = vmatpush1.msra.mxu0 0.0
  %1177 = vmatprep.subr.mxu0 0.0
  %1178 = vmatpush1.msra.mxu0 0.0
  %1179 = vmatprep.subr.mxu0 0.0
  %1180 = vmatpush1.msra.mxu0 0.0
  %1181 = vmatprep.subr.mxu0 0.0
  %1182 = vmatpush1.msra.mxu0 0.0
  %1183 = vmatprep.subr.mxu0 0.0
  %1184 = vmatpush1.msra.mxu0 0.0
  %1185 = vmatprep.subr.mxu0 0.0
  %1186 = vmatpush1.msra.mxu0 0.0
  %1187 = vmatprep.subr.mxu0 0.0
  %1188 = vmatpush1.msra.mxu0 0.0
  %1189 = vmatprep.mubr.f32.mxu0 0.0
  %1190 = vmatmul.mubr.f32.gmra.mrb[0].mxu0 %v1123
  %v1191 = vpop.f32.mrb[0].mxu0
  %v1192 = vadd.f32 0.0, %v1191
  %v1193 = vpop.f32.mrb[0].mxu0
  %1194 = vdwg.mxu0
  %s1195 = scalar_lea.vmem %s16, 8
  %1196 = vst.msk [vmem:[%s1195] sm:$0xff] %vm540, %v1192
  %1197 = vrot.lane.b32.xlu0 %v1025, 112
  %v1198 = vpop.permute.xlu0 %1197
  %1199 = vrot.lane.b32.xlu0 %v1026, 64
  %v1200 = vpop.permute.xlu0 %1199
  %v1201 = vsel %vm540, %v1198, 0
  %v1203 = vsel %vm540, %v1200, 0
  %1205 = vmatprep.subr.mxu0 0.0
  %1206 = vmatpush1.xpose.msra.mxu0 %v1203
  %1207 = vmatprep.subr.mxu0 0.0
  %1208 = vmatpush1.xpose.msra.mxu0 0.0
  %1209 = vmatprep.subr.mxu0 0.0
  %1210 = vmatpush1.xpose.msra.mxu0 0.0
  %1211 = vmatprep.subr.mxu0 0.0
  %1212 = vmatpush1.xpose.msra.mxu0 0.0
  %1213 = vmatprep.subr.mxu0 0.0
  %1214 = vmatpush1.xpose.msra.mxu0 0.0
  %1215 = vmatprep.subr.mxu0 0.0
  %1216 = vmatpush1.xpose.msra.mxu0 0.0
  %1217 = vmatprep.subr.mxu0 0.0
  %1218 = vmatpush1.xpose.msra.mxu0 0.0
  %1219 = vmatprep.subr.mxu0 0.0
  %1220 = vmatpush1.xpose.msra.mxu0 0.0
  %1221 = vmatprep.subr.mxu0 0.0
  %1222 = vmatpush1.xpose.msra.mxu0 0.0
  %1223 = vmatprep.subr.mxu0 0.0
  %1224 = vmatpush1.xpose.msra.mxu0 0.0
  %1225 = vmatprep.subr.mxu0 0.0
  %1226 = vmatpush1.xpose.msra.mxu0 0.0
  %1227 = vmatprep.subr.mxu0 0.0
  %1228 = vmatpush1.xpose.msra.mxu0 0.0
  %1229 = vmatprep.subr.mxu0 0.0
  %1230 = vmatpush1.xpose.msra.mxu0 0.0
  %1231 = vmatprep.subr.mxu0 0.0
  %1232 = vmatpush1.xpose.msra.mxu0 0.0
  %1233 = vmatprep.subr.mxu0 0.0
  %1234 = vmatpush1.xpose.msra.mxu0 0.0
  %1235 = vmatprep.subr.mxu0 0.0
  %1236 = vmatpush1.xpose.msra.mxu0 0.0
  %1237 = vmatprep.subr.mxu0 0.0
  %1238 = vmatpush1.xpose.msra.mxu0 0.0
  %1239 = vmatprep.subr.mxu0 0.0
  %1240 = vmatpush1.xpose.msra.mxu0 0.0
  %1241 = vmatprep.subr.mxu0 0.0
  %1242 = vmatpush1.xpose.msra.mxu0 0.0
  %1243 = vmatprep.subr.mxu0 0.0
  %1244 = vmatpush1.xpose.msra.mxu0 0.0
  %1245 = vmatprep.subr.mxu0 0.0
  %1246 = vmatpush1.xpose.msra.mxu0 0.0
  %1247 = vmatprep.subr.mxu0 0.0
  %1248 = vmatpush1.xpose.msra.mxu0 0.0
  %1249 = vmatprep.subr.mxu0 0.0
  %1250 = vmatpush1.xpose.msra.mxu0 0.0
  %1251 = vmatprep.subr.mxu0 0.0
  %1252 = vmatpush1.xpose.msra.mxu0 0.0
  %1253 = vmatprep.subr.mxu0 0.0
  %1254 = vmatpush1.xpose.msra.mxu0 0.0
  %1255 = vmatprep.subr.mxu0 0.0
  %1256 = vmatpush1.xpose.msra.mxu0 0.0
  %1257 = vmatprep.subr.mxu0 0.0
  %1258 = vmatpush1.xpose.msra.mxu0 0.0
  %1259 = vmatprep.subr.mxu0 0.0
  %1260 = vmatpush1.xpose.msra.mxu0 0.0
  %1261 = vmatprep.subr.mxu0 0.0
  %1262 = vmatpush1.xpose.msra.mxu0 0.0
  %1263 = vmatprep.subr.mxu0 0.0
  %1264 = vmatpush1.xpose.msra.mxu0 0.0
  %1265 = vmatprep.subr.mxu0 0.0
  %1266 = vmatpush1.xpose.msra.mxu0 0.0
  %1267 = vmatprep.subr.mxu0 0.0
  %1268 = vmatpush1.xpose.msra.mxu0 0.0
  %1269 = vmatprep.mubr.f32.mxu0 0.0
  %1270 = vmatmul.mubr.f32.gmra.mrb[0].mxu0 %v1201
  %v1271 = vpop.f32.mrb[0].mxu0
  %v1272 = vadd.f32 0.0, %v1271
  %v1273 = vpop.f32.mrb[0].mxu0
  %1274 = vdwg.mxu0
  %v1275 = vmul.f32 %v1272, 0.25
  %v1276 = vsel %vm771, %v1275, -inf
  %1277 = vmax.xlane.f32.xlu0 %v1276
  %v1278 = vpop.xlane.xlu0 %1277
  %v1279 = vsub.f32 %v1275, %v1278
  %v1280 = vmul.f32 %v1279, 1.442695
  %v1281 = vpow.pop %v1280
  %v1282 = vsel %vm771, %v1281, 0.0
  %1283 = vadd.xlane.f32.xlu0 %v1282
  %v1284 = vpop.xlane.xlu0 %1283
  %v1285 = vrcp.pop %v1284
  %v1286 = vmul.f32 %v1281, %v1285
  %1287 = vrot.lane.b32.xlu0 %v1026, 16
  %v1288 = vpop.permute.xlu0 %1287
  %v1291 = vsel %vm771, %v1286, 0
  %1293 = vmatprep.subr.mxu0 0.0
  %1294 = vmatpush1.msra.mxu0 %v1288
  %1295 = vmatprep.subr.mxu0 0.0
  %1296 = vmatpush1.msra.mxu0 0.0
  %1297 = vmatprep.subr.mxu0 0.0
  %1298 = vmatpush1.msra.mxu0 0.0
  %1299 = vmatprep.subr.mxu0 0.0
  %1300 = vmatpush1.msra.mxu0 0.0
  %1301 = vmatprep.subr.mxu0 0.0
  %1302 = vmatpush1.msra.mxu0 0.0
  %1303 = vmatprep.subr.mxu0 0.0
  %1304 = vmatpush1.msra.mxu0 0.0
  %1305 = vmatprep.subr.mxu0 0.0
  %1306 = vmatpush1.msra.mxu0 0.0
  %1307 = vmatprep.subr.mxu0 0.0
  %1308 = vmatpush1.msra.mxu0 0.0
  %1309 = vmatprep.subr.mxu0 0.0
  %1310 = vmatpush1.msra.mxu0 0.0
  %1311 = vmatprep.subr.mxu0 0.0
  %1312 = vmatpush1.msra.mxu0 0.0
  %1313 = vmatprep.subr.mxu0 0.0
  %1314 = vmatpush1.msra.mxu0 0.0
  %1315 = vmatprep.subr.mxu0 0.0
  %1316 = vmatpush1.msra.mxu0 0.0
  %1317 = vmatprep.subr.mxu0 0.0
  %1318 = vmatpush1.msra.mxu0 0.0
  %1319 = vmatprep.subr.mxu0 0.0
  %1320 = vmatpush1.msra.mxu0 0.0
  %1321 = vmatprep.subr.mxu0 0.0
  %1322 = vmatpush1.msra.mxu0 0.0
  %1323 = vmatprep.subr.mxu0 0.0
  %1324 = vmatpush1.msra.mxu0 0.0
  %1325 = vmatprep.subr.mxu0 0.0
  %1326 = vmatpush1.msra.mxu0 0.0
  %1327 = vmatprep.subr.mxu0 0.0
  %1328 = vmatpush1.msra.mxu0 0.0
  %1329 = vmatprep.subr.mxu0 0.0
  %1330 = vmatpush1.msra.mxu0 0.0
  %1331 = vmatprep.subr.mxu0 0.0
  %1332 = vmatpush1.msra.mxu0 0.0
  %1333 = vmatprep.subr.mxu0 0.0
  %1334 = vmatpush1.msra.mxu0 0.0
  %1335 = vmatprep.subr.mxu0 0.0
  %1336 = vmatpush1.msra.mxu0 0.0
  %1337 = vmatprep.subr.mxu0 0.0
  %1338 = vmatpush1.msra.mxu0 0.0
  %1339 = vmatprep.subr.mxu0 0.0
  %1340 = vmatpush1.msra.mxu0 0.0
  %1341 = vmatprep.subr.mxu0 0.0
  %1342 = vmatpush1.msra.mxu0 0.0
  %1343 = vmatprep.subr.mxu0 0.0
  %1344 = vmatpush1.msra.mxu0 0.0
  %1345 = vmatprep.subr.mxu0 0.0
  %1346 = vmatpush1.msra.mxu0 0.0
  %1347 = vmatprep.subr.mxu0 0.0
  %1348 = vmatpush1.msra.mxu0 0.0
  %1349 = vmatprep.subr.mxu0 0.0
  %1350 = vmatpush1.msra.mxu0 0.0
  %1351 = vmatprep.subr.mxu0 0.0
  %1352 = vmatpush1.msra.mxu0 0.0
  %1353 = vmatprep.subr.mxu0 0.0
  %1354 = vmatpush1.msra.mxu0 0.0
  %1355 = vmatprep.subr.mxu0 0.0
  %1356 = vmatpush1.msra.mxu0 0.0
  %1357 = vmatprep.mubr.f32.mxu0 0.0
  %1358 = vmatmul.mubr.f32.gmra.mrb[0].mxu0 %v1291
  %v1359 = vpop.f32.mrb[0].mxu0
  %v1360 = vadd.f32 0.0, %v1359
  %v1361 = vpop.f32.mrb[0].mxu0
  %1362 = vdwg.mxu0
  %s1363 = scalar_lea.vmem %s17, 8
  %1364 = vst.msk [vmem:[%s1363] sm:$0xff] %vm540, %v1360
  %v1365 = vld [vmem:[#allocation2] sm:$0xff]
  %v1366 = vld [vmem:[#allocation2 + $0x8] sm:$0xff]
  %v1367 = vld [vmem:[#allocation3] sm:$0xff]
  %v1368 = vld [vmem:[#allocation3 + $0x8] sm:$0xff]
  %1370 = vrot.lane.b32.xlu0 %v1367, 96
  %v1371 = vpop.permute.xlu0 %1370
  %1373 = vrot.lane.b32.xlu0 %v1365, 48
  %v1374 = vpop.permute.xlu0 %1373
  %v1375 = vsel %vm540, %v1371, 0
  %v1377 = vsel %vm540, %v1374, 0
  %1379 = vmatprep.subr.mxu0 0.0
  %1380 = vmatpush1.xpose.msra.mxu0 %v1377
  %1381 = vmatprep.subr.mxu0 0.0
  %1382 = vmatpush1.xpose.msra.mxu0 0.0
  %1383 = vmatprep.subr.mxu0 0.0
  %1384 = vmatpush1.xpose.msra.mxu0 0.0
  %1385 = vmatprep.subr.mxu0 0.0
  %1386 = vmatpush1.xpose.msra.mxu0 0.0
  %1387 = vmatprep.subr.mxu0 0.0
  %1388 = vmatpush1.xpose.msra.mxu0 0.0
  %1389 = vmatprep.subr.mxu0 0.0
  %1390 = vmatpush1.xpose.msra.mxu0 0.0
  %1391 = vmatprep.subr.mxu0 0.0
  %1392 = vmatpush1.xpose.msra.mxu0 0.0
  %1393 = vmatprep.subr.mxu0 0.0
  %1394 = vmatpush1.xpose.msra.mxu0 0.0
  %1395 = vmatprep.subr.mxu0 0.0
  %1396 = vmatpush1.xpose.msra.mxu0 0.0
  %1397 = vmatprep.subr.mxu0 0.0
  %1398 = vmatpush1.xpose.msra.mxu0 0.0
  %1399 = vmatprep.subr.mxu0 0.0
  %1400 = vmatpush1.xpose.msra.mxu0 0.0
  %1401 = vmatprep.subr.mxu0 0.0
  %1402 = vmatpush1.xpose.msra.mxu0 0.0
  %1403 = vmatprep.subr.mxu0 0.0
  %1404 = vmatpush1.xpose.msra.mxu0 0.0
  %1405 = vmatprep.subr.mxu0 0.0
  %1406 = vmatpush1.xpose.msra.mxu0 0.0
  %1407 = vmatprep.subr.mxu0 0.0
  %1408 = vmatpush1.xpose.msra.mxu0 0.0
  %1409 = vmatprep.subr.mxu0 0.0
  %1410 = vmatpush1.xpose.msra.mxu0 0.0
  %1411 = vmatprep.subr.mxu0 0.0
  %1412 = vmatpush1.xpose.msra.mxu0 0.0
  %1413 = vmatprep.subr.mxu0 0.0
  %1414 = vmatpush1.xpose.msra.mxu0 0.0
  %1415 = vmatprep.subr.mxu0 0.0
  %1416 = vmatpush1.xpose.msra.mxu0 0.0
  %1417 = vmatprep.subr.mxu0 0.0
  %1418 = vmatpush1.xpose.msra.mxu0 0.0
  %1419 = vmatprep.subr.mxu0 0.0
  %1420 = vmatpush1.xpose.msra.mxu0 0.0
  %1421 = vmatprep.subr.mxu0 0.0
  %1422 = vmatpush1.xpose.msra.mxu0 0.0
  %1423 = vmatprep.subr.mxu0 0.0
  %1424 = vmatpush1.xpose.msra.mxu0 0.0
  %1425 = vmatprep.subr.mxu0 0.0
  %1426 = vmatpush1.xpose.msra.mxu0 0.0
  %1427 = vmatprep.subr.mxu0 0.0
  %1428 = vmatpush1.xpose.msra.mxu0 0.0
  %1429 = vmatprep.subr.mxu0 0.0
  %1430 = vmatpush1.xpose.msra.mxu0 0.0
  %1431 = vmatprep.subr.mxu0 0.0
  %1432 = vmatpush1.xpose.msra.mxu0 0.0
  %1433 = vmatprep.subr.mxu0 0.0
  %1434 = vmatpush1.xpose.msra.mxu0 0.0
  %1435 = vmatprep.subr.mxu0 0.0
  %1436 = vmatpush1.xpose.msra.mxu0 0.0
  %1437 = vmatprep.subr.mxu0 0.0
  %1438 = vmatpush1.xpose.msra.mxu0 0.0
  %1439 = vmatprep.subr.mxu0 0.0
  %1440 = vmatpush1.xpose.msra.mxu0 0.0
  %1441 = vmatprep.subr.mxu0 0.0
  %1442 = vmatpush1.xpose.msra.mxu0 0.0
  %1443 = vmatprep.mubr.f32.mxu0 0.0
  %1444 = vmatmul.mubr.f32.gmra.mrb[0].mxu0 %v1375
  %v1445 = vpop.f32.mrb[0].mxu0
  %v1446 = vadd.f32 0.0, %v1445
  %v1447 = vpop.f32.mrb[0].mxu0
  %1448 = vdwg.mxu0
  %v1449 = vmul.f32 %v1446, 0.25
  %v1450 = vsel %vm771, %v1449, -inf
  %1451 = vmax.xlane.f32.xlu0 %v1450
  %v1452 = vpop.xlane.xlu0 %1451
  %v1453 = vsub.f32 %v1449, %v1452
  %v1454 = vmul.f32 %v1453, 1.442695
  %v1455 = vpow.pop %v1454
  %v1456 = vsel %vm771, %v1455, 0.0
  %1457 = vadd.xlane.f32.xlu0 %v1456
  %v1458 = vpop.xlane.xlu0 %1457
  %v1459 = vrcp.pop %v1458
  %v1460 = vmul.f32 %v1455, %v1459
  %v1462 = vsel %vm771, %v1460, 0
  %1464 = vmatprep.subr.mxu0 0.0
  %1465 = vmatpush1.msra.mxu0 %v1366
  %1466 = vmatprep.subr.mxu0 0.0
  %1467 = vmatpush1.msra.mxu0 0.0
  %1468 = vmatprep.subr.mxu0 0.0
  %1469 = vmatpush1.msra.mxu0 0.0
  %1470 = vmatprep.subr.mxu0 0.0
  %1471 = vmatpush1.msra.mxu0 0.0
  %1472 = vmatprep.subr.mxu0 0.0
  %1473 = vmatpush1.msra.mxu0 0.0
  %1474 = vmatprep.subr.mxu0 0.0
  %1475 = vmatpush1.msra.mxu0 0.0
  %1476 = vmatprep.subr.mxu0 0.0
  %1477 = vmatpush1.msra.mxu0 0.0
  %1478 = vmatprep.subr.mxu0 0.0
  %1479 = vmatpush1.msra.mxu0 0.0
  %1480 = vmatprep.subr.mxu0 0.0
  %1481 = vmatpush1.msra.mxu0 0.0
  %1482 = vmatprep.subr.mxu0 0.0
  %1483 = vmatpush1.msra.mxu0 0.0
  %1484 = vmatprep.subr.mxu0 0.0
  %1485 = vmatpush1.msra.mxu0 0.0
  %1486 = vmatprep.subr.mxu0 0.0
  %1487 = vmatpush1.msra.mxu0 0.0
  %1488 = vmatprep.subr.mxu0 0.0
  %1489 = vmatpush1.msra.mxu0 0.0
  %1490 = vmatprep.subr.mxu0 0.0
  %1491 = vmatpush1.msra.mxu0 0.0
  %1492 = vmatprep.subr.mxu0 0.0
  %1493 = vmatpush1.msra.mxu0 0.0
  %1494 = vmatprep.subr.mxu0 0.0
  %1495 = vmatpush1.msra.mxu0 0.0
  %1496 = vmatprep.subr.mxu0 0.0
  %1497 = vmatpush1.msra.mxu0 0.0
  %1498 = vmatprep.subr.mxu0 0.0
  %1499 = vmatpush1.msra.mxu0 0.0
  %1500 = vmatprep.subr.mxu0 0.0
  %1501 = vmatpush1.msra.mxu0 0.0
  %1502 = vmatprep.subr.mxu0 0.0
  %1503 = vmatpush1.msra.mxu0 0.0
  %1504 = vmatprep.subr.mxu0 0.0
  %1505 = vmatpush1.msra.mxu0 0.0
  %1506 = vmatprep.subr.mxu0 0.0
  %1507 = vmatpush1.msra.mxu0 0.0
  %1508 = vmatprep.subr.mxu0 0.0
  %1509 = vmatpush1.msra.mxu0 0.0
  %1510 = vmatprep.subr.mxu0 0.0
  %1511 = vmatpush1.msra.mxu0 0.0
  %1512 = vmatprep.subr.mxu0 0.0
  %1513 = vmatpush1.msra.mxu0 0.0
  %1514 = vmatprep.subr.mxu0 0.0
  %1515 = vmatpush1.msra.mxu0 0.0
  %1516 = vmatprep.subr.mxu0 0.0
  %1517 = vmatpush1.msra.mxu0 0.0
  %1518 = vmatprep.subr.mxu0 0.0
  %1519 = vmatpush1.msra.mxu0 0.0
  %1520 = vmatprep.subr.mxu0 0.0
  %1521 = vmatpush1.msra.mxu0 0.0
  %1522 = vmatprep.subr.mxu0 0.0
  %1523 = vmatpush1.msra.mxu0 0.0
  %1524 = vmatprep.subr.mxu0 0.0
  %1525 = vmatpush1.msra.mxu0 0.0
  %1526 = vmatprep.subr.mxu0 0.0
  %1527 = vmatpush1.msra.mxu0 0.0
  %1528 = vmatprep.mubr.f32.mxu0 0.0
  %1529 = vmatmul.mubr.f32.gmra.mrb[0].mxu0 %v1462
  %v1530 = vpop.f32.mrb[0].mxu0
  %v1531 = vadd.f32 0.0, %v1530
  %v1532 = vpop.f32.mrb[0].mxu0
  %1533 = vdwg.mxu0
  %s1534 = scalar_lea.vmem %s16, 16
  %1535 = vst.msk [vmem:[%s1534] sm:$0xff] %vm540, %v1531
  %1536 = vrot.lane.b32.xlu0 %v1365, 96
  %v1537 = vpop.permute.xlu0 %1536
  %1538 = vrot.lane.b32.xlu0 %v1367, 48
  %v1539 = vpop.permute.xlu0 %1538
  %v1540 = vsel %vm540, %v1537, 0
  %v1542 = vsel %vm540, %v1539, 0
  %1544 = vmatprep.subr.mxu0 0.0
  %1545 = vmatpush1.xpose.msra.mxu0 %v1542
  %1546 = vmatprep.subr.mxu0 0.0
  %1547 = vmatpush1.xpose.msra.mxu0 0.0
  %1548 = vmatprep.subr.mxu0 0.0
  %1549 = vmatpush1.xpose.msra.mxu0 0.0
  %1550 = vmatprep.subr.mxu0 0.0
  %1551 = vmatpush1.xpose.msra.mxu0 0.0
  %1552 = vmatprep.subr.mxu0 0.0
  %1553 = vmatpush1.xpose.msra.mxu0 0.0
  %1554 = vmatprep.subr.mxu0 0.0
  %1555 = vmatpush1.xpose.msra.mxu0 0.0
  %1556 = vmatprep.subr.mxu0 0.0
  %1557 = vmatpush1.xpose.msra.mxu0 0.0
  %1558 = vmatprep.subr.mxu0 0.0
  %1559 = vmatpush1.xpose.msra.mxu0 0.0
  %1560 = vmatprep.subr.mxu0 0.0
  %1561 = vmatpush1.xpose.msra.mxu0 0.0
  %1562 = vmatprep.subr.mxu0 0.0
  %1563 = vmatpush1.xpose.msra.mxu0 0.0
  %1564 = vmatprep.subr.mxu0 0.0
  %1565 = vmatpush1.xpose.msra.mxu0 0.0
  %1566 = vmatprep.subr.mxu0 0.0
  %1567 = vmatpush1.xpose.msra.mxu0 0.0
  %1568 = vmatprep.subr.mxu0 0.0
  %1569 = vmatpush1.xpose.msra.mxu0 0.0
  %1570 = vmatprep.subr.mxu0 0.0
  %1571 = vmatpush1.xpose.msra.mxu0 0.0
  %1572 = vmatprep.subr.mxu0 0.0
  %1573 = vmatpush1.xpose.msra.mxu0 0.0
  %1574 = vmatprep.subr.mxu0 0.0
  %1575 = vmatpush1.xpose.msra.mxu0 0.0
  %1576 = vmatprep.subr.mxu0 0.0
  %1577 = vmatpush1.xpose.msra.mxu0 0.0
  %1578 = vmatprep.subr.mxu0 0.0
  %1579 = vmatpush1.xpose.msra.mxu0 0.0
  %1580 = vmatprep.subr.mxu0 0.0
  %1581 = vmatpush1.xpose.msra.mxu0 0.0
  %1582 = vmatprep.subr.mxu0 0.0
  %1583 = vmatpush1.xpose.msra.mxu0 0.0
  %1584 = vmatprep.subr.mxu0 0.0
  %1585 = vmatpush1.xpose.msra.mxu0 0.0
  %1586 = vmatprep.subr.mxu0 0.0
  %1587 = vmatpush1.xpose.msra.mxu0 0.0
  %1588 = vmatprep.subr.mxu0 0.0
  %1589 = vmatpush1.xpose.msra.mxu0 0.0
  %1590 = vmatprep.subr.mxu0 0.0
  %1591 = vmatpush1.xpose.msra.mxu0 0.0
  %1592 = vmatprep.subr.mxu0 0.0
  %1593 = vmatpush1.xpose.msra.mxu0 0.0
  %1594 = vmatprep.subr.mxu0 0.0
  %1595 = vmatpush1.xpose.msra.mxu0 0.0
  %1596 = vmatprep.subr.mxu0 0.0
  %1597 = vmatpush1.xpose.msra.mxu0 0.0
  %1598 = vmatprep.subr.mxu0 0.0
  %1599 = vmatpush1.xpose.msra.mxu0 0.0
  %1600 = vmatprep.subr.mxu0 0.0
  %1601 = vmatpush1.xpose.msra.mxu0 0.0
  %1602 = vmatprep.subr.mxu0 0.0
  %1603 = vmatpush1.xpose.msra.mxu0 0.0
  %1604 = vmatprep.subr.mxu0 0.0
  %1605 = vmatpush1.xpose.msra.mxu0 0.0
  %1606 = vmatprep.subr.mxu0 0.0
  %1607 = vmatpush1.xpose.msra.mxu0 0.0
  %1608 = vmatprep.mubr.f32.mxu0 0.0
  %1609 = vmatmul.mubr.f32.gmra.mrb[0].mxu0 %v1540
  %v1610 = vpop.f32.mrb[0].mxu0
  %v1611 = vadd.f32 0.0, %v1610
  %v1612 = vpop.f32.mrb[0].mxu0
  %1613 = vdwg.mxu0
  %v1614 = vmul.f32 %v1611, 0.25
  %v1615 = vsel %vm771, %v1614, -inf
  %1616 = vmax.xlane.f32.xlu0 %v1615
  %v1617 = vpop.xlane.xlu0 %1616
  %v1618 = vsub.f32 %v1614, %v1617
  %v1619 = vmul.f32 %v1618, 1.442695
  %v1620 = vpow.pop %v1619
  %v1621 = vsel %vm771, %v1620, 0.0
  %1622 = vadd.xlane.f32.xlu0 %v1621
  %v1623 = vpop.xlane.xlu0 %1622
  %v1624 = vrcp.pop %v1623
  %v1625 = vmul.f32 %v1620, %v1624
  %v1627 = vsel %vm771, %v1625, 0
  %1629 = vmatprep.subr.mxu0 0.0
  %1630 = vmatpush1.msra.mxu0 %v1368
  %1631 = vmatprep.subr.mxu0 0.0
  %1632 = vmatpush1.msra.mxu0 0.0
  %1633 = vmatprep.subr.mxu0 0.0
  %1634 = vmatpush1.msra.mxu0 0.0
  %1635 = vmatprep.subr.mxu0 0.0
  %1636 = vmatpush1.msra.mxu0 0.0
  %1637 = vmatprep.subr.mxu0 0.0
  %1638 = vmatpush1.msra.mxu0 0.0
  %1639 = vmatprep.subr.mxu0 0.0
  %1640 = vmatpush1.msra.mxu0 0.0
  %1641 = vmatprep.subr.mxu0 0.0
  %1642 = vmatpush1.msra.mxu0 0.0
  %1643 = vmatprep.subr.mxu0 0.0
  %1644 = vmatpush1.msra.mxu0 0.0
  %1645 = vmatprep.subr.mxu0 0.0
  %1646 = vmatpush1.msra.mxu0 0.0
  %1647 = vmatprep.subr.mxu0 0.0
  %1648 = vmatpush1.msra.mxu0 0.0
  %1649 = vmatprep.subr.mxu0 0.0
  %1650 = vmatpush1.msra.mxu0 0.0
  %1651 = vmatprep.subr.mxu0 0.0
  %1652 = vmatpush1.msra.mxu0 0.0
  %1653 = vmatprep.subr.mxu0 0.0
  %1654 = vmatpush1.msra.mxu0 0.0
  %1655 = vmatprep.subr.mxu0 0.0
  %1656 = vmatpush1.msra.mxu0 0.0
  %1657 = vmatprep.subr.mxu0 0.0
  %1658 = vmatpush1.msra.mxu0 0.0
  %1659 = vmatprep.subr.mxu0 0.0
  %1660 = vmatpush1.msra.mxu0 0.0
  %1661 = vmatprep.subr.mxu0 0.0
  %1662 = vmatpush1.msra.mxu0 0.0
  %1663 = vmatprep.subr.mxu0 0.0
  %1664 = vmatpush1.msra.mxu0 0.0
  %1665 = vmatprep.subr.mxu0 0.0
  %1666 = vmatpush1.msra.mxu0 0.0
  %1667 = vmatprep.subr.mxu0 0.0
  %1668 = vmatpush1.msra.mxu0 0.0
  %1669 = vmatprep.subr.mxu0 0.0
  %1670 = vmatpush1.msra.mxu0 0.0
  %1671 = vmatprep.subr.mxu0 0.0
  %1672 = vmatpush1.msra.mxu0 0.0
  %1673 = vmatprep.subr.mxu0 0.0
  %1674 = vmatpush1.msra.mxu0 0.0
  %1675 = vmatprep.subr.mxu0 0.0
  %1676 = vmatpush1.msra.mxu0 0.0
  %1677 = vmatprep.subr.mxu0 0.0
  %1678 = vmatpush1.msra.mxu0 0.0
  %1679 = vmatprep.subr.mxu0 0.0
  %1680 = vmatpush1.msra.mxu0 0.0
  %1681 = vmatprep.subr.mxu0 0.0
  %1682 = vmatpush1.msra.mxu0 0.0
  %1683 = vmatprep.subr.mxu0 0.0
  %1684 = vmatpush1.msra.mxu0 0.0
  %1685 = vmatprep.subr.mxu0 0.0
  %1686 = vmatpush1.msra.mxu0 0.0
  %1687 = vmatprep.subr.mxu0 0.0
  %1688 = vmatpush1.msra.mxu0 0.0
  %1689 = vmatprep.subr.mxu0 0.0
  %1690 = vmatpush1.msra.mxu0 0.0
  %1691 = vmatprep.subr.mxu0 0.0
  %1692 = vmatpush1.msra.mxu0 0.0
  %1693 = vmatprep.mubr.f32.mxu0 0.0
  %1694 = vmatmul.mubr.f32.gmra.mrb[0].mxu0 %v1627
  %v1695 = vpop.f32.mrb[0].mxu0
  %v1696 = vadd.f32 0.0, %v1695
  %v1697 = vpop.f32.mrb[0].mxu0
  %1698 = vdwg.mxu0
  %s1699 = scalar_lea.vmem %s17, 16
  %1700 = vst.msk [vmem:[%s1699] sm:$0xff] %vm540, %v1696
  // Predicated region
  $region66: #{en2_forward.6} parent=0 // pred_check
    _
  $region67: #{en2_forward.6} parent=0 // pred_check_branch
    %1702 = sbr.rel (0) target = $region69
  $region68: #{en2_forward.6} parent=0 // pred_region
    _
  $region69: #{en2_forward.6} parent=0 // pred_fallthru
    _
  // Predicated region
  $region70: #{en2_forward.6} parent=0 // pred_check
    _
  $region71: #{en2_forward.6} parent=0 // pred_check_branch
    %1704 = sbr.rel (0) target = $region73
  $region72: #{en2_forward.6} parent=0 // pred_region
    _
  $region73: #{en2_forward.6} parent=0 // pred_fallthru
    _
  // Predicated region
  $region74: #{en2_forward.6} parent=0 // pred_check
    _
  $region75: #{en2_forward.6} parent=0 // pred_check_branch
    %1706 = sbr.rel (0) target = $region77
  $region76: #{en2_forward.6} parent=0 // pred_region
    _
  $region77: #{en2_forward.6} parent=0 // pred_fallthru
    _
  // Predicated region
  $region78: #{en2_forward.6} parent=0 // pred_check
    _
  $region79: #{en2_forward.6} parent=0 // pred_check_branch
    %1708 = sbr.rel (0) target = $region81
  $region80: #{en2_forward.6} parent=0 // pred_region
    _
  $region81: #{en2_forward.6} parent=0 // pred_fallthru
    _
  // Predicated region
  $region82: #{en2_forward.6} parent=0 // pred_check
    _
  $region83: #{en2_forward.6} parent=0 // pred_check_branch
    %1710 = sbr.rel (0) target = $region85
  $region84: #{en2_forward.6} parent=0 // pred_region
    _
  $region85: #{en2_forward.6} parent=0 // pred_fallthru
    _
  // Predicated region
  $region86: #{en2_forward.6} parent=0 // pred_check
    _
  $region87: #{en2_forward.6} parent=0 // pred_check_branch
    %1712 = sbr.rel (0) target = $region89
  $region88: #{en2_forward.6} parent=0 // pred_region
    _
  $region89: #{en2_forward.6} parent=0 // pred_fallthru
    _
  // Predicated region
  $region90: #{en2_forward.6} parent=0 // pred_check
    _
  $region91: #{en2_forward.6} parent=0 // pred_check_branch
    %1714 = sbr.rel (0) target = $region93
  $region92: #{en2_forward.6} parent=0 // pred_region
    _
  $region93: #{en2_forward.6} parent=0 // pred_fallthru
    _
  // Predicated region
  $region94: #{en2_forward.6} parent=0 // pred_check
    _
  $region95: #{en2_forward.6} parent=0 // pred_check_branch
    %1716 = sbr.rel (0) target = $region97
  $region96: #{en2_forward.6} parent=0 // pred_region
    _
  $region97: #{en2_forward.6} parent=0 // pred_fallthru
    _

</llo_original>
